<compile_context>
chip_gen: v5e
topology: v5e:2x2
jax: 0.10.0
libtpu: 0.0.40
codegen_flags: <defaults>
</compile_context>

<pallas_src>
import functools

import jax
import jax.numpy as jnp
from jax.experimental import pallas as pl
from jax.experimental.pallas import tpu as pltpu


def _round_up(x, m):
    return (x + m - 1) // m * m


def _make_fused_kernel(H, W, Cin, Cout, CP1, CP2, k, stride,
                       pad1, Ho1, Wo1, pad2, Ho2, Wo2,
                       eps=1e-5, slope=0.01):
    """Fused (conv -> InstanceNorm -> LeakyReLU) x 2 for one batch element."""

    def im2col_t(xp_ref, patch_ref, Ho, Wo, C, s):
        # Build the transposed im2col matrix (k*k*C, Ho*Wo) in a VMEM scratch ref.
        xv = xp_ref[...]                                       # (Hp, Wp, C) f32
        for kh in range(k):
            for kw in range(k):
                t = kh * k + kw
                win = jax.lax.slice(
                    xv, (kh, kw, 0),
                    (kh + (Ho - 1) * s + 1, kw + (Wo - 1) * s + 1, C),
                    (s, s, 1))                                 # (Ho, Wo, C)
                win_t = win.reshape(Ho * Wo, C).T              # (C, Ho*Wo) in VMEM
                # C is a multiple of 8, so these row stores are tile-aligned.
                patch_ref[t * C:(t + 1) * C, :] = win_t.astype(patch_ref.dtype)

    def conv_in_act(patch_ref, w_ref, g_ref, b_ref, n_spatial):
        # One bf16 matmul folding all k*k taps; f32 accumulation + statistics.
        acc = jnp.dot(w_ref[...], patch_ref[...],
                      preferred_element_type=jnp.float32)      # (Cout, Ho*Wo) f32
        inv_n = 1.0 / float(n_spatial)
        s1 = jnp.sum(acc, axis=1, keepdims=True)               # single pass:
        s2 = jnp.sum(acc * acc, axis=1, keepdims=True)         # sum + sum of squares
        mean = s1 * inv_n
        var = jnp.maximum(s2 * inv_n - mean * mean, 0.0)       # biased variance
        y = (acc - mean) * jax.lax.rsqrt(var + eps)
        y = y * g_ref[...] + b_ref[...]                        # affine
        return jnp.where(y >= 0, y, slope * y)                 # LeakyReLU(0.01)

    def kernel(x_ref, w1_ref, g1_ref, b1_ref, w2_ref, g2_ref, b2_ref, o_ref,
               xp1_ref, p1_ref, xp2_ref, p2_ref):
        # ---- stage 1: conv1 (stride=s) -> IN -> LReLU, all in VMEM -------------
        if pad1 > 0 or CP1 != Cin:
            xp1_ref[...] = jnp.zeros_like(xp1_ref)             # pad border/channels
        x = x_ref[0]                                           # (Cin, H*W) NCHW slab
        # in-VMEM layout change (no HBM transpose pass)
        xp1_ref[pad1:pad1 + H, pad1:pad1 + W, 0:Cin] = x.T.reshape(H, W, Cin)

        im2col_t(xp1_ref, p1_ref, Ho1, Wo1, CP1, stride)
        y1 = conv_in_act(p1_ref, w1_ref, g1_ref, b1_ref, Ho1 * Wo1)  # (Cout, Ho1*Wo1)

        # ---- stage 2: conv2 (stride=1) -> IN -> LReLU ---------------------------
        if pad2 > 0 or CP2 != Cout:
            xp2_ref[...] = jnp.zeros_like(xp2_ref)
        xp2_ref[pad2:pad2 + Ho1, pad2:pad2 + Wo1, 0:Cout] = y1.T.reshape(Ho1, Wo1, Cout)

        im2col_t(xp2_ref, p2_ref, Ho2, Wo2, CP2, 1)
        y2 = conv_in_act(p2_ref, w2_ref, g2_ref, b2_ref, Ho2 * Wo2)  # (Cout, Ho2*Wo2)

        # Lane-dense store, already in NCHW slab order.
        o_ref[0] = y2.astype(o_ref.dtype)

    return kernel


def _prep_weight(w_oihw, cpad):
    """(Cout, Cin, kh, kw) -> (Cout, kh*kw*cpad) bf16, channel-padded with zeros,
    matching the (kh, kw, channel) ordering of the in-kernel patch matrix."""
    Cout, Cin, kh, kw = w_oihw.shape
    w = jnp.pad(w_oihw, ((0, 0), (0, cpad - Cin), (0, 0), (0, 0)))
    w = jnp.transpose(w, (0, 2, 3, 1)).reshape(Cout, kh * kw * cpad)
    return w.astype(jnp.bfloat16)


@functools.partial(jax.jit, static_argnames=("k", "stride"))
def unet_basic_block(x_nchw, w1, g1, b1, w2, g2, b2, *, k=3, stride=1):
    N, Cin, H, W = x_nchw.shape
    Cout = w1.shape[0]

    pad1 = int((k - stride + 1) / 2)                 # MONAI get_padding
    Ho1 = (H + 2 * pad1 - k) // stride + 1
    Wo1 = (W + 2 * pad1 - k) // stride + 1
    pad2 = int((k - 1 + 1) / 2)
    Ho2 = Ho1 + 2 * pad2 - k + 1
    Wo2 = Wo1 + 2 * pad2 - k + 1

    CP1 = _round_up(Cin, 8)                          # sublane-aligned channel pad
    CP2 = _round_up(Cout, 8)
    Hp1, Wp1 = H + 2 * pad1, W + 2 * pad1
    Hp2, Wp2 = Ho1 + 2 * pad2, Wo1 + 2 * pad2

    x_flat = x_nchw.reshape(N, Cin, H * W)           # free (contiguous) reshape
    w1m = _prep_weight(w1, CP1)                      # (Cout, k*k*CP1) bf16
    w2m = _prep_weight(w2, CP2)                      # (Cout, k*k*CP2) bf16
    g1c = g1.reshape(Cout, 1).astype(jnp.float32)
    b1c = b1.reshape(Cout, 1).astype(jnp.float32)
    g2c = g2.reshape(Cout, 1).astype(jnp.float32)
    b2c = b2.reshape(Cout, 1).astype(jnp.float32)

    kernel = _make_fused_kernel(H, W, Cin, Cout, CP1, CP2, k, stride,
                                pad1, Ho1, Wo1, pad2, Ho2, Wo2)

    out = pl.pallas_call(
        kernel,
        out_shape=jax.ShapeDtypeStruct((N, Cout, Ho2 * Wo2), x_nchw.dtype),
        grid=(N,),
        in_specs=[
            pl.BlockSpec((1, Cin, H * W), lambda n: (n, 0, 0)),
            pl.BlockSpec((Cout, k * k * CP1), lambda n: (0, 0)),
            pl.BlockSpec((Cout, 1), lambda n: (0, 0)),
            pl.BlockSpec((Cout, 1), lambda n: (0, 0)),
            pl.BlockSpec((Cout, k * k * CP2), lambda n: (0, 0)),
            pl.BlockSpec((Cout, 1), lambda n: (0, 0)),
            pl.BlockSpec((Cout, 1), lambda n: (0, 0)),
        ],
        out_specs=pl.BlockSpec((1, Cout, Ho2 * Wo2), lambda n: (n, 0, 0)),
        scratch_shapes=[
            pltpu.VMEM((Hp1, Wp1, CP1), jnp.float32),            # padded stage-1 input
            pltpu.VMEM((k * k * CP1, Ho1 * Wo1), jnp.bfloat16),  # stage-1 im2col^T
            pltpu.VMEM((Hp2, Wp2, CP2), jnp.float32),            # padded stage-2 input
            pltpu.VMEM((k * k * CP2, Ho2 * Wo2), jnp.bfloat16),  # stage-2 im2col^T
        ],
        compiler_params=pltpu.CompilerParams(
            dimension_semantics=("parallel",),
            vmem_limit_bytes=64 * 1024 * 1024,
        ),
    )(x_flat, w1m, g1c, b1c, w2m, g2c, b2c)

    return out.reshape(N, Cout, Ho2, Wo2)            # free reshape back to NCHW


def _reference(x, w1, g1, b1, w2, g2, b2, *, k, stride, eps=1e-5, slope=0.01):
    """Pure-JAX (XLA) f32 reference of the same forward pass."""
    def stage(x, w, g, b, s):
        pad = int((k - s + 1) / 2)
        y = jax.lax.conv_general_dilated(
            x, w, window_strides=(s, s), padding=[(pad, pad), (pad, pad)],
            dimension_numbers=("NCHW", "OIHW", "NCHW"))
        mean = jnp.mean(y, axis=(2, 3), keepdims=True)
        var = jnp.mean((y - mean) ** 2, axis=(2, 3), keepdims=True)
        y = (y - mean) * jax.lax.rsqrt(var + eps)
        y = y * g.reshape(1, -1, 1, 1) + b.reshape(1, -1, 1, 1)
        return jnp.where(y >= 0, y, slope * y)

    y = stage(x, w1, g1, b1, stride)
    return stage(y, w2, g2, b2, 1)


if __name__ == "__main__":
    # UnetBasicBlock(spatial_dims=2, in=4, out=8, kernel=3, stride=1,
    #                norm_name=("instance", {"affine": True}))
    N, Cin, Cout, H, W, K, STRIDE = 2, 4, 8, 16, 16, 3, 1

    key = jax.random.PRNGKey(0)
    kx, kw1, kw2, kg1, kb1, kg2, kb2 = jax.random.split(key, 7)

    x = jax.random.normal(kx, (N, Cin, H, W), dtype=jnp.float32)
    w1 = jax.random.normal(kw1, (Cout, Cin, K, K), dtype=jnp.float32) * 0.1
    w2 = jax.random.normal(kw2, (Cout, Cout, K, K), dtype=jnp.float32) * 0.1
    g1 = 1.0 + 0.1 * jax.random.normal(kg1, (Cout,), dtype=jnp.float32)
    b1 = 0.1 * jax.random.normal(kb1, (Cout,), dtype=jnp.float32)
    g2 = 1.0 + 0.1 * jax.random.normal(kg2, (Cout,), dtype=jnp.float32)
    b2 = 0.1 * jax.random.normal(kb2, (Cout,), dtype=jnp.float32)

    out = unet_basic_block(x, w1, g1, b1, w2, g2, b2, k=K, stride=STRIDE)
    out = jax.block_until_ready(out)

    assert out.shape == (N, Cout, H // STRIDE, W // STRIDE), out.shape
    assert bool(jnp.all(jnp.isfinite(out)))

    # Loose check vs. an f32 XLA reference (kernel uses bf16 MXU inputs).
    ref = _reference(x, w1, g1, b1, w2, g2, b2, k=K, stride=STRIDE)
    max_err = float(jnp.max(jnp.abs(out - ref)))
    assert max_err < 1e-1, max_err

    print("KERNEL_OK")
</pallas_src>

<mosaic_0001>
module attributes {stable_mosaic.version = 11 : i64} {
  func.func @kernel(%arg0: i32, %arg1: memref<1x4x256xf32, #tpu.memory_space<vmem>>, %arg2: memref<8x72xbf16, #tpu.memory_space<vmem>>, %arg3: memref<8x1xf32, #tpu.memory_space<vmem>>, %arg4: memref<8x1xf32, #tpu.memory_space<vmem>>, %arg5: memref<8x72xbf16, #tpu.memory_space<vmem>>, %arg6: memref<8x1xf32, #tpu.memory_space<vmem>>, %arg7: memref<8x1xf32, #tpu.memory_space<vmem>>, %arg8: memref<1x8x256xf32, #tpu.memory_space<vmem>>, %arg9: memref<18x18x8xf32, #tpu.memory_space<vmem>>, %arg10: memref<72x256xbf16, #tpu.memory_space<vmem>>, %arg11: memref<18x18x8xf32, #tpu.memory_space<vmem>>, %arg12: memref<72x256xbf16, #tpu.memory_space<vmem>>) attributes {dimension_semantics = [#tpu.dimension_semantics<parallel>], iteration_bounds = array<i64: 2>, scalar_prefetch = 0 : i64, scratch_operands = 4 : i64, tpu.core_type = #tpu.core_type<tc>, window_params = [{transform_indices = @transform_0, window_bounds = array<i64: 1, 4, 256>}, {pipeline_mode = #tpu.pipeline_mode<synchronous>, transform_indices = @transform_1, window_bounds = array<i64: 8, 72>}, {pipeline_mode = #tpu.pipeline_mode<synchronous>, transform_indices = @transform_2, window_bounds = array<i64: 8, 1>}, {pipeline_mode = #tpu.pipeline_mode<synchronous>, transform_indices = @transform_3, window_bounds = array<i64: 8, 1>}, {pipeline_mode = #tpu.pipeline_mode<synchronous>, transform_indices = @transform_4, window_bounds = array<i64: 8, 72>}, {pipeline_mode = #tpu.pipeline_mode<synchronous>, transform_indices = @transform_5, window_bounds = array<i64: 8, 1>}, {pipeline_mode = #tpu.pipeline_mode<synchronous>, transform_indices = @transform_6, window_bounds = array<i64: 8, 1>}, {transform_indices = @transform_7, window_bounds = array<i64: 1, 8, 256>}]} {
    %cst = arith.constant 0.000000e+00 : f32
    %0 = vector.broadcast %cst : f32 to vector<18x18x8xf32>
    %c0 = arith.constant 0 : index
    %c0_0 = arith.constant 0 : index
    %c0_1 = arith.constant 0 : index
    %1 = vector.load %arg9[%c0, %c0_0, %c0_1] : memref<18x18x8xf32, #tpu.memory_space<vmem>>, vector<18x18x8xf32>
    tpu.vector_store %arg9[%c0, %c0_0, %c0_1], %0 {strides = array<i32>} : memref<18x18x8xf32, #tpu.memory_space<vmem>>, vector<18x18x8xf32>,
    %c0_2 = arith.constant 0 : index
    %c0_3 = arith.constant 0 : index
    %c0_4 = arith.constant 0 : index
    %2 = vector.load %arg1[%c0_2, %c0_3, %c0_4] : memref<1x4x256xf32, #tpu.memory_space<vmem>>, vector<1x4x256xf32>
    %3 = vector.shape_cast %2 : vector<1x4x256xf32> to vector<4x256xf32>
    %4 = tpu.transpose %3, [1, 0] : vector<4x256xf32> -> vector<256x4xf32>
    %5 = vector.shape_cast %4 : vector<256x4xf32> to vector<16x16x4xf32>
    %c1 = arith.constant 1 : index
    %c1_5 = arith.constant 1 : index
    %c0_6 = arith.constant 0 : index
    %6 = vector.load %arg9[%c1, %c1_5, %c0_6] : memref<18x18x8xf32, #tpu.memory_space<vmem>>, vector<16x16x4xf32>
    tpu.vector_store %arg9[%c1, %c1_5, %c0_6], %5 {strides = array<i32>} : memref<18x18x8xf32, #tpu.memory_space<vmem>>, vector<16x16x4xf32>,
    %c0_7 = arith.constant 0 : index
    %c0_8 = arith.constant 0 : index
    %c0_9 = arith.constant 0 : index
    %7 = vector.load %arg9[%c0_7, %c0_8, %c0_9] : memref<18x18x8xf32, #tpu.memory_space<vmem>>, vector<18x18x8xf32>
    %8 = vector.extract_strided_slice %7 {offsets = [0, 0, 0], sizes = [16, 16, 8], strides = [1, 1, 1]} : vector<18x18x8xf32> to vector<16x16x8xf32>
    %9 = vector.shape_cast %8 : vector<16x16x8xf32> to vector<256x8xf32>
    %10 = tpu.transpose %9, [1, 0] : vector<256x8xf32> -> vector<8x256xf32>
    %11 = arith.truncf %10 : vector<8x256xf32> to vector<8x256xbf16>
    %c0_10 = arith.constant 0 : index
    %c0_11 = arith.constant 0 : index
    %12 = vector.load %arg10[%c0_10, %c0_11] : memref<72x256xbf16, #tpu.memory_space<vmem>>, vector<8x256xbf16>
    tpu.vector_store %arg10[%c0_10, %c0_11], %11 {strides = array<i32>} : memref<72x256xbf16, #tpu.memory_space<vmem>>, vector<8x256xbf16>,
    %13 = vector.extract_strided_slice %7 {offsets = [0, 1, 0], sizes = [16, 16, 8], strides = [1, 1, 1]} : vector<18x18x8xf32> to vector<16x16x8xf32>
    %14 = vector.shape_cast %13 : vector<16x16x8xf32> to vector<256x8xf32>
    %15 = tpu.transpose %14, [1, 0] : vector<256x8xf32> -> vector<8x256xf32>
    %16 = arith.truncf %15 : vector<8x256xf32> to vector<8x256xbf16>
    %c8 = arith.constant 8 : index
    %c0_12 = arith.constant 0 : index
    %17 = vector.load %arg10[%c8, %c0_12] : memref<72x256xbf16, #tpu.memory_space<vmem>>, vector<8x256xbf16>
    tpu.vector_store %arg10[%c8, %c0_12], %16 {strides = array<i32>} : memref<72x256xbf16, #tpu.memory_space<vmem>>, vector<8x256xbf16>,
    %18 = vector.extract_strided_slice %7 {offsets = [0, 2, 0], sizes = [16, 16, 8], strides = [1, 1, 1]} : vector<18x18x8xf32> to vector<16x16x8xf32>
    %19 = vector.shape_cast %18 : vector<16x16x8xf32> to vector<256x8xf32>
    %20 = tpu.transpose %19, [1, 0] : vector<256x8xf32> -> vector<8x256xf32>
    %21 = arith.truncf %20 : vector<8x256xf32> to vector<8x256xbf16>
    %c16 = arith.constant 16 : index
    %c0_13 = arith.constant 0 : index
    %22 = vector.load %arg10[%c16, %c0_13] : memref<72x256xbf16, #tpu.memory_space<vmem>>, vector<8x256xbf16>
    tpu.vector_store %arg10[%c16, %c0_13], %21 {strides = array<i32>} : memref<72x256xbf16, #tpu.memory_space<vmem>>, vector<8x256xbf16>,
    %23 = vector.extract_strided_slice %7 {offsets = [1, 0, 0], sizes = [16, 16, 8], strides = [1, 1, 1]} : vector<18x18x8xf32> to vector<16x16x8xf32>
    %24 = vector.shape_cast %23 : vector<16x16x8xf32> to vector<256x8xf32>
    %25 = tpu.transpose %24, [1, 0] : vector<256x8xf32> -> vector<8x256xf32>
    %26 = arith.truncf %25 : vector<8x256xf32> to vector<8x256xbf16>
    %c24 = arith.constant 24 : index
    %c0_14 = arith.constant 0 : index
    %27 = vector.load %arg10[%c24, %c0_14] : memref<72x256xbf16, #tpu.memory_space<vmem>>, vector<8x256xbf16>
    tpu.vector_store %arg10[%c24, %c0_14], %26 {strides = array<i32>} : memref<72x256xbf16, #tpu.memory_space<vmem>>, vector<8x256xbf16>,
    %28 = vector.extract_strided_slice %7 {offsets = [1, 1, 0], sizes = [16, 16, 8], strides = [1, 1, 1]} : vector<18x18x8xf32> to vector<16x16x8xf32>
    %29 = vector.shape_cast %28 : vector<16x16x8xf32> to vector<256x8xf32>
    %30 = tpu.transpose %29, [1, 0] : vector<256x8xf32> -> vector<8x256xf32>
    %31 = arith.truncf %30 : vector<8x256xf32> to vector<8x256xbf16>
    %c32 = arith.constant 32 : index
    %c0_15 = arith.constant 0 : index
    %32 = vector.load %arg10[%c32, %c0_15] : memref<72x256xbf16, #tpu.memory_space<vmem>>, vector<8x256xbf16>
    tpu.vector_store %arg10[%c32, %c0_15], %31 {strides = array<i32>} : memref<72x256xbf16, #tpu.memory_space<vmem>>, vector<8x256xbf16>,
    %33 = vector.extract_strided_slice %7 {offsets = [1, 2, 0], sizes = [16, 16, 8], strides = [1, 1, 1]} : vector<18x18x8xf32> to vector<16x16x8xf32>
    %34 = vector.shape_cast %33 : vector<16x16x8xf32> to vector<256x8xf32>
    %35 = tpu.transpose %34, [1, 0] : vector<256x8xf32> -> vector<8x256xf32>
    %36 = arith.truncf %35 : vector<8x256xf32> to vector<8x256xbf16>
    %c40 = arith.constant 40 : index
    %c0_16 = arith.constant 0 : index
    %37 = vector.load %arg10[%c40, %c0_16] : memref<72x256xbf16, #tpu.memory_space<vmem>>, vector<8x256xbf16>
    tpu.vector_store %arg10[%c40, %c0_16], %36 {strides = array<i32>} : memref<72x256xbf16, #tpu.memory_space<vmem>>, vector<8x256xbf16>,
    %38 = vector.extract_strided_slice %7 {offsets = [2, 0, 0], sizes = [16, 16, 8], strides = [1, 1, 1]} : vector<18x18x8xf32> to vector<16x16x8xf32>
    %39 = vector.shape_cast %38 : vector<16x16x8xf32> to vector<256x8xf32>
    %40 = tpu.transpose %39, [1, 0] : vector<256x8xf32> -> vector<8x256xf32>
    %41 = arith.truncf %40 : vector<8x256xf32> to vector<8x256xbf16>
    %c48 = arith.constant 48 : index
    %c0_17 = arith.constant 0 : index
    %42 = vector.load %arg10[%c48, %c0_17] : memref<72x256xbf16, #tpu.memory_space<vmem>>, vector<8x256xbf16>
    tpu.vector_store %arg10[%c48, %c0_17], %41 {strides = array<i32>} : memref<72x256xbf16, #tpu.memory_space<vmem>>, vector<8x256xbf16>,
    %43 = vector.extract_strided_slice %7 {offsets = [2, 1, 0], sizes = [16, 16, 8], strides = [1, 1, 1]} : vector<18x18x8xf32> to vector<16x16x8xf32>
    %44 = vector.shape_cast %43 : vector<16x16x8xf32> to vector<256x8xf32>
    %45 = tpu.transpose %44, [1, 0] : vector<256x8xf32> -> vector<8x256xf32>
    %46 = arith.truncf %45 : vector<8x256xf32> to vector<8x256xbf16>
    %c56 = arith.constant 56 : index
    %c0_18 = arith.constant 0 : index
    %47 = vector.load %arg10[%c56, %c0_18] : memref<72x256xbf16, #tpu.memory_space<vmem>>, vector<8x256xbf16>
    tpu.vector_store %arg10[%c56, %c0_18], %46 {strides = array<i32>} : memref<72x256xbf16, #tpu.memory_space<vmem>>, vector<8x256xbf16>,
    %48 = vector.extract_strided_slice %7 {offsets = [2, 2, 0], sizes = [16, 16, 8], strides = [1, 1, 1]} : vector<18x18x8xf32> to vector<16x16x8xf32>
    %49 = vector.shape_cast %48 : vector<16x16x8xf32> to vector<256x8xf32>
    %50 = tpu.transpose %49, [1, 0] : vector<256x8xf32> -> vector<8x256xf32>
    %51 = arith.truncf %50 : vector<8x256xf32> to vector<8x256xbf16>
    %c64 = arith.constant 64 : index
    %c0_19 = arith.constant 0 : index
    %52 = vector.load %arg10[%c64, %c0_19] : memref<72x256xbf16, #tpu.memory_space<vmem>>, vector<8x256xbf16>
    tpu.vector_store %arg10[%c64, %c0_19], %51 {strides = array<i32>} : memref<72x256xbf16, #tpu.memory_space<vmem>>, vector<8x256xbf16>,
    %c0_20 = arith.constant 0 : index
    %c0_21 = arith.constant 0 : index
    %53 = vector.load %arg2[%c0_20, %c0_21] : memref<8x72xbf16, #tpu.memory_space<vmem>>, vector<8x72xbf16>
    %c0_22 = arith.constant 0 : index
    %c0_23 = arith.constant 0 : index
    %54 = vector.load %arg10[%c0_22, %c0_23] : memref<72x256xbf16, #tpu.memory_space<vmem>>, vector<72x256xbf16>
    %cst_24 = arith.constant dense<0.000000e+00> : vector<8x256xf32>
    %55 = tpu.matmul %53, %54, %cst_24 {dimension_numbers = #tpu.dot_dimension_numbers<[1], [0], [0], [1], [0, 0, 1, 1], [], []>} : vector<8x72xbf16>, vector<72x256xbf16>, vector<8x256xf32> -> vector<8x256xf32>
    %cst_25 = arith.constant dense<0.000000e+00> : vector<8xf32>
    %56 = vector.multi_reduction <add>, %55, %cst_25 [1] : vector<8x256xf32> to vector<8xf32>
    %57 = vector.shape_cast %56 : vector<8xf32> to vector<8x1xf32>
    %58 = arith.mulf %55, %55 : vector<8x256xf32>
    %cst_26 = arith.constant dense<0.000000e+00> : vector<8xf32>
    %59 = vector.multi_reduction <add>, %58, %cst_26 [1] : vector<8x256xf32> to vector<8xf32>
    %60 = vector.shape_cast %59 : vector<8xf32> to vector<8x1xf32>
    %cst_27 = arith.constant 3.906250e-03 : f32
    %61 = vector.broadcast %cst_27 : f32 to vector<8x1xf32>
    %62 = arith.mulf %57, %61 : vector<8x1xf32>
    %cst_28 = arith.constant 3.906250e-03 : f32
    %63 = vector.broadcast %cst_28 : f32 to vector<8x1xf32>
    %64 = arith.mulf %60, %63 : vector<8x1xf32>
    %65 = arith.mulf %62, %62 : vector<8x1xf32>
    %66 = arith.subf %64, %65 : vector<8x1xf32>
    %cst_29 = arith.constant 0.000000e+00 : f32
    %67 = vector.broadcast %cst_29 : f32 to vector<8x1xf32>
    %68 = arith.maximumf %66, %67 : vector<8x1xf32>
    %69 = vector.broadcast %62 : vector<8x1xf32> to vector<8x256xf32>
    %70 = arith.subf %55, %69 : vector<8x256xf32>
    %cst_30 = arith.constant 9.99999974E-6 : f32
    %71 = vector.broadcast %cst_30 : f32 to vector<8x1xf32>
    %72 = arith.addf %68, %71 : vector<8x1xf32>
    %73 = math.rsqrt %72 : vector<8x1xf32>
    %74 = vector.broadcast %73 : vector<8x1xf32> to vector<8x256xf32>
    %75 = arith.mulf %70, %74 : vector<8x256xf32>
    %c0_31 = arith.constant 0 : index
    %c0_32 = arith.constant 0 : index
    %76 = vector.load %arg3[%c0_31, %c0_32] : memref<8x1xf32, #tpu.memory_space<vmem>>, vector<8x1xf32>
    %77 = vector.broadcast %76 : vector<8x1xf32> to vector<8x256xf32>
    %78 = arith.mulf %75, %77 : vector<8x256xf32>
    %c0_33 = arith.constant 0 : index
    %c0_34 = arith.constant 0 : index
    %79 = vector.load %arg4[%c0_33, %c0_34] : memref<8x1xf32, #tpu.memory_space<vmem>>, vector<8x1xf32>
    %80 = vector.broadcast %79 : vector<8x1xf32> to vector<8x256xf32>
    %81 = arith.addf %78, %80 : vector<8x256xf32>
    %cst_35 = arith.constant 0.000000e+00 : f32
    %82 = vector.broadcast %cst_35 : f32 to vector<8x256xf32>
    %83 = arith.cmpf oge, %81, %82 : vector<8x256xf32>
    %cst_36 = arith.constant 0.00999999977 : f32
    %84 = vector.broadcast %cst_36 : f32 to vector<8x256xf32>
    %85 = arith.mulf %84, %81 : vector<8x256xf32>
    %86 = arith.select %83, %81, %85 : vector<8x256xi1>, vector<8x256xf32>
    %cst_37 = arith.constant 0.000000e+00 : f32
    %87 = vector.broadcast %cst_37 : f32 to vector<18x18x8xf32>
    %c0_38 = arith.constant 0 : index
    %c0_39 = arith.constant 0 : index
    %c0_40 = arith.constant 0 : index
    %88 = vector.load %arg11[%c0_38, %c0_39, %c0_40] : memref<18x18x8xf32, #tpu.memory_space<vmem>>, vector<18x18x8xf32>
    tpu.vector_store %arg11[%c0_38, %c0_39, %c0_40], %87 {strides = array<i32>} : memref<18x18x8xf32, #tpu.memory_space<vmem>>, vector<18x18x8xf32>,
    %89 = tpu.transpose %86, [1, 0] : vector<8x256xf32> -> vector<256x8xf32>
    %90 = vector.shape_cast %89 : vector<256x8xf32> to vector<16x16x8xf32>
    %c1_41 = arith.constant 1 : index
    %c1_42 = arith.constant 1 : index
    %c0_43 = arith.constant 0 : index
    %91 = vector.load %arg11[%c1_41, %c1_42, %c0_43] : memref<18x18x8xf32, #tpu.memory_space<vmem>>, vector<16x16x8xf32>
    tpu.vector_store %arg11[%c1_41, %c1_42, %c0_43], %90 {strides = array<i32>} : memref<18x18x8xf32, #tpu.memory_space<vmem>>, vector<16x16x8xf32>,
    %c0_44 = arith.constant 0 : index
    %c0_45 = arith.constant 0 : index
    %c0_46 = arith.constant 0 : index
    %92 = vector.load %arg11[%c0_44, %c0_45, %c0_46] : memref<18x18x8xf32, #tpu.memory_space<vmem>>, vector<18x18x8xf32>
    %93 = vector.extract_strided_slice %92 {offsets = [0, 0, 0], sizes = [16, 16, 8], strides = [1, 1, 1]} : vector<18x18x8xf32> to vector<16x16x8xf32>
    %94 = vector.shape_cast %93 : vector<16x16x8xf32> to vector<256x8xf32>
    %95 = tpu.transpose %94, [1, 0] : vector<256x8xf32> -> vector<8x256xf32>
    %96 = arith.truncf %95 : vector<8x256xf32> to vector<8x256xbf16>
    %c0_47 = arith.constant 0 : index
    %c0_48 = arith.constant 0 : index
    %97 = vector.load %arg12[%c0_47, %c0_48] : memref<72x256xbf16, #tpu.memory_space<vmem>>, vector<8x256xbf16>
    tpu.vector_store %arg12[%c0_47, %c0_48], %96 {strides = array<i32>} : memref<72x256xbf16, #tpu.memory_space<vmem>>, vector<8x256xbf16>,
    %98 = vector.extract_strided_slice %92 {offsets = [0, 1, 0], sizes = [16, 16, 8], strides = [1, 1, 1]} : vector<18x18x8xf32> to vector<16x16x8xf32>
    %99 = vector.shape_cast %98 : vector<16x16x8xf32> to vector<256x8xf32>
    %100 = tpu.transpose %99, [1, 0] : vector<256x8xf32> -> vector<8x256xf32>
    %101 = arith.truncf %100 : vector<8x256xf32> to vector<8x256xbf16>
    %c8_49 = arith.constant 8 : index
    %c0_50 = arith.constant 0 : index
    %102 = vector.load %arg12[%c8_49, %c0_50] : memref<72x256xbf16, #tpu.memory_space<vmem>>, vector<8x256xbf16>
    tpu.vector_store %arg12[%c8_49, %c0_50], %101 {strides = array<i32>} : memref<72x256xbf16, #tpu.memory_space<vmem>>, vector<8x256xbf16>,
    %103 = vector.extract_strided_slice %92 {offsets = [0, 2, 0], sizes = [16, 16, 8], strides = [1, 1, 1]} : vector<18x18x8xf32> to vector<16x16x8xf32>
    %104 = vector.shape_cast %103 : vector<16x16x8xf32> to vector<256x8xf32>
    %105 = tpu.transpose %104, [1, 0] : vector<256x8xf32> -> vector<8x256xf32>
    %106 = arith.truncf %105 : vector<8x256xf32> to vector<8x256xbf16>
    %c16_51 = arith.constant 16 : index
    %c0_52 = arith.constant 0 : index
    %107 = vector.load %arg12[%c16_51, %c0_52] : memref<72x256xbf16, #tpu.memory_space<vmem>>, vector<8x256xbf16>
    tpu.vector_store %arg12[%c16_51, %c0_52], %106 {strides = array<i32>} : memref<72x256xbf16, #tpu.memory_space<vmem>>, vector<8x256xbf16>,
    %108 = vector.extract_strided_slice %92 {offsets = [1, 0, 0], sizes = [16, 16, 8], strides = [1, 1, 1]} : vector<18x18x8xf32> to vector<16x16x8xf32>
    %109 = vector.shape_cast %108 : vector<16x16x8xf32> to vector<256x8xf32>
    %110 = tpu.transpose %109, [1, 0] : vector<256x8xf32> -> vector<8x256xf32>
    %111 = arith.truncf %110 : vector<8x256xf32> to vector<8x256xbf16>
    %c24_53 = arith.constant 24 : index
    %c0_54 = arith.constant 0 : index
    %112 = vector.load %arg12[%c24_53, %c0_54] : memref<72x256xbf16, #tpu.memory_space<vmem>>, vector<8x256xbf16>
    tpu.vector_store %arg12[%c24_53, %c0_54], %111 {strides = array<i32>} : memref<72x256xbf16, #tpu.memory_space<vmem>>, vector<8x256xbf16>,
    %113 = vector.extract_strided_slice %92 {offsets = [1, 1, 0], sizes = [16, 16, 8], strides = [1, 1, 1]} : vector<18x18x8xf32> to vector<16x16x8xf32>
    %114 = vector.shape_cast %113 : vector<16x16x8xf32> to vector<256x8xf32>
    %115 = tpu.transpose %114, [1, 0] : vector<256x8xf32> -> vector<8x256xf32>
    %116 = arith.truncf %115 : vector<8x256xf32> to vector<8x256xbf16>
    %c32_55 = arith.constant 32 : index
    %c0_56 = arith.constant 0 : index
    %117 = vector.load %arg12[%c32_55, %c0_56] : memref<72x256xbf16, #tpu.memory_space<vmem>>, vector<8x256xbf16>
    tpu.vector_store %arg12[%c32_55, %c0_56], %116 {strides = array<i32>} : memref<72x256xbf16, #tpu.memory_space<vmem>>, vector<8x256xbf16>,
    %118 = vector.extract_strided_slice %92 {offsets = [1, 2, 0], sizes = [16, 16, 8], strides = [1, 1, 1]} : vector<18x18x8xf32> to vector<16x16x8xf32>
    %119 = vector.shape_cast %118 : vector<16x16x8xf32> to vector<256x8xf32>
    %120 = tpu.transpose %119, [1, 0] : vector<256x8xf32> -> vector<8x256xf32>
    %121 = arith.truncf %120 : vector<8x256xf32> to vector<8x256xbf16>
    %c40_57 = arith.constant 40 : index
    %c0_58 = arith.constant 0 : index
    %122 = vector.load %arg12[%c40_57, %c0_58] : memref<72x256xbf16, #tpu.memory_space<vmem>>, vector<8x256xbf16>
    tpu.vector_store %arg12[%c40_57, %c0_58], %121 {strides = array<i32>} : memref<72x256xbf16, #tpu.memory_space<vmem>>, vector<8x256xbf16>,
    %123 = vector.extract_strided_slice %92 {offsets = [2, 0, 0], sizes = [16, 16, 8], strides = [1, 1, 1]} : vector<18x18x8xf32> to vector<16x16x8xf32>
    %124 = vector.shape_cast %123 : vector<16x16x8xf32> to vector<256x8xf32>
    %125 = tpu.transpose %124, [1, 0] : vector<256x8xf32> -> vector<8x256xf32>
    %126 = arith.truncf %125 : vector<8x256xf32> to vector<8x256xbf16>
    %c48_59 = arith.constant 48 : index
    %c0_60 = arith.constant 0 : index
    %127 = vector.load %arg12[%c48_59, %c0_60] : memref<72x256xbf16, #tpu.memory_space<vmem>>, vector<8x256xbf16>
    tpu.vector_store %arg12[%c48_59, %c0_60], %126 {strides = array<i32>} : memref<72x256xbf16, #tpu.memory_space<vmem>>, vector<8x256xbf16>,
    %128 = vector.extract_strided_slice %92 {offsets = [2, 1, 0], sizes = [16, 16, 8], strides = [1, 1, 1]} : vector<18x18x8xf32> to vector<16x16x8xf32>
    %129 = vector.shape_cast %128 : vector<16x16x8xf32> to vector<256x8xf32>
    %130 = tpu.transpose %129, [1, 0] : vector<256x8xf32> -> vector<8x256xf32>
    %131 = arith.truncf %130 : vector<8x256xf32> to vector<8x256xbf16>
    %c56_61 = arith.constant 56 : index
    %c0_62 = arith.constant 0 : index
    %132 = vector.load %arg12[%c56_61, %c0_62] : memref<72x256xbf16, #tpu.memory_space<vmem>>, vector<8x256xbf16>
    tpu.vector_store %arg12[%c56_61, %c0_62], %131 {strides = array<i32>} : memref<72x256xbf16, #tpu.memory_space<vmem>>, vector<8x256xbf16>,
    %133 = vector.extract_strided_slice %92 {offsets = [2, 2, 0], sizes = [16, 16, 8], strides = [1, 1, 1]} : vector<18x18x8xf32> to vector<16x16x8xf32>
    %134 = vector.shape_cast %133 : vector<16x16x8xf32> to vector<256x8xf32>
    %135 = tpu.transpose %134, [1, 0] : vector<256x8xf32> -> vector<8x256xf32>
    %136 = arith.truncf %135 : vector<8x256xf32> to vector<8x256xbf16>
    %c64_63 = arith.constant 64 : index
    %c0_64 = arith.constant 0 : index
    %137 = vector.load %arg12[%c64_63, %c0_64] : memref<72x256xbf16, #tpu.memory_space<vmem>>, vector<8x256xbf16>
    tpu.vector_store %arg12[%c64_63, %c0_64], %136 {strides = array<i32>} : memref<72x256xbf16, #tpu.memory_space<vmem>>, vector<8x256xbf16>,
    %c0_65 = arith.constant 0 : index
    %c0_66 = arith.constant 0 : index
    %138 = vector.load %arg5[%c0_65, %c0_66] : memref<8x72xbf16, #tpu.memory_space<vmem>>, vector<8x72xbf16>
    %c0_67 = arith.constant 0 : index
    %c0_68 = arith.constant 0 : index
    %139 = vector.load %arg12[%c0_67, %c0_68] : memref<72x256xbf16, #tpu.memory_space<vmem>>, vector<72x256xbf16>
    %cst_69 = arith.constant dense<0.000000e+00> : vector<8x256xf32>
    %140 = tpu.matmul %138, %139, %cst_69 {dimension_numbers = #tpu.dot_dimension_numbers<[1], [0], [0], [1], [0, 0, 1, 1], [], []>} : vector<8x72xbf16>, vector<72x256xbf16>, vector<8x256xf32> -> vector<8x256xf32>
    %cst_70 = arith.constant dense<0.000000e+00> : vector<8xf32>
    %141 = vector.multi_reduction <add>, %140, %cst_70 [1] : vector<8x256xf32> to vector<8xf32>
    %142 = vector.shape_cast %141 : vector<8xf32> to vector<8x1xf32>
    %143 = arith.mulf %140, %140 : vector<8x256xf32>
    %cst_71 = arith.constant dense<0.000000e+00> : vector<8xf32>
    %144 = vector.multi_reduction <add>, %143, %cst_71 [1] : vector<8x256xf32> to vector<8xf32>
    %145 = vector.shape_cast %144 : vector<8xf32> to vector<8x1xf32>
    %cst_72 = arith.constant 3.906250e-03 : f32
    %146 = vector.broadcast %cst_72 : f32 to vector<8x1xf32>
    %147 = arith.mulf %142, %146 : vector<8x1xf32>
    %cst_73 = arith.constant 3.906250e-03 : f32
    %148 = vector.broadcast %cst_73 : f32 to vector<8x1xf32>
    %149 = arith.mulf %145, %148 : vector<8x1xf32>
    %150 = arith.mulf %147, %147 : vector<8x1xf32>
    %151 = arith.subf %149, %150 : vector<8x1xf32>
    %cst_74 = arith.constant 0.000000e+00 : f32
    %152 = vector.broadcast %cst_74 : f32 to vector<8x1xf32>
    %153 = arith.maximumf %151, %152 : vector<8x1xf32>
    %154 = vector.broadcast %147 : vector<8x1xf32> to vector<8x256xf32>
    %155 = arith.subf %140, %154 : vector<8x256xf32>
    %cst_75 = arith.constant 9.99999974E-6 : f32
    %156 = vector.broadcast %cst_75 : f32 to vector<8x1xf32>
    %157 = arith.addf %153, %156 : vector<8x1xf32>
    %158 = math.rsqrt %157 : vector<8x1xf32>
    %159 = vector.broadcast %158 : vector<8x1xf32> to vector<8x256xf32>
    %160 = arith.mulf %155, %159 : vector<8x256xf32>
    %c0_76 = arith.constant 0 : index
    %c0_77 = arith.constant 0 : index
    %161 = vector.load %arg6[%c0_76, %c0_77] : memref<8x1xf32, #tpu.memory_space<vmem>>, vector<8x1xf32>
    %162 = vector.broadcast %161 : vector<8x1xf32> to vector<8x256xf32>
    %163 = arith.mulf %160, %162 : vector<8x256xf32>
    %c0_78 = arith.constant 0 : index
    %c0_79 = arith.constant 0 : index
    %164 = vector.load %arg7[%c0_78, %c0_79] : memref<8x1xf32, #tpu.memory_space<vmem>>, vector<8x1xf32>
    %165 = vector.broadcast %164 : vector<8x1xf32> to vector<8x256xf32>
    %166 = arith.addf %163, %165 : vector<8x256xf32>
    %cst_80 = arith.constant 0.000000e+00 : f32
    %167 = vector.broadcast %cst_80 : f32 to vector<8x256xf32>
    %168 = arith.cmpf oge, %166, %167 : vector<8x256xf32>
    %cst_81 = arith.constant 0.00999999977 : f32
    %169 = vector.broadcast %cst_81 : f32 to vector<8x256xf32>
    %170 = arith.mulf %169, %166 : vector<8x256xf32>
    %171 = arith.select %168, %166, %170 : vector<8x256xi1>, vector<8x256xf32>
    %c0_82 = arith.constant 0 : index
    %c0_83 = arith.constant 0 : index
    %c0_84 = arith.constant 0 : index
    %172 = vector.load %arg8[%c0_82, %c0_83, %c0_84] : memref<1x8x256xf32, #tpu.memory_space<vmem>>, vector<1x8x256xf32>
    %173 = vector.shape_cast %172 : vector<1x8x256xf32> to vector<8x256xf32>
    %174 = vector.shape_cast %171 : vector<8x256xf32> to vector<1x8x256xf32>
    tpu.vector_store %arg8[%c0_82, %c0_83, %c0_84], %174 {strides = array<i32>} : memref<1x8x256xf32, #tpu.memory_space<vmem>>, vector<1x8x256xf32>,
    return
  }
  func.func @transform_0(%arg0: i32) -> (i32, i32, i32) {
    %c0_i32 = arith.constant 0 : i32
    %c0_i32_0 = arith.constant 0 : i32
    %c0_i32_1 = arith.constant 0 : i32
    return %arg0, %c0_i32, %c0_i32_0 : i32, i32, i32
  }
  func.func @transform_1(%arg0: i32) -> (i32, i32) {
    %c0_i32 = arith.constant 0 : i32
    %c0_i32_0 = arith.constant 0 : i32
    %c0_i32_1 = arith.constant 0 : i32
    return %c0_i32, %c0_i32_0 : i32, i32
  }
  func.func @transform_2(%arg0: i32) -> (i32, i32) {
    %c0_i32 = arith.constant 0 : i32
    %c0_i32_0 = arith.constant 0 : i32
    %c0_i32_1 = arith.constant 0 : i32
    return %c0_i32, %c0_i32_0 : i32, i32
  }
  func.func @transform_3(%arg0: i32) -> (i32, i32) {
    %c0_i32 = arith.constant 0 : i32
    %c0_i32_0 = arith.constant 0 : i32
    %c0_i32_1 = arith.constant 0 : i32
    return %c0_i32, %c0_i32_0 : i32, i32
  }
  func.func @transform_4(%arg0: i32) -> (i32, i32) {
    %c0_i32 = arith.constant 0 : i32
    %c0_i32_0 = arith.constant 0 : i32
    %c0_i32_1 = arith.constant 0 : i32
    return %c0_i32, %c0_i32_0 : i32, i32
  }
  func.func @transform_5(%arg0: i32) -> (i32, i32) {
    %c0_i32 = arith.constant 0 : i32
    %c0_i32_0 = arith.constant 0 : i32
    %c0_i32_1 = arith.constant 0 : i32
    return %c0_i32, %c0_i32_0 : i32, i32
  }
  func.func @transform_6(%arg0: i32) -> (i32, i32) {
    %c0_i32 = arith.constant 0 : i32
    %c0_i32_0 = arith.constant 0 : i32
    %c0_i32_1 = arith.constant 0 : i32
    return %c0_i32, %c0_i32_0 : i32, i32
  }
  func.func @transform_7(%arg0: i32) -> (i32, i32, i32) {
    %c0_i32 = arith.constant 0 : i32
    %c0_i32_0 = arith.constant 0 : i32
    %c0_i32_1 = arith.constant 0 : i32
    return %arg0, %c0_i32, %c0_i32_0 : i32, i32, i32
  }
}

</mosaic_0001>

<llo_original>
// kernel: unet_basic_block.1
$region0: #{unet_basic_block.1}
  #allocation0 [shape = 'u32[]', space=smem, size = 0x4, offset = 0x4, fixed_abs, tag = 'smem constant byte address 0x4 - core index']
  #allocation1 [shape = 'u32[72,128]{1,0:T(1,128)}', space=vmem, size = 0x9000, scoped, tag = 'internal scratch']
  #allocation2 [shape = 'f32[18,18,8]{2,1,0:T(8,128)}', space=vmem, size = 0x36000, scoped, tag = 'scratch operand']
  #allocation3 [shape = 'bf16[72,256]{1,0:T(8,128)(2,1)}', space=vmem, size = 0x9000, scoped, tag = 'scratch operand']
  #allocation4 [shape = 'f32[18,18,8]{2,1,0:T(8,128)}', space=vmem, size = 0x36000, scoped, tag = 'scratch operand']
  #allocation5 [shape = 'bf16[72,256]{1,0:T(8,128)(2,1)}', space=vmem, size = 0x9000, scoped, tag = 'scratch operand']
  %s0 = inlined_call_operand.vmem [shape: f32[2,4,256], index: 0, kind: input, shape index: {}]
  %s1 = inlined_call_operand.vmem [shape: bf16[8,72], index: 1, kind: input, shape index: {}]
  %s2 = inlined_call_operand.vmem [shape: f32[8,1], index: 2, kind: input, shape index: {}]
  %s3 = inlined_call_operand.vmem [shape: f32[8,1], index: 3, kind: input, shape index: {}]
  %s4 = inlined_call_operand.vmem [shape: bf16[8,72], index: 4, kind: input, shape index: {}]
  %s5 = inlined_call_operand.vmem [shape: f32[8,1], index: 5, kind: input, shape index: {}]
  %s6 = inlined_call_operand.vmem [shape: f32[8,1], index: 6, kind: input, shape index: {}]
  %s7 = inlined_call_operand.vmem [shape: f32[2,8,256], index: 7, kind: output, shape index: {}]
  %s8 = sld [smem:[#allocation0]]
  $region61: #{unet_basic_block.1} parent=0
    _
  %s10 = ssub.s32 1, %s8
  %s11 = scalar_select 0, %s10, %s8
  loop: start=0, step=1, limit=4
  $region2: #{unet_basic_block.1} parent=0 // loop_pre_header
    _
  $region3: #{unet_basic_block.1} parent=0 // loop_header
    %s13 = sphi 0, %s17
    %p14 = scmp.ge.s32.totalorder %s13, 4
    %s23 = sphi 0, %s25
    %s26 = sphi 0, %s23
    %s27 = sphi 0, %s26
    %s43 = sphi 0, %s27
    %s47 = sphi 0, %s47
    %s49 = sphi 0, %s47
    %s50 = sphi 0, %s49
    %s64 = sphi 0, %s50
    %s68 = sphi 0, %s68
    %s70 = sphi 0, %s68
    %s71 = sphi 0, %s70
    %s85 = sphi 0, %s71
    %s89 = sphi 0, %s89
    %s91 = sphi 0, %s89
    %s92 = sphi 0, %s91
    %s106 = sphi 0, %s92
    %s110 = sphi 0, %s110
    %s112 = sphi 0, %s110
    %s113 = sphi 0, %s112
    %s127 = sphi 0, %s113
    %s131 = sphi 0, %s131
    %s133 = sphi 0, %s131
    %s134 = sphi 0, %s133
    %s148 = sphi 0, %s134
    %s152 = sphi 0, %s152
    %s154 = sphi 0, %s152
    %s155 = sphi 0, %s154
    %s169 = sphi 0, %s155
    %s175 = sphi 0, %s177
    %s178 = sphi 0, %s175
    %s179 = sphi 0, %s178
    %s195 = sphi 0, %s179
  $region4: #{unet_basic_block.1} parent=0 // loop_header_branch
    %16 = sbr.rel (%p14) target = $region8
  $region5: #{unet_basic_block.1} parent=0 // loop_body
    %s18 = ssub.s32 %s13, 1
    %s19 = ssub.s32 %s13, 2
    %s20 = sadd.s32 %s13, 1
    %s21 = ssub.s32 %s13, %s20
    %p22 = scmp.eq.s32.totalorder %s21, 0
    %s24 = sadd.s32 %s23, 1
    %s25 = scalar_select %p22, %s23, %s24
    %p28 = pneg %p22
    %p29 = scmp.eq.s32.totalorder %s13, 1
    %p30 = por %p28, %p29
    %p31 = scmp.ne.s32.totalorder %s23, %s26
    %p32 = scmp.eq.s32.totalorder %s13, 0
    %p33 = por %p31, %p32
    %p34 = scmp.ne.s32.totalorder %s23, %s26
    %p35 = scmp.eq.s32.totalorder %s18, 1
    %p36 = por %p34, %p35
    %p37 = scmp.ne.s32.totalorder %s26, %s27
    %p38 = scmp.eq.s32.totalorder %s18, 0
    %p39 = por %p37, %p38
    %p40 = scmp.ne.s32.totalorder %s26, %s27
    %p41 = scmp.eq.s32.totalorder %s19, 1
    %p42 = por %p40, %p41
    %p44 = scmp.ne.s32.totalorder %s27, %s43
    %p45 = scmp.eq.s32.totalorder %s19, 0
    %p46 = por %p44, %p45
    %s48 = sadd.s32 %s47, 1
    %p51 = scmp.eq.s32.totalorder %s13, 1
    %p52 = scmp.ne.s32.totalorder %s47, %s49
    %p53 = scmp.eq.s32.totalorder %s13, 0
    %p54 = por %p52, %p53
    %p55 = scmp.ne.s32.totalorder %s47, %s49
    %p56 = scmp.eq.s32.totalorder %s18, 1
    %p57 = por %p55, %p56
    %p58 = scmp.ne.s32.totalorder %s49, %s50
    %p59 = scmp.eq.s32.totalorder %s18, 0
    %p60 = por %p58, %p59
    %p61 = scmp.ne.s32.totalorder %s49, %s50
    %p62 = scmp.eq.s32.totalorder %s19, 1
    %p63 = por %p61, %p62
    %p65 = scmp.ne.s32.totalorder %s50, %s64
    %p66 = scmp.eq.s32.totalorder %s19, 0
    %p67 = por %p65, %p66
    %s69 = sadd.s32 %s68, 1
    %p72 = scmp.eq.s32.totalorder %s13, 1
    %p73 = scmp.ne.s32.totalorder %s68, %s70
    %p74 = scmp.eq.s32.totalorder %s13, 0
    %p75 = por %p73, %p74
    %p76 = scmp.ne.s32.totalorder %s68, %s70
    %p77 = scmp.eq.s32.totalorder %s18, 1
    %p78 = por %p76, %p77
    %p79 = scmp.ne.s32.totalorder %s70, %s71
    %p80 = scmp.eq.s32.totalorder %s18, 0
    %p81 = por %p79, %p80
    %p82 = scmp.ne.s32.totalorder %s70, %s71
    %p83 = scmp.eq.s32.totalorder %s19, 1
    %p84 = por %p82, %p83
    %p86 = scmp.ne.s32.totalorder %s71, %s85
    %p87 = scmp.eq.s32.totalorder %s19, 0
    %p88 = por %p86, %p87
    %s90 = sadd.s32 %s89, 1
    %p93 = scmp.eq.s32.totalorder %s13, 1
    %p94 = scmp.ne.s32.totalorder %s89, %s91
    %p95 = scmp.eq.s32.totalorder %s13, 0
    %p96 = por %p94, %p95
    %p97 = scmp.ne.s32.totalorder %s89, %s91
    %p98 = scmp.eq.s32.totalorder %s18, 1
    %p99 = por %p97, %p98
    %p100 = scmp.ne.s32.totalorder %s91, %s92
    %p101 = scmp.eq.s32.totalorder %s18, 0
    %p102 = por %p100, %p101
    %p103 = scmp.ne.s32.totalorder %s91, %s92
    %p104 = scmp.eq.s32.totalorder %s19, 1
    %p105 = por %p103, %p104
    %p107 = scmp.ne.s32.totalorder %s92, %s106
    %p108 = scmp.eq.s32.totalorder %s19, 0
    %p109 = por %p107, %p108
    %s111 = sadd.s32 %s110, 1
    %p114 = scmp.eq.s32.totalorder %s13, 1
    %p115 = scmp.ne.s32.totalorder %s110, %s112
    %p116 = scmp.eq.s32.totalorder %s13, 0
    %p117 = por %p115, %p116
    %p118 = scmp.ne.s32.totalorder %s110, %s112
    %p119 = scmp.eq.s32.totalorder %s18, 1
    %p120 = por %p118, %p119
    %p121 = scmp.ne.s32.totalorder %s112, %s113
    %p122 = scmp.eq.s32.totalorder %s18, 0
    %p123 = por %p121, %p122
    %p124 = scmp.ne.s32.totalorder %s112, %s113
    %p125 = scmp.eq.s32.totalorder %s19, 1
    %p126 = por %p124, %p125
    %p128 = scmp.ne.s32.totalorder %s113, %s127
    %p129 = scmp.eq.s32.totalorder %s19, 0
    %p130 = por %p128, %p129
    %s132 = sadd.s32 %s131, 1
    %p135 = scmp.eq.s32.totalorder %s13, 1
    %p136 = scmp.ne.s32.totalorder %s131, %s133
    %p137 = scmp.eq.s32.totalorder %s13, 0
    %p138 = por %p136, %p137
    %p139 = scmp.ne.s32.totalorder %s131, %s133
    %p140 = scmp.eq.s32.totalorder %s18, 1
    %p141 = por %p139, %p140
    %p142 = scmp.ne.s32.totalorder %s133, %s134
    %p143 = scmp.eq.s32.totalorder %s18, 0
    %p144 = por %p142, %p143
    %p145 = scmp.ne.s32.totalorder %s133, %s134
    %p146 = scmp.eq.s32.totalorder %s19, 1
    %p147 = por %p145, %p146
    %p149 = scmp.ne.s32.totalorder %s134, %s148
    %p150 = scmp.eq.s32.totalorder %s19, 0
    %p151 = por %p149, %p150
    %s153 = sadd.s32 %s152, 1
    %p156 = scmp.eq.s32.totalorder %s13, 1
    %p157 = scmp.ne.s32.totalorder %s152, %s154
    %p158 = scmp.eq.s32.totalorder %s13, 0
    %p159 = por %p157, %p158
    %p160 = scmp.ne.s32.totalorder %s152, %s154
    %p161 = scmp.eq.s32.totalorder %s18, 1
    %p162 = por %p160, %p161
    %p163 = scmp.ne.s32.totalorder %s154, %s155
    %p164 = scmp.eq.s32.totalorder %s18, 0
    %p165 = por %p163, %p164
    %p166 = scmp.ne.s32.totalorder %s154, %s155
    %p167 = scmp.eq.s32.totalorder %s19, 1
    %p168 = por %p166, %p167
    %p170 = scmp.ne.s32.totalorder %s155, %s169
    %p171 = scmp.eq.s32.totalorder %s19, 0
    %p172 = por %p170, %p171
    %s173 = ssub.s32 %s13, %s20
    %p174 = scmp.eq.s32.totalorder %s173, 0
    %s176 = sadd.s32 %s175, 1
    %s177 = scalar_select %p174, %s175, %s176
    %p180 = pneg %p174
    %p181 = scmp.eq.s32.totalorder %s13, 1
    %p182 = por %p180, %p181
    %p183 = scmp.ne.s32.totalorder %s175, %s178
    %p184 = scmp.eq.s32.totalorder %s13, 0
    %p185 = por %p183, %p184
    %p186 = scmp.ne.s32.totalorder %s175, %s178
    %p187 = scmp.eq.s32.totalorder %s18, 1
    %p188 = por %p186, %p187
    %p189 = scmp.ne.s32.totalorder %s178, %s179
    %p190 = scmp.eq.s32.totalorder %s18, 0
    %p191 = por %p189, %p190
    %p192 = scmp.ne.s32.totalorder %s178, %s179
    %p193 = scmp.eq.s32.totalorder %s19, 1
    %p194 = por %p192, %p193
    %p196 = scmp.ne.s32.totalorder %s179, %s195
    %p197 = scmp.eq.s32.totalorder %s19, 0
    %p198 = por %p196, %p197
    %p199 = scmp.le.s32.totalorder 1, %s13
    %p200 = scmp.lt.s32.totalorder %s13, 3
    %p201 = pnand %p199, %p200
    %p202 = pneg %p201
    // Predicated region
    $region9: #{unet_basic_block.1} parent=5 // pred_check
      _
    $region10: #{unet_basic_block.1} parent=5 // pred_check_branch
      %204 = sbr.rel (%p201) target = $region12
    $region11: #{unet_basic_block.1} parent=5 // pred_region
      %s205 = ssub.s32 %s13, 1
      // Predicated region
      $region13: #{unet_basic_block.1} parent=11 // pred_check
        %p206 = pneg %p60
      $region14: #{unet_basic_block.1} parent=11 // pred_check_branch
        %208 = sbr.rel (%p206) target = $region16
      $region15: #{unet_basic_block.1} parent=11 // pred_region
        _
      $region16: #{unet_basic_block.1} parent=11 // pred_fallthru
        _
      // Predicated region
      $region17: #{unet_basic_block.1} parent=11 // pred_check
        %p209 = pneg %p81
      $region18: #{unet_basic_block.1} parent=11 // pred_check_branch
        %211 = sbr.rel (%p209) target = $region20
      $region19: #{unet_basic_block.1} parent=11 // pred_region
        _
      $region20: #{unet_basic_block.1} parent=11 // pred_fallthru
        _
      // Predicated region
      $region21: #{unet_basic_block.1} parent=11 // pred_check
        %p212 = pneg %p102
      $region22: #{unet_basic_block.1} parent=11 // pred_check_branch
        %214 = sbr.rel (%p212) target = $region24
      $region23: #{unet_basic_block.1} parent=11 // pred_region
        _
      $region24: #{unet_basic_block.1} parent=11 // pred_fallthru
        _
      // Predicated region
      $region25: #{unet_basic_block.1} parent=11 // pred_check
        %p215 = pneg %p123
      $region26: #{unet_basic_block.1} parent=11 // pred_check_branch
        %217 = sbr.rel (%p215) target = $region28
      $region27: #{unet_basic_block.1} parent=11 // pred_region
        _
      $region28: #{unet_basic_block.1} parent=11 // pred_fallthru
        _
      // Predicated region
      $region29: #{unet_basic_block.1} parent=11 // pred_check
        %p218 = pneg %p144
      $region30: #{unet_basic_block.1} parent=11 // pred_check_branch
        %220 = sbr.rel (%p218) target = $region32
      $region31: #{unet_basic_block.1} parent=11 // pred_region
        _
      $region32: #{unet_basic_block.1} parent=11 // pred_fallthru
        _
      // Predicated region
      $region33: #{unet_basic_block.1} parent=11 // pred_check
        %p221 = pneg %p165
      $region34: #{unet_basic_block.1} parent=11 // pred_check_branch
        %223 = sbr.rel (%p221) target = $region36
      $region35: #{unet_basic_block.1} parent=11 // pred_region
        _
      $region36: #{unet_basic_block.1} parent=11 // pred_fallthru
        _
    $region12: #{unet_basic_block.1} parent=5 // pred_fallthru
      _
    %p224 = scmp.lt.s32.totalorder %s13, 2
    // Predicated region
    $region37: #{unet_basic_block.1} parent=5 // pred_check
      %p225 = pneg %p224
    $region38: #{unet_basic_block.1} parent=5 // pred_check_branch
      %227 = sbr.rel (%p225) target = $region40
    $region39: #{unet_basic_block.1} parent=5 // pred_region
      // Predicated region
      $region41: #{unet_basic_block.1} parent=39 // pred_check
        %p228 = pneg %p33
      $region42: #{unet_basic_block.1} parent=39 // pred_check_branch
        %230 = sbr.rel (%p228) target = $region44
      $region43: #{unet_basic_block.1} parent=39 // pred_region
        %p231 = scmp.lt.s32.totalorder %s13, 1
        %s232 = scalar_select %p231, %s13, 1
        %s233 = smul.addr %s232, 2
        %s234 = smul.addr %s233, 4
        %s235 = scalar_lea.vmem %s0, %s234
      $region44: #{unet_basic_block.1} parent=39 // pred_fallthru
        _
    $region40: #{unet_basic_block.1} parent=5 // pred_fallthru
      _
    %p236 = scmp.le.s32.totalorder 1, %s13
    %p237 = scmp.lt.s32.totalorder %s13, 3
    %p238 = pnand %p236, %p237
    %p239 = pneg %p238
    // Predicated region
    $region45: #{unet_basic_block.1} parent=5 // pred_check
      _
    $region46: #{unet_basic_block.1} parent=5 // pred_check_branch
      %241 = sbr.rel (%p238) target = $region48
    $region47: #{unet_basic_block.1} parent=5 // pred_region
      %s242 = ssub.s32 %s13, 1
      %p243 = scmp.lt.s32.totalorder %s18, 1
      %s244 = scalar_select %p243, %s18, 1
      %s245 = smul.addr %s244, 2
      %s246 = smul.addr %s245, 4
      %s247 = scalar_lea.vmem %s0, %s246
      %p248 = pneg %p39
      %p249 = pneg %p36
      %p250 = pneg %p60
      %p251 = pneg %p57
      %p252 = pneg %p81
      %p253 = pneg %p78
      %p254 = pneg %p102
      %p255 = pneg %p99
      %p256 = pneg %p123
      %p257 = pneg %p120
      %p258 = pneg %p144
      %p259 = pneg %p141
      %p260 = pneg %p165
      %p261 = pneg %p162
      %p262 = pneg %p191
      %p263 = pneg %p188
      %p264 = scmp.lt.s32.totalorder %s18, 1
      %s265 = scalar_select %p264, %s18, 1
      %s266 = smul.addr %s265, 2
      %s267 = smul.addr %s266, 8
      %s268 = scalar_lea.vmem %s7, %s267
      %p269 = scmp.lt.s32.totalorder %s18, 1
      %s270 = scalar_select %p269, %s18, 1
      %s271 = smul.addr %s270, 2
      %s272 = smul.addr %s271, 4
      %s273 = scalar_lea.vmem %s0, %s272
      %p274 = scmp.lt.s32.totalorder %s18, 1
      %s275 = scalar_select %p274, %s18, 1
      %s276 = smul.addr %s275, 2
      %s277 = smul.addr %s276, 8
      %s278 = scalar_lea.vmem %s7, %s277
      %vm280 = vcmask 64512
      %281 = vst.msk [vmem:[#allocation2] sm:$0xff] %vm280, 0.0
      %282 = vst.msk [vmem:[#allocation2 + $0x8] sm:$0xff] %vm280, 0.0
      %vm283 = vcmask 58368
      %284 = vst.msk [vmem:[#allocation2 + $0x10] sm:$0x3] %vm283, 0.0
      %285 = vst.msk [vmem:[#allocation2 + $0x18] sm:$0xff] %vm280, 0.0
      %286 = vst.msk [vmem:[#allocation2 + $0x20] sm:$0xff] %vm280, 0.0
      %287 = vst.msk [vmem:[#allocation2 + $0x28] sm:$0x3] %vm283, 0.0
      %288 = vst.msk [vmem:[#allocation2 + $0x30] sm:$0xff] %vm280, 0.0
      %289 = vst.msk [vmem:[#allocation2 + $0x38] sm:$0xff] %vm280, 0.0
      %290 = vst.msk [vmem:[#allocation2 + $0x40] sm:$0x3] %vm283, 0.0
      %291 = vst.msk [vmem:[#allocation2 + $0x48] sm:$0xff] %vm280, 0.0
      %292 = vst.msk [vmem:[#allocation2 + $0x50] sm:$0xff] %vm280, 0.0
      %293 = vst.msk [vmem:[#allocation2 + $0x58] sm:$0x3] %vm283, 0.0
      %294 = vst.msk [vmem:[#allocation2 + $0x60] sm:$0xff] %vm280, 0.0
      %295 = vst.msk [vmem:[#allocation2 + $0x68] sm:$0xff] %vm280, 0.0
      %296 = vst.msk [vmem:[#allocation2 + $0x70] sm:$0x3] %vm283, 0.0
      %297 = vst.msk [vmem:[#allocation2 + $0x78] sm:$0xff] %vm280, 0.0
      %298 = vst.msk [vmem:[#allocation2 + $0x80] sm:$0xff] %vm280, 0.0
      %299 = vst.msk [vmem:[#allocation2 + $0x88] sm:$0x3] %vm283, 0.0
      %300 = vst.msk [vmem:[#allocation2 + $0x90] sm:$0xff] %vm280, 0.0
      %301 = vst.msk [vmem:[#allocation2 + $0x98] sm:$0xff] %vm280, 0.0
      %302 = vst.msk [vmem:[#allocation2 + $0xa0] sm:$0x3] %vm283, 0.0
      %303 = vst.msk [vmem:[#allocation2 + $0xa8] sm:$0xff] %vm280, 0.0
      %304 = vst.msk [vmem:[#allocation2 + $0xb0] sm:$0xff] %vm280, 0.0
      %305 = vst.msk [vmem:[#allocation2 + $0xb8] sm:$0x3] %vm283, 0.0
      %306 = vst.msk [vmem:[#allocation2 + $0xc0] sm:$0xff] %vm280, 0.0
      %307 = vst.msk [vmem:[#allocation2 + $0xc8] sm:$0xff] %vm280, 0.0
      %308 = vst.msk [vmem:[#allocation2 + $0xd0] sm:$0x3] %vm283, 0.0
      %309 = vst.msk [vmem:[#allocation2 + $0xd8] sm:$0xff] %vm280, 0.0
      %310 = vst.msk [vmem:[#allocation2 + $0xe0] sm:$0xff] %vm280, 0.0
      %311 = vst.msk [vmem:[#allocation2 + $0xe8] sm:$0x3] %vm283, 0.0
      %312 = vst.msk [vmem:[#allocation2 + $0xf0] sm:$0xff] %vm280, 0.0
      %313 = vst.msk [vmem:[#allocation2 + $0xf8] sm:$0xff] %vm280, 0.0
      %314 = vst.msk [vmem:[#allocation2 + $0x100] sm:$0x3] %vm283, 0.0
      %315 = vst.msk [vmem:[#allocation2 + $0x108] sm:$0xff] %vm280, 0.0
      %316 = vst.msk [vmem:[#allocation2 + $0x110] sm:$0xff] %vm280, 0.0
      %317 = vst.msk [vmem:[#allocation2 + $0x118] sm:$0x3] %vm283, 0.0
      %318 = vst.msk [vmem:[#allocation2 + $0x120] sm:$0xff] %vm280, 0.0
      %319 = vst.msk [vmem:[#allocation2 + $0x128] sm:$0xff] %vm280, 0.0
      %320 = vst.msk [vmem:[#allocation2 + $0x130] sm:$0x3] %vm283, 0.0
      %321 = vst.msk [vmem:[#allocation2 + $0x138] sm:$0xff] %vm280, 0.0
      %322 = vst.msk [vmem:[#allocation2 + $0x140] sm:$0xff] %vm280, 0.0
      %323 = vst.msk [vmem:[#allocation2 + $0x148] sm:$0x3] %vm283, 0.0
      %324 = vst.msk [vmem:[#allocation2 + $0x150] sm:$0xff] %vm280, 0.0
      %325 = vst.msk [vmem:[#allocation2 + $0x158] sm:$0xff] %vm280, 0.0
      %326 = vst.msk [vmem:[#allocation2 + $0x160] sm:$0x3] %vm283, 0.0
      %327 = vst.msk [vmem:[#allocation2 + $0x168] sm:$0xff] %vm280, 0.0
      %328 = vst.msk [vmem:[#allocation2 + $0x170] sm:$0xff] %vm280, 0.0
      %329 = vst.msk [vmem:[#allocation2 + $0x178] sm:$0x3] %vm283, 0.0
      %330 = vst.msk [vmem:[#allocation2 + $0x180] sm:$0xff] %vm280, 0.0
      %331 = vst.msk [vmem:[#allocation2 + $0x188] sm:$0xff] %vm280, 0.0
      %332 = vst.msk [vmem:[#allocation2 + $0x190] sm:$0x3] %vm283, 0.0
      %333 = vst.msk [vmem:[#allocation2 + $0x198] sm:$0xff] %vm280, 0.0
      %334 = vst.msk [vmem:[#allocation2 + $0x1a0] sm:$0xff] %vm280, 0.0
      %335 = vst.msk [vmem:[#allocation2 + $0x1a8] sm:$0x3] %vm283, 0.0
      %v336 = vld [vmem:[%s273] sm:$0xff]
      %338 = vst [vmem:[#allocation1] ss:$2 sm:$0xff] %v336
      %v339 = vld.sshfl [vmem:[#allocation1] sm:$0xff pattern:$0x75316420]
      %v340 = vld.sshfl [vmem:[#allocation1 + $0x8] sm:$0xff pattern:$0x75316420]
      %343 = vxpose.xlu0.b32.start [1/16] %v339, 128
      %344 = vxpose.xlu0.b32.cont [2/16] 0.0, 128
      %345 = vxpose.xlu0.b32.cont [3/16] 0.0, 128
      %346 = vxpose.xlu0.b32.cont [4/16] 0.0, 128
      %347 = vxpose.xlu0.b32.cont [5/16] 0.0, 128
      %348 = vxpose.xlu0.b32.cont [6/16] 0.0, 128
      %349 = vxpose.xlu0.b32.cont [7/16] 0.0, 128
      %350 = vxpose.xlu0.b32.cont [8/16] 0.0, 128
      %351 = vxpose.xlu0.b32.cont [9/16] 0.0, 128
      %352 = vxpose.xlu0.b32.cont [10/16] 0.0, 128
      %353 = vxpose.xlu0.b32.cont [11/16] 0.0, 128
      %354 = vxpose.xlu0.b32.cont [12/16] 0.0, 128
      %355 = vxpose.xlu0.b32.cont [13/16] 0.0, 128
      %356 = vxpose.xlu0.b32.cont [14/16] 0.0, 128
      %357 = vxpose.xlu0.b32.cont [15/16] 0.0, 128
      %358 = vxpose.xlu0.b32.end [16/16] 0.0, 128
      %v359 = vpop.trf.xlu0
      %v360 = vpop.trf.xlu0
      %v361 = vpop.trf.xlu0
      %v362 = vpop.trf.xlu0
      %v363 = vpop.trf.xlu0
      %v364 = vpop.trf.xlu0
      %v365 = vpop.trf.xlu0
      %v366 = vpop.trf.xlu0
      %v367 = vpop.trf.xlu0
      %v368 = vpop.trf.xlu0
      %v369 = vpop.trf.xlu0
      %v370 = vpop.trf.xlu0
      %v371 = vpop.trf.xlu0
      %v372 = vpop.trf.xlu0
      %v373 = vpop.trf.xlu0
      %v374 = vpop.trf.xlu0
      %375 = vxpose.xlu0.b32.start [1/16] %v340, 128
      %376 = vxpose.xlu0.b32.cont [2/16] 0.0, 128
      %377 = vxpose.xlu0.b32.cont [3/16] 0.0, 128
      %378 = vxpose.xlu0.b32.cont [4/16] 0.0, 128
      %379 = vxpose.xlu0.b32.cont [5/16] 0.0, 128
      %380 = vxpose.xlu0.b32.cont [6/16] 0.0, 128
      %381 = vxpose.xlu0.b32.cont [7/16] 0.0, 128
      %382 = vxpose.xlu0.b32.cont [8/16] 0.0, 128
      %383 = vxpose.xlu0.b32.cont [9/16] 0.0, 128
      %384 = vxpose.xlu0.b32.cont [10/16] 0.0, 128
      %385 = vxpose.xlu0.b32.cont [11/16] 0.0, 128
      %386 = vxpose.xlu0.b32.cont [12/16] 0.0, 128
      %387 = vxpose.xlu0.b32.cont [13/16] 0.0, 128
      %388 = vxpose.xlu0.b32.cont [14/16] 0.0, 128
      %389 = vxpose.xlu0.b32.cont [15/16] 0.0, 128
      %390 = vxpose.xlu0.b32.end [16/16] 0.0, 128
      %v391 = vpop.trf.xlu0
      %v392 = vpop.trf.xlu0
      %v393 = vpop.trf.xlu0
      %v394 = vpop.trf.xlu0
      %v395 = vpop.trf.xlu0
      %v396 = vpop.trf.xlu0
      %v397 = vpop.trf.xlu0
      %v398 = vpop.trf.xlu0
      %v399 = vpop.trf.xlu0
      %v400 = vpop.trf.xlu0
      %v401 = vpop.trf.xlu0
      %v402 = vpop.trf.xlu0
      %v403 = vpop.trf.xlu0
      %v404 = vpop.trf.xlu0
      %v405 = vpop.trf.xlu0
      %v406 = vpop.trf.xlu0
      %s407 = scalar_lea.vmem [#allocation2], 24
      %vm408 = vcmask 31744
      %409 = vst.msk [vmem:[%s407 + $0x1] sm:$0xff] %vm408, %v359
      %410 = vst.msk [vmem:[%s407 + $0x9] sm:$0xff] %vm408, %v360
      %411 = vst.msk [vmem:[%s407 + $0x19] sm:$0xff] %vm408, %v361
      %412 = vst.msk [vmem:[%s407 + $0x21] sm:$0xff] %vm408, %v362
      %413 = vst.msk [vmem:[%s407 + $0x31] sm:$0xff] %vm408, %v363
      %414 = vst.msk [vmem:[%s407 + $0x39] sm:$0xff] %vm408, %v364
      %415 = vst.msk [vmem:[%s407 + $0x49] sm:$0xff] %vm408, %v365
      %416 = vst.msk [vmem:[%s407 + $0x51] sm:$0xff] %vm408, %v366
      %417 = vst.msk [vmem:[%s407 + $0x61] sm:$0xff] %vm408, %v367
      %418 = vst.msk [vmem:[%s407 + $0x69] sm:$0xff] %vm408, %v368
      %419 = vst.msk [vmem:[%s407 + $0x79] sm:$0xff] %vm408, %v369
      %420 = vst.msk [vmem:[%s407 + $0x81] sm:$0xff] %vm408, %v370
      %421 = vst.msk [vmem:[%s407 + $0x91] sm:$0xff] %vm408, %v371
      %422 = vst.msk [vmem:[%s407 + $0x99] sm:$0xff] %vm408, %v372
      %423 = vst.msk [vmem:[%s407 + $0xa9] sm:$0xff] %vm408, %v373
      %424 = vst.msk [vmem:[%s407 + $0xb1] sm:$0xff] %vm408, %v374
      %425 = vst.msk [vmem:[%s407 + $0xc1] sm:$0xff] %vm408, %v391
      %426 = vst.msk [vmem:[%s407 + $0xc9] sm:$0xff] %vm408, %v392
      %427 = vst.msk [vmem:[%s407 + $0xd9] sm:$0xff] %vm408, %v393
      %428 = vst.msk [vmem:[%s407 + $0xe1] sm:$0xff] %vm408, %v394
      %429 = vst.msk [vmem:[%s407 + $0xf1] sm:$0xff] %vm408, %v395
      %430 = vst.msk [vmem:[%s407 + $0xf9] sm:$0xff] %vm408, %v396
      %431 = vst.msk [vmem:[%s407 + $0x109] sm:$0xff] %vm408, %v397
      %432 = vst.msk [vmem:[%s407 + $0x111] sm:$0xff] %vm408, %v398
      %433 = vst.msk [vmem:[%s407 + $0x121] sm:$0xff] %vm408, %v399
      %434 = vst.msk [vmem:[%s407 + $0x129] sm:$0xff] %vm408, %v400
      %435 = vst.msk [vmem:[%s407 + $0x139] sm:$0xff] %vm408, %v401
      %436 = vst.msk [vmem:[%s407 + $0x141] sm:$0xff] %vm408, %v402
      %437 = vst.msk [vmem:[%s407 + $0x151] sm:$0xff] %vm408, %v403
      %438 = vst.msk [vmem:[%s407 + $0x159] sm:$0xff] %vm408, %v404
      %439 = vst.msk [vmem:[%s407 + $0x169] sm:$0xff] %vm408, %v405
      %440 = vst.msk [vmem:[%s407 + $0x171] sm:$0xff] %vm408, %v406
      %v441 = vld [vmem:[#allocation2] sm:$0xff]
      %v442 = vld [vmem:[#allocation2 + $0x8] sm:$0xff]
      %v443 = vld [vmem:[#allocation2 + $0x10] sm:$0x3]
      %v444 = vld [vmem:[#allocation2 + $0x18] sm:$0xff]
      %v445 = vld [vmem:[#allocation2 + $0x20] sm:$0xff]
      %v446 = vld [vmem:[#allocation2 + $0x28] sm:$0x3]
      %v447 = vld [vmem:[#allocation2 + $0x30] sm:$0xff]
      %v448 = vld [vmem:[#allocation2 + $0x38] sm:$0xff]
      %v449 = vld [vmem:[#allocation2 + $0x40] sm:$0x3]
      %v450 = vld [vmem:[#allocation2 + $0x48] sm:$0xff]
      %v451 = vld [vmem:[#allocation2 + $0x50] sm:$0xff]
      %v452 = vld [vmem:[#allocation2 + $0x58] sm:$0x3]
      %v453 = vld [vmem:[#allocation2 + $0x60] sm:$0xff]
      %v454 = vld [vmem:[#allocation2 + $0x68] sm:$0xff]
      %v455 = vld [vmem:[#allocation2 + $0x70] sm:$0x3]
      %v456 = vld [vmem:[#allocation2 + $0x78] sm:$0xff]
      %v457 = vld [vmem:[#allocation2 + $0x80] sm:$0xff]
      %v458 = vld [vmem:[#allocation2 + $0x88] sm:$0x3]
      %v459 = vld [vmem:[#allocation2 + $0x90] sm:$0xff]
      %v460 = vld [vmem:[#allocation2 + $0x98] sm:$0xff]
      %v461 = vld [vmem:[#allocation2 + $0xa0] sm:$0x3]
      %v462 = vld [vmem:[#allocation2 + $0xa8] sm:$0xff]
      %v463 = vld [vmem:[#allocation2 + $0xb0] sm:$0xff]
      %v464 = vld [vmem:[#allocation2 + $0xb8] sm:$0x3]
      %v465 = vld [vmem:[#allocation2 + $0xc0] sm:$0xff]
      %v466 = vld [vmem:[#allocation2 + $0xc8] sm:$0xff]
      %v467 = vld [vmem:[#allocation2 + $0xd0] sm:$0x3]
      %v468 = vld [vmem:[#allocation2 + $0xd8] sm:$0xff]
      %v469 = vld [vmem:[#allocation2 + $0xe0] sm:$0xff]
      %v470 = vld [vmem:[#allocation2 + $0xe8] sm:$0x3]
      %v471 = vld [vmem:[#allocation2 + $0xf0] sm:$0xff]
      %v472 = vld [vmem:[#allocation2 + $0xf8] sm:$0xff]
      %v473 = vld [vmem:[#allocation2 + $0x100] sm:$0x3]
      %v474 = vld [vmem:[#allocation2 + $0x108] sm:$0xff]
      %v475 = vld [vmem:[#allocation2 + $0x110] sm:$0xff]
      %v476 = vld [vmem:[#allocation2 + $0x118] sm:$0x3]
      %v477 = vld [vmem:[#allocation2 + $0x120] sm:$0xff]
      %v478 = vld [vmem:[#allocation2 + $0x128] sm:$0xff]
      %v479 = vld [vmem:[#allocation2 + $0x130] sm:$0x3]
      %v480 = vld [vmem:[#allocation2 + $0x138] sm:$0xff]
      %v481 = vld [vmem:[#allocation2 + $0x140] sm:$0xff]
      %v482 = vld [vmem:[#allocation2 + $0x148] sm:$0x3]
      %v483 = vld [vmem:[#allocation2 + $0x150] sm:$0xff]
      %v484 = vld [vmem:[#allocation2 + $0x158] sm:$0xff]
      %v485 = vld [vmem:[#allocation2 + $0x160] sm:$0x3]
      %v486 = vld [vmem:[#allocation2 + $0x168] sm:$0xff]
      %v487 = vld [vmem:[#allocation2 + $0x170] sm:$0xff]
      %v488 = vld [vmem:[#allocation2 + $0x178] sm:$0x3]
      %v489 = vld [vmem:[#allocation2 + $0x180] sm:$0xff]
      %v490 = vld [vmem:[#allocation2 + $0x188] sm:$0xff]
      %v491 = vld [vmem:[#allocation2 + $0x190] sm:$0x3]
      %v492 = vld [vmem:[#allocation2 + $0x198] sm:$0xff]
      %v493 = vld [vmem:[#allocation2 + $0x1a0] sm:$0xff]
      %v494 = vld [vmem:[#allocation2 + $0x1a8] sm:$0x3]
      %495 = vxpose.xlu0.b32.start [1/16] %v441, 128
      %496 = vxpose.xlu0.b32.cont [2/16] %v442, 128
      %497 = vxpose.xlu0.b32.cont [3/16] %v444, 128
      %498 = vxpose.xlu0.b32.cont [4/16] %v445, 128
      %499 = vxpose.xlu0.b32.cont [5/16] %v447, 128
      %500 = vxpose.xlu0.b32.cont [6/16] %v448, 128
      %501 = vxpose.xlu0.b32.cont [7/16] %v450, 128
      %502 = vxpose.xlu0.b32.cont [8/16] %v451, 128
      %503 = vxpose.xlu0.b32.cont [9/16] %v453, 128
      %504 = vxpose.xlu0.b32.cont [10/16] %v454, 128
      %505 = vxpose.xlu0.b32.cont [11/16] %v456, 128
      %506 = vxpose.xlu0.b32.cont [12/16] %v457, 128
      %507 = vxpose.xlu0.b32.cont [13/16] %v459, 128
      %508 = vxpose.xlu0.b32.cont [14/16] %v460, 128
      %509 = vxpose.xlu0.b32.cont [15/16] %v462, 128
      %510 = vxpose.xlu0.b32.end [16/16] %v463, 128
      %v511 = vpop.trf.xlu0
      %v512 = vpop.trf.xlu0
      %v513 = vpop.trf.xlu0
      %v514 = vpop.trf.xlu0
      %v515 = vpop.trf.xlu0
      %v516 = vpop.trf.xlu0
      %v517 = vpop.trf.xlu0
      %v518 = vpop.trf.xlu0
      %v519 = vpop.trf.xlu0
      %v520 = vpop.trf.xlu0
      %v521 = vpop.trf.xlu0
      %v522 = vpop.trf.xlu0
      %v523 = vpop.trf.xlu0
      %v524 = vpop.trf.xlu0
      %v525 = vpop.trf.xlu0
      %v526 = vpop.trf.xlu0
      %527 = vxpose.xlu0.b32.start [1/16] %v465, 128
      %528 = vxpose.xlu0.b32.cont [2/16] %v466, 128
      %529 = vxpose.xlu0.b32.cont [3/16] %v468, 128
      %530 = vxpose.xlu0.b32.cont [4/16] %v469, 128
      %531 = vxpose.xlu0.b32.cont [5/16] %v471, 128
      %532 = vxpose.xlu0.b32.cont [6/16] %v472, 128
      %533 = vxpose.xlu0.b32.cont [7/16] %v474, 128
      %534 = vxpose.xlu0.b32.cont [8/16] %v475, 128
      %535 = vxpose.xlu0.b32.cont [9/16] %v477, 128
      %536 = vxpose.xlu0.b32.cont [10/16] %v478, 128
      %537 = vxpose.xlu0.b32.cont [11/16] %v480, 128
      %538 = vxpose.xlu0.b32.cont [12/16] %v481, 128
      %539 = vxpose.xlu0.b32.cont [13/16] %v483, 128
      %540 = vxpose.xlu0.b32.cont [14/16] %v484, 128
      %541 = vxpose.xlu0.b32.cont [15/16] %v486, 128
      %542 = vxpose.xlu0.b32.end [16/16] %v487, 128
      %v543 = vpop.trf.xlu0
      %v544 = vpop.trf.xlu0
      %v545 = vpop.trf.xlu0
      %v546 = vpop.trf.xlu0
      %v547 = vpop.trf.xlu0
      %v548 = vpop.trf.xlu0
      %v549 = vpop.trf.xlu0
      %v550 = vpop.trf.xlu0
      %v551 = vpop.trf.xlu0
      %v552 = vpop.trf.xlu0
      %v553 = vpop.trf.xlu0
      %v554 = vpop.trf.xlu0
      %v555 = vpop.trf.xlu0
      %v556 = vpop.trf.xlu0
      %v557 = vpop.trf.xlu0
      %v558 = vpop.trf.xlu0
      %v559 = vpack.c.bf16 %v543, %v511
      %560 = vst [vmem:[#allocation3] sm:$0xff] %v559
      %vm609 = vcmask 1046528
      %v610 = vrot.slane %v441, 1
      %v611 = vrot.slane %v442, 1
      %v612 = vsel %vm609, %v610, %v611
      %v613 = vrot.slane %v443, 1
      %v614 = vsel %vm609, %v611, %v613
      %v615 = vrot.slane %v444, 1
      %v616 = vrot.slane %v445, 1
      %v617 = vsel %vm609, %v615, %v616
      %v618 = vrot.slane %v446, 1
      %v619 = vsel %vm609, %v616, %v618
      %v620 = vrot.slane %v447, 1
      %v621 = vrot.slane %v448, 1
      %v622 = vsel %vm609, %v620, %v621
      %v623 = vrot.slane %v449, 1
      %v624 = vsel %vm609, %v621, %v623
      %v625 = vrot.slane %v450, 1
      %v626 = vrot.slane %v451, 1
      %v627 = vsel %vm609, %v625, %v626
      %v628 = vrot.slane %v452, 1
      %v629 = vsel %vm609, %v626, %v628
      %v630 = vrot.slane %v453, 1
      %v631 = vrot.slane %v454, 1
      %v632 = vsel %vm609, %v630, %v631
      %v633 = vrot.slane %v455, 1
      %v634 = vsel %vm609, %v631, %v633
      %v635 = vrot.slane %v456, 1
      %v636 = vrot.slane %v457, 1
      %v637 = vsel %vm609, %v635, %v636
      %v638 = vrot.slane %v458, 1
      %v639 = vsel %vm609, %v636, %v638
      %v640 = vrot.slane %v459, 1
      %v641 = vrot.slane %v460, 1
      %v642 = vsel %vm609, %v640, %v641
      %v643 = vrot.slane %v461, 1
      %v644 = vsel %vm609, %v641, %v643
      %v645 = vrot.slane %v462, 1
      %v646 = vrot.slane %v463, 1
      %v647 = vsel %vm609, %v645, %v646
      %v648 = vrot.slane %v464, 1
      %v649 = vsel %vm609, %v646, %v648
      %v650 = vrot.slane %v465, 1
      %v651 = vrot.slane %v466, 1
      %v652 = vsel %vm609, %v650, %v651
      %v653 = vrot.slane %v467, 1
      %v654 = vsel %vm609, %v651, %v653
      %v655 = vrot.slane %v468, 1
      %v656 = vrot.slane %v469, 1
      %v657 = vsel %vm609, %v655, %v656
      %v658 = vrot.slane %v470, 1
      %v659 = vsel %vm609, %v656, %v658
      %v660 = vrot.slane %v471, 1
      %v661 = vrot.slane %v472, 1
      %v662 = vsel %vm609, %v660, %v661
      %v663 = vrot.slane %v473, 1
      %v664 = vsel %vm609, %v661, %v663
      %v665 = vrot.slane %v474, 1
      %v666 = vrot.slane %v475, 1
      %v667 = vsel %vm609, %v665, %v666
      %v668 = vrot.slane %v476, 1
      %v669 = vsel %vm609, %v666, %v668
      %v670 = vrot.slane %v477, 1
      %v671 = vrot.slane %v478, 1
      %v672 = vsel %vm609, %v670, %v671
      %v673 = vrot.slane %v479, 1
      %v674 = vsel %vm609, %v671, %v673
      %v675 = vrot.slane %v480, 1
      %v676 = vrot.slane %v481, 1
      %v677 = vsel %vm609, %v675, %v676
      %v678 = vrot.slane %v482, 1
      %v679 = vsel %vm609, %v676, %v678
      %v680 = vrot.slane %v483, 1
      %v681 = vrot.slane %v484, 1
      %v682 = vsel %vm609, %v680, %v681
      %v683 = vrot.slane %v485, 1
      %v684 = vsel %vm609, %v681, %v683
      %v685 = vrot.slane %v486, 1
      %v686 = vrot.slane %v487, 1
      %v687 = vsel %vm609, %v685, %v686
      %v688 = vrot.slane %v488, 1
      %v689 = vsel %vm609, %v686, %v688
      %722 = vxpose.xlu0.b32.start [1/16] %v612, 128
      %723 = vxpose.xlu0.b32.cont [2/16] %v614, 128
      %724 = vxpose.xlu0.b32.cont [3/16] %v617, 128
      %725 = vxpose.xlu0.b32.cont [4/16] %v619, 128
      %726 = vxpose.xlu0.b32.cont [5/16] %v622, 128
      %727 = vxpose.xlu0.b32.cont [6/16] %v624, 128
      %728 = vxpose.xlu0.b32.cont [7/16] %v627, 128
      %729 = vxpose.xlu0.b32.cont [8/16] %v629, 128
      %730 = vxpose.xlu0.b32.cont [9/16] %v632, 128
      %731 = vxpose.xlu0.b32.cont [10/16] %v634, 128
      %732 = vxpose.xlu0.b32.cont [11/16] %v637, 128
      %733 = vxpose.xlu0.b32.cont [12/16] %v639, 128
      %734 = vxpose.xlu0.b32.cont [13/16] %v642, 128
      %735 = vxpose.xlu0.b32.cont [14/16] %v644, 128
      %736 = vxpose.xlu0.b32.cont [15/16] %v647, 128
      %737 = vxpose.xlu0.b32.end [16/16] %v649, 128
      %v738 = vpop.trf.xlu0
      %v739 = vpop.trf.xlu0
      %v740 = vpop.trf.xlu0
      %v741 = vpop.trf.xlu0
      %v742 = vpop.trf.xlu0
      %v743 = vpop.trf.xlu0
      %v744 = vpop.trf.xlu0
      %v745 = vpop.trf.xlu0
      %v746 = vpop.trf.xlu0
      %v747 = vpop.trf.xlu0
      %v748 = vpop.trf.xlu0
      %v749 = vpop.trf.xlu0
      %v750 = vpop.trf.xlu0
      %v751 = vpop.trf.xlu0
      %v752 = vpop.trf.xlu0
      %v753 = vpop.trf.xlu0
      %754 = vxpose.xlu0.b32.start [1/16] %v652, 128
      %755 = vxpose.xlu0.b32.cont [2/16] %v654, 128
      %756 = vxpose.xlu0.b32.cont [3/16] %v657, 128
      %757 = vxpose.xlu0.b32.cont [4/16] %v659, 128
      %758 = vxpose.xlu0.b32.cont [5/16] %v662, 128
      %759 = vxpose.xlu0.b32.cont [6/16] %v664, 128
      %760 = vxpose.xlu0.b32.cont [7/16] %v667, 128
      %761 = vxpose.xlu0.b32.cont [8/16] %v669, 128
      %762 = vxpose.xlu0.b32.cont [9/16] %v672, 128
      %763 = vxpose.xlu0.b32.cont [10/16] %v674, 128
      %764 = vxpose.xlu0.b32.cont [11/16] %v677, 128
      %765 = vxpose.xlu0.b32.cont [12/16] %v679, 128
      %766 = vxpose.xlu0.b32.cont [13/16] %v682, 128
      %767 = vxpose.xlu0.b32.cont [14/16] %v684, 128
      %768 = vxpose.xlu0.b32.cont [15/16] %v687, 128
      %769 = vxpose.xlu0.b32.end [16/16] %v689, 128
      %v770 = vpop.trf.xlu0
      %v771 = vpop.trf.xlu0
      %v772 = vpop.trf.xlu0
      %v773 = vpop.trf.xlu0
      %v774 = vpop.trf.xlu0
      %v775 = vpop.trf.xlu0
      %v776 = vpop.trf.xlu0
      %v777 = vpop.trf.xlu0
      %v778 = vpop.trf.xlu0
      %v779 = vpop.trf.xlu0
      %v780 = vpop.trf.xlu0
      %v781 = vpop.trf.xlu0
      %v782 = vpop.trf.xlu0
      %v783 = vpop.trf.xlu0
      %v784 = vpop.trf.xlu0
      %v785 = vpop.trf.xlu0
      %v786 = vpack.c.bf16 %v770, %v738
      %787 = vst [vmem:[#allocation3 + $0x8] sm:$0xff] %v786
      %vm788 = vcmask 1045504
      %v789 = vrot.slane %v441, 2
      %v790 = vrot.slane %v442, 2
      %v791 = vsel %vm788, %v789, %v790
      %v792 = vrot.slane %v443, 2
      %v793 = vsel %vm788, %v790, %v792
      %v794 = vrot.slane %v444, 2
      %v795 = vrot.slane %v445, 2
      %v796 = vsel %vm788, %v794, %v795
      %v797 = vrot.slane %v446, 2
      %v798 = vsel %vm788, %v795, %v797
      %v799 = vrot.slane %v447, 2
      %v800 = vrot.slane %v448, 2
      %v801 = vsel %vm788, %v799, %v800
      %v802 = vrot.slane %v449, 2
      %v803 = vsel %vm788, %v800, %v802
      %v804 = vrot.slane %v450, 2
      %v805 = vrot.slane %v451, 2
      %v806 = vsel %vm788, %v804, %v805
      %v807 = vrot.slane %v452, 2
      %v808 = vsel %vm788, %v805, %v807
      %v809 = vrot.slane %v453, 2
      %v810 = vrot.slane %v454, 2
      %v811 = vsel %vm788, %v809, %v810
      %v812 = vrot.slane %v455, 2
      %v813 = vsel %vm788, %v810, %v812
      %v814 = vrot.slane %v456, 2
      %v815 = vrot.slane %v457, 2
      %v816 = vsel %vm788, %v814, %v815
      %v817 = vrot.slane %v458, 2
      %v818 = vsel %vm788, %v815, %v817
      %v819 = vrot.slane %v459, 2
      %v820 = vrot.slane %v460, 2
      %v821 = vsel %vm788, %v819, %v820
      %v822 = vrot.slane %v461, 2
      %v823 = vsel %vm788, %v820, %v822
      %v824 = vrot.slane %v462, 2
      %v825 = vrot.slane %v463, 2
      %v826 = vsel %vm788, %v824, %v825
      %v827 = vrot.slane %v464, 2
      %v828 = vsel %vm788, %v825, %v827
      %v829 = vrot.slane %v465, 2
      %v830 = vrot.slane %v466, 2
      %v831 = vsel %vm788, %v829, %v830
      %v832 = vrot.slane %v467, 2
      %v833 = vsel %vm788, %v830, %v832
      %v834 = vrot.slane %v468, 2
      %v835 = vrot.slane %v469, 2
      %v836 = vsel %vm788, %v834, %v835
      %v837 = vrot.slane %v470, 2
      %v838 = vsel %vm788, %v835, %v837
      %v839 = vrot.slane %v471, 2
      %v840 = vrot.slane %v472, 2
      %v841 = vsel %vm788, %v839, %v840
      %v842 = vrot.slane %v473, 2
      %v843 = vsel %vm788, %v840, %v842
      %v844 = vrot.slane %v474, 2
      %v845 = vrot.slane %v475, 2
      %v846 = vsel %vm788, %v844, %v845
      %v847 = vrot.slane %v476, 2
      %v848 = vsel %vm788, %v845, %v847
      %v849 = vrot.slane %v477, 2
      %v850 = vrot.slane %v478, 2
      %v851 = vsel %vm788, %v849, %v850
      %v852 = vrot.slane %v479, 2
      %v853 = vsel %vm788, %v850, %v852
      %v854 = vrot.slane %v480, 2
      %v855 = vrot.slane %v481, 2
      %v856 = vsel %vm788, %v854, %v855
      %v857 = vrot.slane %v482, 2
      %v858 = vsel %vm788, %v855, %v857
      %v859 = vrot.slane %v483, 2
      %v860 = vrot.slane %v484, 2
      %v861 = vsel %vm788, %v859, %v860
      %v862 = vrot.slane %v485, 2
      %v863 = vsel %vm788, %v860, %v862
      %v864 = vrot.slane %v486, 2
      %v865 = vrot.slane %v487, 2
      %v866 = vsel %vm788, %v864, %v865
      %v867 = vrot.slane %v488, 2
      %v868 = vsel %vm788, %v865, %v867
      %901 = vxpose.xlu0.b32.start [1/16] %v791, 128
      %902 = vxpose.xlu0.b32.cont [2/16] %v793, 128
      %903 = vxpose.xlu0.b32.cont [3/16] %v796, 128
      %904 = vxpose.xlu0.b32.cont [4/16] %v798, 128
      %905 = vxpose.xlu0.b32.cont [5/16] %v801, 128
      %906 = vxpose.xlu0.b32.cont [6/16] %v803, 128
      %907 = vxpose.xlu0.b32.cont [7/16] %v806, 128
      %908 = vxpose.xlu0.b32.cont [8/16] %v808, 128
      %909 = vxpose.xlu0.b32.cont [9/16] %v811, 128
      %910 = vxpose.xlu0.b32.cont [10/16] %v813, 128
      %911 = vxpose.xlu0.b32.cont [11/16] %v816, 128
      %912 = vxpose.xlu0.b32.cont [12/16] %v818, 128
      %913 = vxpose.xlu0.b32.cont [13/16] %v821, 128
      %914 = vxpose.xlu0.b32.cont [14/16] %v823, 128
      %915 = vxpose.xlu0.b32.cont [15/16] %v826, 128
      %916 = vxpose.xlu0.b32.end [16/16] %v828, 128
      %v917 = vpop.trf.xlu0
      %v918 = vpop.trf.xlu0
      %v919 = vpop.trf.xlu0
      %v920 = vpop.trf.xlu0
      %v921 = vpop.trf.xlu0
      %v922 = vpop.trf.xlu0
      %v923 = vpop.trf.xlu0
      %v924 = vpop.trf.xlu0
      %v925 = vpop.trf.xlu0
      %v926 = vpop.trf.xlu0
      %v927 = vpop.trf.xlu0
      %v928 = vpop.trf.xlu0
      %v929 = vpop.trf.xlu0
      %v930 = vpop.trf.xlu0
      %v931 = vpop.trf.xlu0
      %v932 = vpop.trf.xlu0
      %933 = vxpose.xlu0.b32.start [1/16] %v831, 128
      %934 = vxpose.xlu0.b32.cont [2/16] %v833, 128
      %935 = vxpose.xlu0.b32.cont [3/16] %v836, 128
      %936 = vxpose.xlu0.b32.cont [4/16] %v838, 128
      %937 = vxpose.xlu0.b32.cont [5/16] %v841, 128
      %938 = vxpose.xlu0.b32.cont [6/16] %v843, 128
      %939 = vxpose.xlu0.b32.cont [7/16] %v846, 128
      %940 = vxpose.xlu0.b32.cont [8/16] %v848, 128
      %941 = vxpose.xlu0.b32.cont [9/16] %v851, 128
      %942 = vxpose.xlu0.b32.cont [10/16] %v853, 128
      %943 = vxpose.xlu0.b32.cont [11/16] %v856, 128
      %944 = vxpose.xlu0.b32.cont [12/16] %v858, 128
      %945 = vxpose.xlu0.b32.cont [13/16] %v861, 128
      %946 = vxpose.xlu0.b32.cont [14/16] %v863, 128
      %947 = vxpose.xlu0.b32.cont [15/16] %v866, 128
      %948 = vxpose.xlu0.b32.end [16/16] %v868, 128
      %v949 = vpop.trf.xlu0
      %v950 = vpop.trf.xlu0
      %v951 = vpop.trf.xlu0
      %v952 = vpop.trf.xlu0
      %v953 = vpop.trf.xlu0
      %v954 = vpop.trf.xlu0
      %v955 = vpop.trf.xlu0
      %v956 = vpop.trf.xlu0
      %v957 = vpop.trf.xlu0
      %v958 = vpop.trf.xlu0
      %v959 = vpop.trf.xlu0
      %v960 = vpop.trf.xlu0
      %v961 = vpop.trf.xlu0
      %v962 = vpop.trf.xlu0
      %v963 = vpop.trf.xlu0
      %v964 = vpop.trf.xlu0
      %v965 = vpack.c.bf16 %v949, %v917
      %966 = vst [vmem:[#allocation3 + $0x10] sm:$0xff] %v965
      %967 = vxpose.xlu0.b32.start [1/16] %v444, 128
      %968 = vxpose.xlu0.b32.cont [2/16] %v445, 128
      %969 = vxpose.xlu0.b32.cont [3/16] %v447, 128
      %970 = vxpose.xlu0.b32.cont [4/16] %v448, 128
      %971 = vxpose.xlu0.b32.cont [5/16] %v450, 128
      %972 = vxpose.xlu0.b32.cont [6/16] %v451, 128
      %973 = vxpose.xlu0.b32.cont [7/16] %v453, 128
      %974 = vxpose.xlu0.b32.cont [8/16] %v454, 128
      %975 = vxpose.xlu0.b32.cont [9/16] %v456, 128
      %976 = vxpose.xlu0.b32.cont [10/16] %v457, 128
      %977 = vxpose.xlu0.b32.cont [11/16] %v459, 128
      %978 = vxpose.xlu0.b32.cont [12/16] %v460, 128
      %979 = vxpose.xlu0.b32.cont [13/16] %v462, 128
      %980 = vxpose.xlu0.b32.cont [14/16] %v463, 128
      %981 = vxpose.xlu0.b32.cont [15/16] %v465, 128
      %982 = vxpose.xlu0.b32.end [16/16] %v466, 128
      %v983 = vpop.trf.xlu0
      %v984 = vpop.trf.xlu0
      %v985 = vpop.trf.xlu0
      %v986 = vpop.trf.xlu0
      %v987 = vpop.trf.xlu0
      %v988 = vpop.trf.xlu0
      %v989 = vpop.trf.xlu0
      %v990 = vpop.trf.xlu0
      %v991 = vpop.trf.xlu0
      %v992 = vpop.trf.xlu0
      %v993 = vpop.trf.xlu0
      %v994 = vpop.trf.xlu0
      %v995 = vpop.trf.xlu0
      %v996 = vpop.trf.xlu0
      %v997 = vpop.trf.xlu0
      %v998 = vpop.trf.xlu0
      %999 = vxpose.xlu0.b32.start [1/16] %v468, 128
      %1000 = vxpose.xlu0.b32.cont [2/16] %v469, 128
      %1001 = vxpose.xlu0.b32.cont [3/16] %v471, 128
      %1002 = vxpose.xlu0.b32.cont [4/16] %v472, 128
      %1003 = vxpose.xlu0.b32.cont [5/16] %v474, 128
      %1004 = vxpose.xlu0.b32.cont [6/16] %v475, 128
      %1005 = vxpose.xlu0.b32.cont [7/16] %v477, 128
      %1006 = vxpose.xlu0.b32.cont [8/16] %v478, 128
      %1007 = vxpose.xlu0.b32.cont [9/16] %v480, 128
      %1008 = vxpose.xlu0.b32.cont [10/16] %v481, 128
      %1009 = vxpose.xlu0.b32.cont [11/16] %v483, 128
      %1010 = vxpose.xlu0.b32.cont [12/16] %v484, 128
      %1011 = vxpose.xlu0.b32.cont [13/16] %v486, 128
      %1012 = vxpose.xlu0.b32.cont [14/16] %v487, 128
      %1013 = vxpose.xlu0.b32.cont [15/16] %v489, 128
      %1014 = vxpose.xlu0.b32.end [16/16] %v490, 128
      %v1015 = vpop.trf.xlu0
      %v1016 = vpop.trf.xlu0
      %v1017 = vpop.trf.xlu0
      %v1018 = vpop.trf.xlu0
      %v1019 = vpop.trf.xlu0
      %v1020 = vpop.trf.xlu0
      %v1021 = vpop.trf.xlu0
      %v1022 = vpop.trf.xlu0
      %v1023 = vpop.trf.xlu0
      %v1024 = vpop.trf.xlu0
      %v1025 = vpop.trf.xlu0
      %v1026 = vpop.trf.xlu0
      %v1027 = vpop.trf.xlu0
      %v1028 = vpop.trf.xlu0
      %v1029 = vpop.trf.xlu0
      %v1030 = vpop.trf.xlu0
      %v1031 = vpack.c.bf16 %v1015, %v983
      %1032 = vst [vmem:[#allocation3 + $0x18] sm:$0xff] %v1031
      %v1036 = vrot.slane %v489, 1
      %v1037 = vrot.slane %v490, 1
      %v1038 = vsel %vm609, %v1036, %v1037
      %v1039 = vrot.slane %v491, 1
      %v1040 = vsel %vm609, %v1037, %v1039
      %1043 = vxpose.xlu0.b32.start [1/16] %v617, 128
      %1044 = vxpose.xlu0.b32.cont [2/16] %v619, 128
      %1045 = vxpose.xlu0.b32.cont [3/16] %v622, 128
      %1046 = vxpose.xlu0.b32.cont [4/16] %v624, 128
      %1047 = vxpose.xlu0.b32.cont [5/16] %v627, 128
      %1048 = vxpose.xlu0.b32.cont [6/16] %v629, 128
      %1049 = vxpose.xlu0.b32.cont [7/16] %v632, 128
      %1050 = vxpose.xlu0.b32.cont [8/16] %v634, 128
      %1051 = vxpose.xlu0.b32.cont [9/16] %v637, 128
      %1052 = vxpose.xlu0.b32.cont [10/16] %v639, 128
      %1053 = vxpose.xlu0.b32.cont [11/16] %v642, 128
      %1054 = vxpose.xlu0.b32.cont [12/16] %v644, 128
      %1055 = vxpose.xlu0.b32.cont [13/16] %v647, 128
      %1056 = vxpose.xlu0.b32.cont [14/16] %v649, 128
      %1057 = vxpose.xlu0.b32.cont [15/16] %v652, 128
      %1058 = vxpose.xlu0.b32.end [16/16] %v654, 128
      %v1059 = vpop.trf.xlu0
      %v1060 = vpop.trf.xlu0
      %v1061 = vpop.trf.xlu0
      %v1062 = vpop.trf.xlu0
      %v1063 = vpop.trf.xlu0
      %v1064 = vpop.trf.xlu0
      %v1065 = vpop.trf.xlu0
      %v1066 = vpop.trf.xlu0
      %v1067 = vpop.trf.xlu0
      %v1068 = vpop.trf.xlu0
      %v1069 = vpop.trf.xlu0
      %v1070 = vpop.trf.xlu0
      %v1071 = vpop.trf.xlu0
      %v1072 = vpop.trf.xlu0
      %v1073 = vpop.trf.xlu0
      %v1074 = vpop.trf.xlu0
      %1075 = vxpose.xlu0.b32.start [1/16] %v657, 128
      %1076 = vxpose.xlu0.b32.cont [2/16] %v659, 128
      %1077 = vxpose.xlu0.b32.cont [3/16] %v662, 128
      %1078 = vxpose.xlu0.b32.cont [4/16] %v664, 128
      %1079 = vxpose.xlu0.b32.cont [5/16] %v667, 128
      %1080 = vxpose.xlu0.b32.cont [6/16] %v669, 128
      %1081 = vxpose.xlu0.b32.cont [7/16] %v672, 128
      %1082 = vxpose.xlu0.b32.cont [8/16] %v674, 128
      %1083 = vxpose.xlu0.b32.cont [9/16] %v677, 128
      %1084 = vxpose.xlu0.b32.cont [10/16] %v679, 128
      %1085 = vxpose.xlu0.b32.cont [11/16] %v682, 128
      %1086 = vxpose.xlu0.b32.cont [12/16] %v684, 128
      %1087 = vxpose.xlu0.b32.cont [13/16] %v687, 128
      %1088 = vxpose.xlu0.b32.cont [14/16] %v689, 128
      %1089 = vxpose.xlu0.b32.cont [15/16] %v1038, 128
      %1090 = vxpose.xlu0.b32.end [16/16] %v1040, 128
      %v1091 = vpop.trf.xlu0
      %v1092 = vpop.trf.xlu0
      %v1093 = vpop.trf.xlu0
      %v1094 = vpop.trf.xlu0
      %v1095 = vpop.trf.xlu0
      %v1096 = vpop.trf.xlu0
      %v1097 = vpop.trf.xlu0
      %v1098 = vpop.trf.xlu0
      %v1099 = vpop.trf.xlu0
      %v1100 = vpop.trf.xlu0
      %v1101 = vpop.trf.xlu0
      %v1102 = vpop.trf.xlu0
      %v1103 = vpop.trf.xlu0
      %v1104 = vpop.trf.xlu0
      %v1105 = vpop.trf.xlu0
      %v1106 = vpop.trf.xlu0
      %v1107 = vpack.c.bf16 %v1091, %v1059
      %1108 = vst [vmem:[#allocation3 + $0x20] sm:$0xff] %v1107
      %v1109 = vrot.slane %v489, 2
      %v1110 = vrot.slane %v490, 2
      %v1111 = vsel %vm788, %v1109, %v1110
      %v1112 = vrot.slane %v491, 2
      %v1113 = vsel %vm788, %v1110, %v1112
      %1116 = vxpose.xlu0.b32.start [1/16] %v796, 128
      %1117 = vxpose.xlu0.b32.cont [2/16] %v798, 128
      %1118 = vxpose.xlu0.b32.cont [3/16] %v801, 128
      %1119 = vxpose.xlu0.b32.cont [4/16] %v803, 128
      %1120 = vxpose.xlu0.b32.cont [5/16] %v806, 128
      %1121 = vxpose.xlu0.b32.cont [6/16] %v808, 128
      %1122 = vxpose.xlu0.b32.cont [7/16] %v811, 128
      %1123 = vxpose.xlu0.b32.cont [8/16] %v813, 128
      %1124 = vxpose.xlu0.b32.cont [9/16] %v816, 128
      %1125 = vxpose.xlu0.b32.cont [10/16] %v818, 128
      %1126 = vxpose.xlu0.b32.cont [11/16] %v821, 128
      %1127 = vxpose.xlu0.b32.cont [12/16] %v823, 128
      %1128 = vxpose.xlu0.b32.cont [13/16] %v826, 128
      %1129 = vxpose.xlu0.b32.cont [14/16] %v828, 128
      %1130 = vxpose.xlu0.b32.cont [15/16] %v831, 128
      %1131 = vxpose.xlu0.b32.end [16/16] %v833, 128
      %v1132 = vpop.trf.xlu0
      %v1133 = vpop.trf.xlu0
      %v1134 = vpop.trf.xlu0
      %v1135 = vpop.trf.xlu0
      %v1136 = vpop.trf.xlu0
      %v1137 = vpop.trf.xlu0
      %v1138 = vpop.trf.xlu0
      %v1139 = vpop.trf.xlu0
      %v1140 = vpop.trf.xlu0
      %v1141 = vpop.trf.xlu0
      %v1142 = vpop.trf.xlu0
      %v1143 = vpop.trf.xlu0
      %v1144 = vpop.trf.xlu0
      %v1145 = vpop.trf.xlu0
      %v1146 = vpop.trf.xlu0
      %v1147 = vpop.trf.xlu0
      %1148 = vxpose.xlu0.b32.start [1/16] %v836, 128
      %1149 = vxpose.xlu0.b32.cont [2/16] %v838, 128
      %1150 = vxpose.xlu0.b32.cont [3/16] %v841, 128
      %1151 = vxpose.xlu0.b32.cont [4/16] %v843, 128
      %1152 = vxpose.xlu0.b32.cont [5/16] %v846, 128
      %1153 = vxpose.xlu0.b32.cont [6/16] %v848, 128
      %1154 = vxpose.xlu0.b32.cont [7/16] %v851, 128
      %1155 = vxpose.xlu0.b32.cont [8/16] %v853, 128
      %1156 = vxpose.xlu0.b32.cont [9/16] %v856, 128
      %1157 = vxpose.xlu0.b32.cont [10/16] %v858, 128
      %1158 = vxpose.xlu0.b32.cont [11/16] %v861, 128
      %1159 = vxpose.xlu0.b32.cont [12/16] %v863, 128
      %1160 = vxpose.xlu0.b32.cont [13/16] %v866, 128
      %1161 = vxpose.xlu0.b32.cont [14/16] %v868, 128
      %1162 = vxpose.xlu0.b32.cont [15/16] %v1111, 128
      %1163 = vxpose.xlu0.b32.end [16/16] %v1113, 128
      %v1164 = vpop.trf.xlu0
      %v1165 = vpop.trf.xlu0
      %v1166 = vpop.trf.xlu0
      %v1167 = vpop.trf.xlu0
      %v1168 = vpop.trf.xlu0
      %v1169 = vpop.trf.xlu0
      %v1170 = vpop.trf.xlu0
      %v1171 = vpop.trf.xlu0
      %v1172 = vpop.trf.xlu0
      %v1173 = vpop.trf.xlu0
      %v1174 = vpop.trf.xlu0
      %v1175 = vpop.trf.xlu0
      %v1176 = vpop.trf.xlu0
      %v1177 = vpop.trf.xlu0
      %v1178 = vpop.trf.xlu0
      %v1179 = vpop.trf.xlu0
      %v1180 = vpack.c.bf16 %v1164, %v1132
      %1181 = vst [vmem:[#allocation3 + $0x28] sm:$0xff] %v1180
      %1182 = vxpose.xlu0.b32.start [1/16] %v447, 128
      %1183 = vxpose.xlu0.b32.cont [2/16] %v448, 128
      %1184 = vxpose.xlu0.b32.cont [3/16] %v450, 128
      %1185 = vxpose.xlu0.b32.cont [4/16] %v451, 128
      %1186 = vxpose.xlu0.b32.cont [5/16] %v453, 128
      %1187 = vxpose.xlu0.b32.cont [6/16] %v454, 128
      %1188 = vxpose.xlu0.b32.cont [7/16] %v456, 128
      %1189 = vxpose.xlu0.b32.cont [8/16] %v457, 128
      %1190 = vxpose.xlu0.b32.cont [9/16] %v459, 128
      %1191 = vxpose.xlu0.b32.cont [10/16] %v460, 128
      %1192 = vxpose.xlu0.b32.cont [11/16] %v462, 128
      %1193 = vxpose.xlu0.b32.cont [12/16] %v463, 128
      %1194 = vxpose.xlu0.b32.cont [13/16] %v465, 128
      %1195 = vxpose.xlu0.b32.cont [14/16] %v466, 128
      %1196 = vxpose.xlu0.b32.cont [15/16] %v468, 128
      %1197 = vxpose.xlu0.b32.end [16/16] %v469, 128
      %v1198 = vpop.trf.xlu0
      %v1199 = vpop.trf.xlu0
      %v1200 = vpop.trf.xlu0
      %v1201 = vpop.trf.xlu0
      %v1202 = vpop.trf.xlu0
      %v1203 = vpop.trf.xlu0
      %v1204 = vpop.trf.xlu0
      %v1205 = vpop.trf.xlu0
      %v1206 = vpop.trf.xlu0
      %v1207 = vpop.trf.xlu0
      %v1208 = vpop.trf.xlu0
      %v1209 = vpop.trf.xlu0
      %v1210 = vpop.trf.xlu0
      %v1211 = vpop.trf.xlu0
      %v1212 = vpop.trf.xlu0
      %v1213 = vpop.trf.xlu0
      %1214 = vxpose.xlu0.b32.start [1/16] %v471, 128
      %1215 = vxpose.xlu0.b32.cont [2/16] %v472, 128
      %1216 = vxpose.xlu0.b32.cont [3/16] %v474, 128
      %1217 = vxpose.xlu0.b32.cont [4/16] %v475, 128
      %1218 = vxpose.xlu0.b32.cont [5/16] %v477, 128
      %1219 = vxpose.xlu0.b32.cont [6/16] %v478, 128
      %1220 = vxpose.xlu0.b32.cont [7/16] %v480, 128
      %1221 = vxpose.xlu0.b32.cont [8/16] %v481, 128
      %1222 = vxpose.xlu0.b32.cont [9/16] %v483, 128
      %1223 = vxpose.xlu0.b32.cont [10/16] %v484, 128
      %1224 = vxpose.xlu0.b32.cont [11/16] %v486, 128
      %1225 = vxpose.xlu0.b32.cont [12/16] %v487, 128
      %1226 = vxpose.xlu0.b32.cont [13/16] %v489, 128
      %1227 = vxpose.xlu0.b32.cont [14/16] %v490, 128
      %1228 = vxpose.xlu0.b32.cont [15/16] %v492, 128
      %1229 = vxpose.xlu0.b32.end [16/16] %v493, 128
      %v1230 = vpop.trf.xlu0
      %v1231 = vpop.trf.xlu0
      %v1232 = vpop.trf.xlu0
      %v1233 = vpop.trf.xlu0
      %v1234 = vpop.trf.xlu0
      %v1235 = vpop.trf.xlu0
      %v1236 = vpop.trf.xlu0
      %v1237 = vpop.trf.xlu0
      %v1238 = vpop.trf.xlu0
      %v1239 = vpop.trf.xlu0
      %v1240 = vpop.trf.xlu0
      %v1241 = vpop.trf.xlu0
      %v1242 = vpop.trf.xlu0
      %v1243 = vpop.trf.xlu0
      %v1244 = vpop.trf.xlu0
      %v1245 = vpop.trf.xlu0
      %v1246 = vpack.c.bf16 %v1230, %v1198
      %1247 = vst [vmem:[#allocation3 + $0x30] sm:$0xff] %v1246
      %v1251 = vrot.slane %v492, 1
      %v1252 = vrot.slane %v493, 1
      %v1253 = vsel %vm609, %v1251, %v1252
      %v1254 = vrot.slane %v494, 1
      %v1255 = vsel %vm609, %v1252, %v1254
      %1258 = vxpose.xlu0.b32.start [1/16] %v622, 128
      %1259 = vxpose.xlu0.b32.cont [2/16] %v624, 128
      %1260 = vxpose.xlu0.b32.cont [3/16] %v627, 128
      %1261 = vxpose.xlu0.b32.cont [4/16] %v629, 128
      %1262 = vxpose.xlu0.b32.cont [5/16] %v632, 128
      %1263 = vxpose.xlu0.b32.cont [6/16] %v634, 128
      %1264 = vxpose.xlu0.b32.cont [7/16] %v637, 128
      %1265 = vxpose.xlu0.b32.cont [8/16] %v639, 128
      %1266 = vxpose.xlu0.b32.cont [9/16] %v642, 128
      %1267 = vxpose.xlu0.b32.cont [10/16] %v644, 128
      %1268 = vxpose.xlu0.b32.cont [11/16] %v647, 128
      %1269 = vxpose.xlu0.b32.cont [12/16] %v649, 128
      %1270 = vxpose.xlu0.b32.cont [13/16] %v652, 128
      %1271 = vxpose.xlu0.b32.cont [14/16] %v654, 128
      %1272 = vxpose.xlu0.b32.cont [15/16] %v657, 128
      %1273 = vxpose.xlu0.b32.end [16/16] %v659, 128
      %v1274 = vpop.trf.xlu0
      %v1275 = vpop.trf.xlu0
      %v1276 = vpop.trf.xlu0
      %v1277 = vpop.trf.xlu0
      %v1278 = vpop.trf.xlu0
      %v1279 = vpop.trf.xlu0
      %v1280 = vpop.trf.xlu0
      %v1281 = vpop.trf.xlu0
      %v1282 = vpop.trf.xlu0
      %v1283 = vpop.trf.xlu0
      %v1284 = vpop.trf.xlu0
      %v1285 = vpop.trf.xlu0
      %v1286 = vpop.trf.xlu0
      %v1287 = vpop.trf.xlu0
      %v1288 = vpop.trf.xlu0
      %v1289 = vpop.trf.xlu0
      %1290 = vxpose.xlu0.b32.start [1/16] %v662, 128
      %1291 = vxpose.xlu0.b32.cont [2/16] %v664, 128
      %1292 = vxpose.xlu0.b32.cont [3/16] %v667, 128
      %1293 = vxpose.xlu0.b32.cont [4/16] %v669, 128
      %1294 = vxpose.xlu0.b32.cont [5/16] %v672, 128
      %1295 = vxpose.xlu0.b32.cont [6/16] %v674, 128
      %1296 = vxpose.xlu0.b32.cont [7/16] %v677, 128
      %1297 = vxpose.xlu0.b32.cont [8/16] %v679, 128
      %1298 = vxpose.xlu0.b32.cont [9/16] %v682, 128
      %1299 = vxpose.xlu0.b32.cont [10/16] %v684, 128
      %1300 = vxpose.xlu0.b32.cont [11/16] %v687, 128
      %1301 = vxpose.xlu0.b32.cont [12/16] %v689, 128
      %1302 = vxpose.xlu0.b32.cont [13/16] %v1038, 128
      %1303 = vxpose.xlu0.b32.cont [14/16] %v1040, 128
      %1304 = vxpose.xlu0.b32.cont [15/16] %v1253, 128
      %1305 = vxpose.xlu0.b32.end [16/16] %v1255, 128
      %v1306 = vpop.trf.xlu0
      %v1307 = vpop.trf.xlu0
      %v1308 = vpop.trf.xlu0
      %v1309 = vpop.trf.xlu0
      %v1310 = vpop.trf.xlu0
      %v1311 = vpop.trf.xlu0
      %v1312 = vpop.trf.xlu0
      %v1313 = vpop.trf.xlu0
      %v1314 = vpop.trf.xlu0
      %v1315 = vpop.trf.xlu0
      %v1316 = vpop.trf.xlu0
      %v1317 = vpop.trf.xlu0
      %v1318 = vpop.trf.xlu0
      %v1319 = vpop.trf.xlu0
      %v1320 = vpop.trf.xlu0
      %v1321 = vpop.trf.xlu0
      %v1322 = vpack.c.bf16 %v1306, %v1274
      %1323 = vst [vmem:[#allocation3 + $0x38] sm:$0xff] %v1322
      %v1324 = vrot.slane %v492, 2
      %v1325 = vrot.slane %v493, 2
      %v1326 = vsel %vm788, %v1324, %v1325
      %v1327 = vrot.slane %v494, 2
      %v1328 = vsel %vm788, %v1325, %v1327
      %1331 = vxpose.xlu0.b32.start [1/16] %v801, 128
      %1332 = vxpose.xlu0.b32.cont [2/16] %v803, 128
      %1333 = vxpose.xlu0.b32.cont [3/16] %v806, 128
      %1334 = vxpose.xlu0.b32.cont [4/16] %v808, 128
      %1335 = vxpose.xlu0.b32.cont [5/16] %v811, 128
      %1336 = vxpose.xlu0.b32.cont [6/16] %v813, 128
      %1337 = vxpose.xlu0.b32.cont [7/16] %v816, 128
      %1338 = vxpose.xlu0.b32.cont [8/16] %v818, 128
      %1339 = vxpose.xlu0.b32.cont [9/16] %v821, 128
      %1340 = vxpose.xlu0.b32.cont [10/16] %v823, 128
      %1341 = vxpose.xlu0.b32.cont [11/16] %v826, 128
      %1342 = vxpose.xlu0.b32.cont [12/16] %v828, 128
      %1343 = vxpose.xlu0.b32.cont [13/16] %v831, 128
      %1344 = vxpose.xlu0.b32.cont [14/16] %v833, 128
      %1345 = vxpose.xlu0.b32.cont [15/16] %v836, 128
      %1346 = vxpose.xlu0.b32.end [16/16] %v838, 128
      %v1347 = vpop.trf.xlu0
      %v1348 = vpop.trf.xlu0
      %v1349 = vpop.trf.xlu0
      %v1350 = vpop.trf.xlu0
      %v1351 = vpop.trf.xlu0
      %v1352 = vpop.trf.xlu0
      %v1353 = vpop.trf.xlu0
      %v1354 = vpop.trf.xlu0
      %v1355 = vpop.trf.xlu0
      %v1356 = vpop.trf.xlu0
      %v1357 = vpop.trf.xlu0
      %v1358 = vpop.trf.xlu0
      %v1359 = vpop.trf.xlu0
      %v1360 = vpop.trf.xlu0
      %v1361 = vpop.trf.xlu0
      %v1362 = vpop.trf.xlu0
      %1363 = vxpose.xlu0.b32.start [1/16] %v841, 128
      %1364 = vxpose.xlu0.b32.cont [2/16] %v843, 128
      %1365 = vxpose.xlu0.b32.cont [3/16] %v846, 128
      %1366 = vxpose.xlu0.b32.cont [4/16] %v848, 128
      %1367 = vxpose.xlu0.b32.cont [5/16] %v851, 128
      %1368 = vxpose.xlu0.b32.cont [6/16] %v853, 128
      %1369 = vxpose.xlu0.b32.cont [7/16] %v856, 128
      %1370 = vxpose.xlu0.b32.cont [8/16] %v858, 128
      %1371 = vxpose.xlu0.b32.cont [9/16] %v861, 128
      %1372 = vxpose.xlu0.b32.cont [10/16] %v863, 128
      %1373 = vxpose.xlu0.b32.cont [11/16] %v866, 128
      %1374 = vxpose.xlu0.b32.cont [12/16] %v868, 128
      %1375 = vxpose.xlu0.b32.cont [13/16] %v1111, 128
      %1376 = vxpose.xlu0.b32.cont [14/16] %v1113, 128
      %1377 = vxpose.xlu0.b32.cont [15/16] %v1326, 128
      %1378 = vxpose.xlu0.b32.end [16/16] %v1328, 128
      %v1379 = vpop.trf.xlu0
      %v1380 = vpop.trf.xlu0
      %v1381 = vpop.trf.xlu0
      %v1382 = vpop.trf.xlu0
      %v1383 = vpop.trf.xlu0
      %v1384 = vpop.trf.xlu0
      %v1385 = vpop.trf.xlu0
      %v1386 = vpop.trf.xlu0
      %v1387 = vpop.trf.xlu0
      %v1388 = vpop.trf.xlu0
      %v1389 = vpop.trf.xlu0
      %v1390 = vpop.trf.xlu0
      %v1391 = vpop.trf.xlu0
      %v1392 = vpop.trf.xlu0
      %v1393 = vpop.trf.xlu0
      %v1394 = vpop.trf.xlu0
      %v1395 = vpack.c.bf16 %v1379, %v1347
      %1396 = vst [vmem:[#allocation3 + $0x40] sm:$0xff] %v1395
      %v1397 = vld [vmem:[%s1] sm:$0xf]
      %v1398 = vld [vmem:[#allocation3] sm:$0xff]
      %v1399 = vld [vmem:[#allocation3 + $0x8] sm:$0xff]
      %v1400 = vld [vmem:[#allocation3 + $0x10] sm:$0xff]
      %v1401 = vld [vmem:[#allocation3 + $0x18] sm:$0xff]
      %v1402 = vld [vmem:[#allocation3 + $0x20] sm:$0xff]
      %v1403 = vld [vmem:[#allocation3 + $0x28] sm:$0xff]
      %v1404 = vld [vmem:[#allocation3 + $0x30] sm:$0xff]
      %v1405 = vld [vmem:[#allocation3 + $0x38] sm:$0xff]
      %v1406 = vld [vmem:[#allocation3 + $0x40] sm:$0xff]
      %v1416 = vunpack.c.l.b16 %v1398
      %v1417 = vunpack.c.h.b16 %v1398
      %v1418 = vunpack.c.l.b16 %v1399
      %v1419 = vunpack.c.h.b16 %v1399
      %v1420 = vunpack.c.l.b16 %v1400
      %v1421 = vunpack.c.h.b16 %v1400
      %v1422 = vunpack.c.l.b16 %v1401
      %v1423 = vunpack.c.h.b16 %v1401
      %v1424 = vunpack.c.l.b16 %v1402
      %v1425 = vunpack.c.h.b16 %v1402
      %v1426 = vunpack.c.l.b16 %v1403
      %v1427 = vunpack.c.h.b16 %v1403
      %v1428 = vunpack.c.l.b16 %v1404
      %v1429 = vunpack.c.h.b16 %v1404
      %v1430 = vunpack.c.l.b16 %v1405
      %v1431 = vunpack.c.h.b16 %v1405
      %v1432 = vunpack.c.l.b16 %v1406
      %v1433 = vunpack.c.h.b16 %v1406
      %v1434 = vpack.c.b16 %v1418, %v1416
      %v1435 = vpack.c.b16 %v1419, %v1417
      %v1436 = vpack.c.b16 %v1422, %v1420
      %v1437 = vpack.c.b16 %v1423, %v1421
      %v1438 = vpack.c.b16 %v1426, %v1424
      %v1439 = vpack.c.b16 %v1427, %v1425
      %v1440 = vpack.c.b16 %v1430, %v1428
      %v1441 = vpack.c.b16 %v1431, %v1429
      %v1442 = vpack.c.b16 %v1432, %v1432
      %v1443 = vpack.c.b16 %v1433, %v1433
      %vm1452 = vcmask 588800
      %v1454 = vsel %vm1452, %v1397, 0
      %vm1456 = vcmask 1043456
      %v1458 = vsel %vm1456, %v1442, 0
      %v1461 = vsel %vm1456, %v1443, 0
      %1463 = vmatpush.bf16.msra.mxu0 0
      %1464 = vmatpush.bf16.msra.mxu0 0
      %1465 = vmatpush.bf16.msra.mxu0 0
      %1466 = vmatpush.bf16.msra.mxu0 %v1458
      %1467 = vmatpush.bf16.msra.mxu0 %v1440
      %1468 = vmatpush.bf16.msra.mxu0 %v1438
      %1469 = vmatpush.bf16.msra.mxu0 %v1436
      %1470 = vmatpush.bf16.msra.mxu0 %v1434
      %1471 = vmatmul.bf16.gmra.mxu0 %v1454
      %v1472 = vpop.f32.mrf.mxu0
      %v1473 = vadd.f32 0.0, %v1472
      %v1474 = vpop.f32.mrf.mxu0
      %1475 = vdwg.mxu0
      %1476 = vmatpush.bf16.msra.mxu0 0
      %1477 = vmatpush.bf16.msra.mxu0 0
      %1478 = vmatpush.bf16.msra.mxu0 0
      %1479 = vmatpush.bf16.msra.mxu0 %v1461
      %1480 = vmatpush.bf16.msra.mxu0 %v1441
      %1481 = vmatpush.bf16.msra.mxu0 %v1439
      %1482 = vmatpush.bf16.msra.mxu0 %v1437
      %1483 = vmatpush.bf16.msra.mxu0 %v1435
      %1484 = vmatmul.bf16.gmra.mxu0 %v1454
      %v1485 = vpop.f32.mrf.mxu0
      %v1486 = vadd.f32 0.0, %v1485
      %v1487 = vpop.f32.mrf.mxu0
      %1488 = vdwg.mxu0
      %v1489 = vadd.f32 %v1473, %v1486
      %1490 = vadd.xlane.f32.xlu0 %v1489
      %v1491 = vpop.xlane.xlu0 %1490
      %v1492 = vmul.f32 %v1473, %v1473
      %v1493 = vmul.f32 %v1486, %v1486
      %v1494 = vadd.f32 %v1492, %v1493
      %1495 = vadd.xlane.f32.xlu0 %v1494
      %v1496 = vpop.xlane.xlu0 %1495
      %v1497 = vmul.f32 %v1491, 0.00390625
      %v1498 = vmul.f32 %v1496, 0.00390625
      %v1499 = vmul.f32 %v1497, %v1497
      %v1500 = vsub.f32 %v1498, %v1499
      %v1501 = vmax.f32 %v1500, 0.0
      %v1502 = vsub.f32 %v1473, %v1497
      %v1503 = vsub.f32 %v1486, %v1497
      %v1504 = vadd.f32 %v1501, 1e-05
      %v1505 = vrsqrt.pop %v1504
      %v1506 = vmul.f32 %v1505, %v1504
      %v1507 = vmul.f32 %v1506, %v1505
      %v1508 = vmul.f32 0.5, %v1507
      %v1509 = vsub.f32 1.5, %v1508
      %v1510 = vmul.f32 %v1505, %v1509
      %vm1511 = vweird.f32 %v1504
      %vm1512 = vweird.f32 %v1505
      %vm1513 = vmor %vm1511, %vm1512
      %v1514 = vsel %vm1513, %v1505, %v1510
      %v1515 = vmul.f32 %v1502, %v1514
      %v1516 = vmul.f32 %v1503, %v1514
      %v1517 = vld [vmem:[%s2] sm:$0xff]
      %1519 = vset.pattern.permute.xlu0 0
      %1520 = vperm.xlu0 %1519, %v1517
      %v1521 = vpop.permute.xlu0 %1520
      %v1523 = vmul.f32 %v1515, %v1521
      %v1524 = vmul.f32 %v1516, %v1521
      %v1525 = vld [vmem:[%s3] sm:$0xff]
      %1527 = vset.pattern.permute.xlu0 0
      %1528 = vperm.xlu0 %1527, %v1525
      %v1529 = vpop.permute.xlu0 %1528
      %v1531 = vadd.f32 %v1523, %v1529
      %v1532 = vadd.f32 %v1524, %v1529
      %vm1533 = vcmp.ge.f32.partialorder %v1531, 0.0
      %vm1534 = vcmp.ge.f32.partialorder %v1532, 0.0
      %v1535 = vmul.f32 %v1531, 0.01
      %v1536 = vmul.f32 %v1532, 0.01
      %v1537 = vsel %vm1533, %v1531, %v1535
      %v1538 = vsel %vm1534, %v1532, %v1536
      %1539 = vst.msk [vmem:[#allocation4] sm:$0xff] %vm280, 0.0
      %1540 = vst.msk [vmem:[#allocation4 + $0x8] sm:$0xff] %vm280, 0.0
      %1541 = vst.msk [vmem:[#allocation4 + $0x10] sm:$0x3] %vm283, 0.0
      %1542 = vst.msk [vmem:[#allocation4 + $0x18] sm:$0xff] %vm280, 0.0
      %1543 = vst.msk [vmem:[#allocation4 + $0x20] sm:$0xff] %vm280, 0.0
      %1544 = vst.msk [vmem:[#allocation4 + $0x28] sm:$0x3] %vm283, 0.0
      %1545 = vst.msk [vmem:[#allocation4 + $0x30] sm:$0xff] %vm280, 0.0
      %1546 = vst.msk [vmem:[#allocation4 + $0x38] sm:$0xff] %vm280, 0.0
      %1547 = vst.msk [vmem:[#allocation4 + $0x40] sm:$0x3] %vm283, 0.0
      %1548 = vst.msk [vmem:[#allocation4 + $0x48] sm:$0xff] %vm280, 0.0
      %1549 = vst.msk [vmem:[#allocation4 + $0x50] sm:$0xff] %vm280, 0.0
      %1550 = vst.msk [vmem:[#allocation4 + $0x58] sm:$0x3] %vm283, 0.0
      %1551 = vst.msk [vmem:[#allocation4 + $0x60] sm:$0xff] %vm280, 0.0
      %1552 = vst.msk [vmem:[#allocation4 + $0x68] sm:$0xff] %vm280, 0.0
      %1553 = vst.msk [vmem:[#allocation4 + $0x70] sm:$0x3] %vm283, 0.0
      %1554 = vst.msk [vmem:[#allocation4 + $0x78] sm:$0xff] %vm280, 0.0
      %1555 = vst.msk [vmem:[#allocation4 + $0x80] sm:$0xff] %vm280, 0.0
      %1556 = vst.msk [vmem:[#allocation4 + $0x88] sm:$0x3] %vm283, 0.0
      %1557 = vst.msk [vmem:[#allocation4 + $0x90] sm:$0xff] %vm280, 0.0
      %1558 = vst.msk [vmem:[#allocation4 + $0x98] sm:$0xff] %vm280, 0.0
      %1559 = vst.msk [vmem:[#allocation4 + $0xa0] sm:$0x3] %vm283, 0.0
      %1560 = vst.msk [vmem:[#allocation4 + $0xa8] sm:$0xff] %vm280, 0.0
      %1561 = vst.msk [vmem:[#allocation4 + $0xb0] sm:$0xff] %vm280, 0.0
      %1562 = vst.msk [vmem:[#allocation4 + $0xb8] sm:$0x3] %vm283, 0.0
      %1563 = vst.msk [vmem:[#allocation4 + $0xc0] sm:$0xff] %vm280, 0.0
      %1564 = vst.msk [vmem:[#allocation4 + $0xc8] sm:$0xff] %vm280, 0.0
      %1565 = vst.msk [vmem:[#allocation4 + $0xd0] sm:$0x3] %vm283, 0.0
      %1566 = vst.msk [vmem:[#allocation4 + $0xd8] sm:$0xff] %vm280, 0.0
      %1567 = vst.msk [vmem:[#allocation4 + $0xe0] sm:$0xff] %vm280, 0.0
      %1568 = vst.msk [vmem:[#allocation4 + $0xe8] sm:$0x3] %vm283, 0.0
      %1569 = vst.msk [vmem:[#allocation4 + $0xf0] sm:$0xff] %vm280, 0.0
      %1570 = vst.msk [vmem:[#allocation4 + $0xf8] sm:$0xff] %vm280, 0.0
      %1571 = vst.msk [vmem:[#allocation4 + $0x100] sm:$0x3] %vm283, 0.0
      %1572 = vst.msk [vmem:[#allocation4 + $0x108] sm:$0xff] %vm280, 0.0
      %1573 = vst.msk [vmem:[#allocation4 + $0x110] sm:$0xff] %vm280, 0.0
      %1574 = vst.msk [vmem:[#allocation4 + $0x118] sm:$0x3] %vm283, 0.0
      %1575 = vst.msk [vmem:[#allocation4 + $0x120] sm:$0xff] %vm280, 0.0
      %1576 = vst.msk [vmem:[#allocation4 + $0x128] sm:$0xff] %vm280, 0.0
      %1577 = vst.msk [vmem:[#allocation4 + $0x130] sm:$0x3] %vm283, 0.0
      %1578 = vst.msk [vmem:[#allocation4 + $0x138] sm:$0xff] %vm280, 0.0
      %1579 = vst.msk [vmem:[#allocation4 + $0x140] sm:$0xff] %vm280, 0.0
      %1580 = vst.msk [vmem:[#allocation4 + $0x148] sm:$0x3] %vm283, 0.0
      %1581 = vst.msk [vmem:[#allocation4 + $0x150] sm:$0xff] %vm280, 0.0
      %1582 = vst.msk [vmem:[#allocation4 + $0x158] sm:$0xff] %vm280, 0.0
      %1583 = vst.msk [vmem:[#allocation4 + $0x160] sm:$0x3] %vm283, 0.0
      %1584 = vst.msk [vmem:[#allocation4 + $0x168] sm:$0xff] %vm280, 0.0
      %1585 = vst.msk [vmem:[#allocation4 + $0x170] sm:$0xff] %vm280, 0.0
      %1586 = vst.msk [vmem:[#allocation4 + $0x178] sm:$0x3] %vm283, 0.0
      %1587 = vst.msk [vmem:[#allocation4 + $0x180] sm:$0xff] %vm280, 0.0
      %1588 = vst.msk [vmem:[#allocation4 + $0x188] sm:$0xff] %vm280, 0.0
      %1589 = vst.msk [vmem:[#allocation4 + $0x190] sm:$0x3] %vm283, 0.0
      %1590 = vst.msk [vmem:[#allocation4 + $0x198] sm:$0xff] %vm280, 0.0
      %1591 = vst.msk [vmem:[#allocation4 + $0x1a0] sm:$0xff] %vm280, 0.0
      %1592 = vst.msk [vmem:[#allocation4 + $0x1a8] sm:$0x3] %vm283, 0.0
      %1593 = vxpose.xlu0.b32.start [1/16] %v1537, 128
      %1594 = vxpose.xlu0.b32.cont [2/16] 0.0, 128
      %1595 = vxpose.xlu0.b32.cont [3/16] 0.0, 128
      %1596 = vxpose.xlu0.b32.cont [4/16] 0.0, 128
      %1597 = vxpose.xlu0.b32.cont [5/16] 0.0, 128
      %1598 = vxpose.xlu0.b32.cont [6/16] 0.0, 128
      %1599 = vxpose.xlu0.b32.cont [7/16] 0.0, 128
      %1600 = vxpose.xlu0.b32.cont [8/16] 0.0, 128
      %1601 = vxpose.xlu0.b32.cont [9/16] 0.0, 128
      %1602 = vxpose.xlu0.b32.cont [10/16] 0.0, 128
      %1603 = vxpose.xlu0.b32.cont [11/16] 0.0, 128
      %1604 = vxpose.xlu0.b32.cont [12/16] 0.0, 128
      %1605 = vxpose.xlu0.b32.cont [13/16] 0.0, 128
      %1606 = vxpose.xlu0.b32.cont [14/16] 0.0, 128
      %1607 = vxpose.xlu0.b32.cont [15/16] 0.0, 128
      %1608 = vxpose.xlu0.b32.end [16/16] 0.0, 128
      %v1609 = vpop.trf.xlu0
      %v1610 = vpop.trf.xlu0
      %v1611 = vpop.trf.xlu0
      %v1612 = vpop.trf.xlu0
      %v1613 = vpop.trf.xlu0
      %v1614 = vpop.trf.xlu0
      %v1615 = vpop.trf.xlu0
      %v1616 = vpop.trf.xlu0
      %v1617 = vpop.trf.xlu0
      %v1618 = vpop.trf.xlu0
      %v1619 = vpop.trf.xlu0
      %v1620 = vpop.trf.xlu0
      %v1621 = vpop.trf.xlu0
      %v1622 = vpop.trf.xlu0
      %v1623 = vpop.trf.xlu0
      %v1624 = vpop.trf.xlu0
      %1625 = vxpose.xlu0.b32.start [1/16] %v1538, 128
      %1626 = vxpose.xlu0.b32.cont [2/16] 0.0, 128
      %1627 = vxpose.xlu0.b32.cont [3/16] 0.0, 128
      %1628 = vxpose.xlu0.b32.cont [4/16] 0.0, 128
      %1629 = vxpose.xlu0.b32.cont [5/16] 0.0, 128
      %1630 = vxpose.xlu0.b32.cont [6/16] 0.0, 128
      %1631 = vxpose.xlu0.b32.cont [7/16] 0.0, 128
      %1632 = vxpose.xlu0.b32.cont [8/16] 0.0, 128
      %1633 = vxpose.xlu0.b32.cont [9/16] 0.0, 128
      %1634 = vxpose.xlu0.b32.cont [10/16] 0.0, 128
      %1635 = vxpose.xlu0.b32.cont [11/16] 0.0, 128
      %1636 = vxpose.xlu0.b32.cont [12/16] 0.0, 128
      %1637 = vxpose.xlu0.b32.cont [13/16] 0.0, 128
      %1638 = vxpose.xlu0.b32.cont [14/16] 0.0, 128
      %1639 = vxpose.xlu0.b32.cont [15/16] 0.0, 128
      %1640 = vxpose.xlu0.b32.end [16/16] 0.0, 128
      %v1641 = vpop.trf.xlu0
      %v1642 = vpop.trf.xlu0
      %v1643 = vpop.trf.xlu0
      %v1644 = vpop.trf.xlu0
      %v1645 = vpop.trf.xlu0
      %v1646 = vpop.trf.xlu0
      %v1647 = vpop.trf.xlu0
      %v1648 = vpop.trf.xlu0
      %v1649 = vpop.trf.xlu0
      %v1650 = vpop.trf.xlu0
      %v1651 = vpop.trf.xlu0
      %v1652 = vpop.trf.xlu0
      %v1653 = vpop.trf.xlu0
      %v1654 = vpop.trf.xlu0
      %v1655 = vpop.trf.xlu0
      %v1656 = vpop.trf.xlu0
      %s1657 = scalar_lea.vmem [#allocation4], 24
      %1658 = vst.msk [vmem:[%s1657 + $0x1] sm:$0xff] %vm280, %v1609
      %1659 = vst.msk [vmem:[%s1657 + $0x9] sm:$0xff] %vm280, %v1610
      %1660 = vst.msk [vmem:[%s1657 + $0x19] sm:$0xff] %vm280, %v1611
      %1661 = vst.msk [vmem:[%s1657 + $0x21] sm:$0xff] %vm280, %v1612
      %1662 = vst.msk [vmem:[%s1657 + $0x31] sm:$0xff] %vm280, %v1613
      %1663 = vst.msk [vmem:[%s1657 + $0x39] sm:$0xff] %vm280, %v1614
      %1664 = vst.msk [vmem:[%s1657 + $0x49] sm:$0xff] %vm280, %v1615
      %1665 = vst.msk [vmem:[%s1657 + $0x51] sm:$0xff] %vm280, %v1616
      %1666 = vst.msk [vmem:[%s1657 + $0x61] sm:$0xff] %vm280, %v1617
      %1667 = vst.msk [vmem:[%s1657 + $0x69] sm:$0xff] %vm280, %v1618
      %1668 = vst.msk [vmem:[%s1657 + $0x79] sm:$0xff] %vm280, %v1619
      %1669 = vst.msk [vmem:[%s1657 + $0x81] sm:$0xff] %vm280, %v1620
      %1670 = vst.msk [vmem:[%s1657 + $0x91] sm:$0xff] %vm280, %v1621
      %1671 = vst.msk [vmem:[%s1657 + $0x99] sm:$0xff] %vm280, %v1622
      %1672 = vst.msk [vmem:[%s1657 + $0xa9] sm:$0xff] %vm280, %v1623
      %1673 = vst.msk [vmem:[%s1657 + $0xb1] sm:$0xff] %vm280, %v1624
      %1674 = vst.msk [vmem:[%s1657 + $0xc1] sm:$0xff] %vm280, %v1641
      %1675 = vst.msk [vmem:[%s1657 + $0xc9] sm:$0xff] %vm280, %v1642
      %1676 = vst.msk [vmem:[%s1657 + $0xd9] sm:$0xff] %vm280, %v1643
      %1677 = vst.msk [vmem:[%s1657 + $0xe1] sm:$0xff] %vm280, %v1644
      %1678 = vst.msk [vmem:[%s1657 + $0xf1] sm:$0xff] %vm280, %v1645
      %1679 = vst.msk [vmem:[%s1657 + $0xf9] sm:$0xff] %vm280, %v1646
      %1680 = vst.msk [vmem:[%s1657 + $0x109] sm:$0xff] %vm280, %v1647
      %1681 = vst.msk [vmem:[%s1657 + $0x111] sm:$0xff] %vm280, %v1648
      %1682 = vst.msk [vmem:[%s1657 + $0x121] sm:$0xff] %vm280, %v1649
      %1683 = vst.msk [vmem:[%s1657 + $0x129] sm:$0xff] %vm280, %v1650
      %1684 = vst.msk [vmem:[%s1657 + $0x139] sm:$0xff] %vm280, %v1651
      %1685 = vst.msk [vmem:[%s1657 + $0x141] sm:$0xff] %vm280, %v1652
      %1686 = vst.msk [vmem:[%s1657 + $0x151] sm:$0xff] %vm280, %v1653
      %1687 = vst.msk [vmem:[%s1657 + $0x159] sm:$0xff] %vm280, %v1654
      %1688 = vst.msk [vmem:[%s1657 + $0x169] sm:$0xff] %vm280, %v1655
      %1689 = vst.msk [vmem:[%s1657 + $0x171] sm:$0xff] %vm280, %v1656
      %v1690 = vld [vmem:[#allocation4] sm:$0xff]
      %v1691 = vld [vmem:[#allocation4 + $0x8] sm:$0xff]
      %v1692 = vld [vmem:[#allocation4 + $0x10] sm:$0x3]
      %v1693 = vld [vmem:[#allocation4 + $0x18] sm:$0xff]
      %v1694 = vld [vmem:[#allocation4 + $0x20] sm:$0xff]
      %v1695 = vld [vmem:[#allocation4 + $0x28] sm:$0x3]
      %v1696 = vld [vmem:[#allocation4 + $0x30] sm:$0xff]
      %v1697 = vld [vmem:[#allocation4 + $0x38] sm:$0xff]
      %v1698 = vld [vmem:[#allocation4 + $0x40] sm:$0x3]
      %v1699 = vld [vmem:[#allocation4 + $0x48] sm:$0xff]
      %v1700 = vld [vmem:[#allocation4 + $0x50] sm:$0xff]
      %v1701 = vld [vmem:[#allocation4 + $0x58] sm:$0x3]
      %v1702 = vld [vmem:[#allocation4 + $0x60] sm:$0xff]
      %v1703 = vld [vmem:[#allocation4 + $0x68] sm:$0xff]
      %v1704 = vld [vmem:[#allocation4 + $0x70] sm:$0x3]
      %v1705 = vld [vmem:[#allocation4 + $0x78] sm:$0xff]
      %v1706 = vld [vmem:[#allocation4 + $0x80] sm:$0xff]
      %v1707 = vld [vmem:[#allocation4 + $0x88] sm:$0x3]
      %v1708 = vld [vmem:[#allocation4 + $0x90] sm:$0xff]
      %v1709 = vld [vmem:[#allocation4 + $0x98] sm:$0xff]
      %v1710 = vld [vmem:[#allocation4 + $0xa0] sm:$0x3]
      %v1711 = vld [vmem:[#allocation4 + $0xa8] sm:$0xff]
      %v1712 = vld [vmem:[#allocation4 + $0xb0] sm:$0xff]
      %v1713 = vld [vmem:[#allocation4 + $0xb8] sm:$0x3]
      %v1714 = vld [vmem:[#allocation4 + $0xc0] sm:$0xff]
      %v1715 = vld [vmem:[#allocation4 + $0xc8] sm:$0xff]
      %v1716 = vld [vmem:[#allocation4 + $0xd0] sm:$0x3]
      %v1717 = vld [vmem:[#allocation4 + $0xd8] sm:$0xff]
      %v1718 = vld [vmem:[#allocation4 + $0xe0] sm:$0xff]
      %v1719 = vld [vmem:[#allocation4 + $0xe8] sm:$0x3]
      %v1720 = vld [vmem:[#allocation4 + $0xf0] sm:$0xff]
      %v1721 = vld [vmem:[#allocation4 + $0xf8] sm:$0xff]
      %v1722 = vld [vmem:[#allocation4 + $0x100] sm:$0x3]
      %v1723 = vld [vmem:[#allocation4 + $0x108] sm:$0xff]
      %v1724 = vld [vmem:[#allocation4 + $0x110] sm:$0xff]
      %v1725 = vld [vmem:[#allocation4 + $0x118] sm:$0x3]
      %v1726 = vld [vmem:[#allocation4 + $0x120] sm:$0xff]
      %v1727 = vld [vmem:[#allocation4 + $0x128] sm:$0xff]
      %v1728 = vld [vmem:[#allocation4 + $0x130] sm:$0x3]
      %v1729 = vld [vmem:[#allocation4 + $0x138] sm:$0xff]
      %v1730 = vld [vmem:[#allocation4 + $0x140] sm:$0xff]
      %v1731 = vld [vmem:[#allocation4 + $0x148] sm:$0x3]
      %v1732 = vld [vmem:[#allocation4 + $0x150] sm:$0xff]
      %v1733 = vld [vmem:[#allocation4 + $0x158] sm:$0xff]
      %v1734 = vld [vmem:[#allocation4 + $0x160] sm:$0x3]
      %v1735 = vld [vmem:[#allocation4 + $0x168] sm:$0xff]
      %v1736 = vld [vmem:[#allocation4 + $0x170] sm:$0xff]
      %v1737 = vld [vmem:[#allocation4 + $0x178] sm:$0x3]
      %v1738 = vld [vmem:[#allocation4 + $0x180] sm:$0xff]
      %v1739 = vld [vmem:[#allocation4 + $0x188] sm:$0xff]
      %v1740 = vld [vmem:[#allocation4 + $0x190] sm:$0x3]
      %v1741 = vld [vmem:[#allocation4 + $0x198] sm:$0xff]
      %v1742 = vld [vmem:[#allocation4 + $0x1a0] sm:$0xff]
      %v1743 = vld [vmem:[#allocation4 + $0x1a8] sm:$0x3]
      %1744 = vxpose.xlu0.b32.start [1/16] %v1690, 128
      %1745 = vxpose.xlu0.b32.cont [2/16] %v1691, 128
      %1746 = vxpose.xlu0.b32.cont [3/16] %v1693, 128
      %1747 = vxpose.xlu0.b32.cont [4/16] %v1694, 128
      %1748 = vxpose.xlu0.b32.cont [5/16] %v1696, 128
      %1749 = vxpose.xlu0.b32.cont [6/16] %v1697, 128
      %1750 = vxpose.xlu0.b32.cont [7/16] %v1699, 128
      %1751 = vxpose.xlu0.b32.cont [8/16] %v1700, 128
      %1752 = vxpose.xlu0.b32.cont [9/16] %v1702, 128
      %1753 = vxpose.xlu0.b32.cont [10/16] %v1703, 128
      %1754 = vxpose.xlu0.b32.cont [11/16] %v1705, 128
      %1755 = vxpose.xlu0.b32.cont [12/16] %v1706, 128
      %1756 = vxpose.xlu0.b32.cont [13/16] %v1708, 128
      %1757 = vxpose.xlu0.b32.cont [14/16] %v1709, 128
      %1758 = vxpose.xlu0.b32.cont [15/16] %v1711, 128
      %1759 = vxpose.xlu0.b32.end [16/16] %v1712, 128
      %v1760 = vpop.trf.xlu0
      %v1761 = vpop.trf.xlu0
      %v1762 = vpop.trf.xlu0
      %v1763 = vpop.trf.xlu0
      %v1764 = vpop.trf.xlu0
      %v1765 = vpop.trf.xlu0
      %v1766 = vpop.trf.xlu0
      %v1767 = vpop.trf.xlu0
      %v1768 = vpop.trf.xlu0
      %v1769 = vpop.trf.xlu0
      %v1770 = vpop.trf.xlu0
      %v1771 = vpop.trf.xlu0
      %v1772 = vpop.trf.xlu0
      %v1773 = vpop.trf.xlu0
      %v1774 = vpop.trf.xlu0
      %v1775 = vpop.trf.xlu0
      %1776 = vxpose.xlu0.b32.start [1/16] %v1714, 128
      %1777 = vxpose.xlu0.b32.cont [2/16] %v1715, 128
      %1778 = vxpose.xlu0.b32.cont [3/16] %v1717, 128
      %1779 = vxpose.xlu0.b32.cont [4/16] %v1718, 128
      %1780 = vxpose.xlu0.b32.cont [5/16] %v1720, 128
      %1781 = vxpose.xlu0.b32.cont [6/16] %v1721, 128
      %1782 = vxpose.xlu0.b32.cont [7/16] %v1723, 128
      %1783 = vxpose.xlu0.b32.cont [8/16] %v1724, 128
      %1784 = vxpose.xlu0.b32.cont [9/16] %v1726, 128
      %1785 = vxpose.xlu0.b32.cont [10/16] %v1727, 128
      %1786 = vxpose.xlu0.b32.cont [11/16] %v1729, 128
      %1787 = vxpose.xlu0.b32.cont [12/16] %v1730, 128
      %1788 = vxpose.xlu0.b32.cont [13/16] %v1732, 128
      %1789 = vxpose.xlu0.b32.cont [14/16] %v1733, 128
      %1790 = vxpose.xlu0.b32.cont [15/16] %v1735, 128
      %1791 = vxpose.xlu0.b32.end [16/16] %v1736, 128
      %v1792 = vpop.trf.xlu0
      %v1793 = vpop.trf.xlu0
      %v1794 = vpop.trf.xlu0
      %v1795 = vpop.trf.xlu0
      %v1796 = vpop.trf.xlu0
      %v1797 = vpop.trf.xlu0
      %v1798 = vpop.trf.xlu0
      %v1799 = vpop.trf.xlu0
      %v1800 = vpop.trf.xlu0
      %v1801 = vpop.trf.xlu0
      %v1802 = vpop.trf.xlu0
      %v1803 = vpop.trf.xlu0
      %v1804 = vpop.trf.xlu0
      %v1805 = vpop.trf.xlu0
      %v1806 = vpop.trf.xlu0
      %v1807 = vpop.trf.xlu0
      %v1808 = vpack.c.bf16 %v1792, %v1760
      %1809 = vst [vmem:[#allocation5] sm:$0xff] %v1808
      %v1858 = vrot.slane %v1690, 1
      %v1859 = vrot.slane %v1691, 1
      %v1860 = vsel %vm609, %v1858, %v1859
      %v1861 = vrot.slane %v1692, 1
      %v1862 = vsel %vm609, %v1859, %v1861
      %v1863 = vrot.slane %v1693, 1
      %v1864 = vrot.slane %v1694, 1
      %v1865 = vsel %vm609, %v1863, %v1864
      %v1866 = vrot.slane %v1695, 1
      %v1867 = vsel %vm609, %v1864, %v1866
      %v1868 = vrot.slane %v1696, 1
      %v1869 = vrot.slane %v1697, 1
      %v1870 = vsel %vm609, %v1868, %v1869
      %v1871 = vrot.slane %v1698, 1
      %v1872 = vsel %vm609, %v1869, %v1871
      %v1873 = vrot.slane %v1699, 1
      %v1874 = vrot.slane %v1700, 1
      %v1875 = vsel %vm609, %v1873, %v1874
      %v1876 = vrot.slane %v1701, 1
      %v1877 = vsel %vm609, %v1874, %v1876
      %v1878 = vrot.slane %v1702, 1
      %v1879 = vrot.slane %v1703, 1
      %v1880 = vsel %vm609, %v1878, %v1879
      %v1881 = vrot.slane %v1704, 1
      %v1882 = vsel %vm609, %v1879, %v1881
      %v1883 = vrot.slane %v1705, 1
      %v1884 = vrot.slane %v1706, 1
      %v1885 = vsel %vm609, %v1883, %v1884
      %v1886 = vrot.slane %v1707, 1
      %v1887 = vsel %vm609, %v1884, %v1886
      %v1888 = vrot.slane %v1708, 1
      %v1889 = vrot.slane %v1709, 1
      %v1890 = vsel %vm609, %v1888, %v1889
      %v1891 = vrot.slane %v1710, 1
      %v1892 = vsel %vm609, %v1889, %v1891
      %v1893 = vrot.slane %v1711, 1
      %v1894 = vrot.slane %v1712, 1
      %v1895 = vsel %vm609, %v1893, %v1894
      %v1896 = vrot.slane %v1713, 1
      %v1897 = vsel %vm609, %v1894, %v1896
      %v1898 = vrot.slane %v1714, 1
      %v1899 = vrot.slane %v1715, 1
      %v1900 = vsel %vm609, %v1898, %v1899
      %v1901 = vrot.slane %v1716, 1
      %v1902 = vsel %vm609, %v1899, %v1901
      %v1903 = vrot.slane %v1717, 1
      %v1904 = vrot.slane %v1718, 1
      %v1905 = vsel %vm609, %v1903, %v1904
      %v1906 = vrot.slane %v1719, 1
      %v1907 = vsel %vm609, %v1904, %v1906
      %v1908 = vrot.slane %v1720, 1
      %v1909 = vrot.slane %v1721, 1
      %v1910 = vsel %vm609, %v1908, %v1909
      %v1911 = vrot.slane %v1722, 1
      %v1912 = vsel %vm609, %v1909, %v1911
      %v1913 = vrot.slane %v1723, 1
      %v1914 = vrot.slane %v1724, 1
      %v1915 = vsel %vm609, %v1913, %v1914
      %v1916 = vrot.slane %v1725, 1
      %v1917 = vsel %vm609, %v1914, %v1916
      %v1918 = vrot.slane %v1726, 1
      %v1919 = vrot.slane %v1727, 1
      %v1920 = vsel %vm609, %v1918, %v1919
      %v1921 = vrot.slane %v1728, 1
      %v1922 = vsel %vm609, %v1919, %v1921
      %v1923 = vrot.slane %v1729, 1
      %v1924 = vrot.slane %v1730, 1
      %v1925 = vsel %vm609, %v1923, %v1924
      %v1926 = vrot.slane %v1731, 1
      %v1927 = vsel %vm609, %v1924, %v1926
      %v1928 = vrot.slane %v1732, 1
      %v1929 = vrot.slane %v1733, 1
      %v1930 = vsel %vm609, %v1928, %v1929
      %v1931 = vrot.slane %v1734, 1
      %v1932 = vsel %vm609, %v1929, %v1931
      %v1933 = vrot.slane %v1735, 1
      %v1934 = vrot.slane %v1736, 1
      %v1935 = vsel %vm609, %v1933, %v1934
      %v1936 = vrot.slane %v1737, 1
      %v1937 = vsel %vm609, %v1934, %v1936
      %1970 = vxpose.xlu0.b32.start [1/16] %v1860, 128
      %1971 = vxpose.xlu0.b32.cont [2/16] %v1862, 128
      %1972 = vxpose.xlu0.b32.cont [3/16] %v1865, 128
      %1973 = vxpose.xlu0.b32.cont [4/16] %v1867, 128
      %1974 = vxpose.xlu0.b32.cont [5/16] %v1870, 128
      %1975 = vxpose.xlu0.b32.cont [6/16] %v1872, 128
      %1976 = vxpose.xlu0.b32.cont [7/16] %v1875, 128
      %1977 = vxpose.xlu0.b32.cont [8/16] %v1877, 128
      %1978 = vxpose.xlu0.b32.cont [9/16] %v1880, 128
      %1979 = vxpose.xlu0.b32.cont [10/16] %v1882, 128
      %1980 = vxpose.xlu0.b32.cont [11/16] %v1885, 128
      %1981 = vxpose.xlu0.b32.cont [12/16] %v1887, 128
      %1982 = vxpose.xlu0.b32.cont [13/16] %v1890, 128
      %1983 = vxpose.xlu0.b32.cont [14/16] %v1892, 128
      %1984 = vxpose.xlu0.b32.cont [15/16] %v1895, 128
      %1985 = vxpose.xlu0.b32.end [16/16] %v1897, 128
      %v1986 = vpop.trf.xlu0
      %v1987 = vpop.trf.xlu0
      %v1988 = vpop.trf.xlu0
      %v1989 = vpop.trf.xlu0
      %v1990 = vpop.trf.xlu0
      %v1991 = vpop.trf.xlu0
      %v1992 = vpop.trf.xlu0
      %v1993 = vpop.trf.xlu0
      %v1994 = vpop.trf.xlu0
      %v1995 = vpop.trf.xlu0
      %v1996 = vpop.trf.xlu0
      %v1997 = vpop.trf.xlu0
      %v1998 = vpop.trf.xlu0
      %v1999 = vpop.trf.xlu0
      %v2000 = vpop.trf.xlu0
      %v2001 = vpop.trf.xlu0
      %2002 = vxpose.xlu0.b32.start [1/16] %v1900, 128
      %2003 = vxpose.xlu0.b32.cont [2/16] %v1902, 128
      %2004 = vxpose.xlu0.b32.cont [3/16] %v1905, 128
      %2005 = vxpose.xlu0.b32.cont [4/16] %v1907, 128
      %2006 = vxpose.xlu0.b32.cont [5/16] %v1910, 128
      %2007 = vxpose.xlu0.b32.cont [6/16] %v1912, 128
      %2008 = vxpose.xlu0.b32.cont [7/16] %v1915, 128
      %2009 = vxpose.xlu0.b32.cont [8/16] %v1917, 128
      %2010 = vxpose.xlu0.b32.cont [9/16] %v1920, 128
      %2011 = vxpose.xlu0.b32.cont [10/16] %v1922, 128
      %2012 = vxpose.xlu0.b32.cont [11/16] %v1925, 128
      %2013 = vxpose.xlu0.b32.cont [12/16] %v1927, 128
      %2014 = vxpose.xlu0.b32.cont [13/16] %v1930, 128
      %2015 = vxpose.xlu0.b32.cont [14/16] %v1932, 128
      %2016 = vxpose.xlu0.b32.cont [15/16] %v1935, 128
      %2017 = vxpose.xlu0.b32.end [16/16] %v1937, 128
      %v2018 = vpop.trf.xlu0
      %v2019 = vpop.trf.xlu0
      %v2020 = vpop.trf.xlu0
      %v2021 = vpop.trf.xlu0
      %v2022 = vpop.trf.xlu0
      %v2023 = vpop.trf.xlu0
      %v2024 = vpop.trf.xlu0
      %v2025 = vpop.trf.xlu0
      %v2026 = vpop.trf.xlu0
      %v2027 = vpop.trf.xlu0
      %v2028 = vpop.trf.xlu0
      %v2029 = vpop.trf.xlu0
      %v2030 = vpop.trf.xlu0
      %v2031 = vpop.trf.xlu0
      %v2032 = vpop.trf.xlu0
      %v2033 = vpop.trf.xlu0
      %v2034 = vpack.c.bf16 %v2018, %v1986
      %2035 = vst [vmem:[#allocation5 + $0x8] sm:$0xff] %v2034
      %v2036 = vrot.slane %v1690, 2
      %v2037 = vrot.slane %v1691, 2
      %v2038 = vsel %vm788, %v2036, %v2037
      %v2039 = vrot.slane %v1692, 2
      %v2040 = vsel %vm788, %v2037, %v2039
      %v2041 = vrot.slane %v1693, 2
      %v2042 = vrot.slane %v1694, 2
      %v2043 = vsel %vm788, %v2041, %v2042
      %v2044 = vrot.slane %v1695, 2
      %v2045 = vsel %vm788, %v2042, %v2044
      %v2046 = vrot.slane %v1696, 2
      %v2047 = vrot.slane %v1697, 2
      %v2048 = vsel %vm788, %v2046, %v2047
      %v2049 = vrot.slane %v1698, 2
      %v2050 = vsel %vm788, %v2047, %v2049
      %v2051 = vrot.slane %v1699, 2
      %v2052 = vrot.slane %v1700, 2
      %v2053 = vsel %vm788, %v2051, %v2052
      %v2054 = vrot.slane %v1701, 2
      %v2055 = vsel %vm788, %v2052, %v2054
      %v2056 = vrot.slane %v1702, 2
      %v2057 = vrot.slane %v1703, 2
      %v2058 = vsel %vm788, %v2056, %v2057
      %v2059 = vrot.slane %v1704, 2
      %v2060 = vsel %vm788, %v2057, %v2059
      %v2061 = vrot.slane %v1705, 2
      %v2062 = vrot.slane %v1706, 2
      %v2063 = vsel %vm788, %v2061, %v2062
      %v2064 = vrot.slane %v1707, 2
      %v2065 = vsel %vm788, %v2062, %v2064
      %v2066 = vrot.slane %v1708, 2
      %v2067 = vrot.slane %v1709, 2
      %v2068 = vsel %vm788, %v2066, %v2067
      %v2069 = vrot.slane %v1710, 2
      %v2070 = vsel %vm788, %v2067, %v2069
      %v2071 = vrot.slane %v1711, 2
      %v2072 = vrot.slane %v1712, 2
      %v2073 = vsel %vm788, %v2071, %v2072
      %v2074 = vrot.slane %v1713, 2
      %v2075 = vsel %vm788, %v2072, %v2074
      %v2076 = vrot.slane %v1714, 2
      %v2077 = vrot.slane %v1715, 2
      %v2078 = vsel %vm788, %v2076, %v2077
      %v2079 = vrot.slane %v1716, 2
      %v2080 = vsel %vm788, %v2077, %v2079
      %v2081 = vrot.slane %v1717, 2
      %v2082 = vrot.slane %v1718, 2
      %v2083 = vsel %vm788, %v2081, %v2082
      %v2084 = vrot.slane %v1719, 2
      %v2085 = vsel %vm788, %v2082, %v2084
      %v2086 = vrot.slane %v1720, 2
      %v2087 = vrot.slane %v1721, 2
      %v2088 = vsel %vm788, %v2086, %v2087
      %v2089 = vrot.slane %v1722, 2
      %v2090 = vsel %vm788, %v2087, %v2089
      %v2091 = vrot.slane %v1723, 2
      %v2092 = vrot.slane %v1724, 2
      %v2093 = vsel %vm788, %v2091, %v2092
      %v2094 = vrot.slane %v1725, 2
      %v2095 = vsel %vm788, %v2092, %v2094
      %v2096 = vrot.slane %v1726, 2
      %v2097 = vrot.slane %v1727, 2
      %v2098 = vsel %vm788, %v2096, %v2097
      %v2099 = vrot.slane %v1728, 2
      %v2100 = vsel %vm788, %v2097, %v2099
      %v2101 = vrot.slane %v1729, 2
      %v2102 = vrot.slane %v1730, 2
      %v2103 = vsel %vm788, %v2101, %v2102
      %v2104 = vrot.slane %v1731, 2
      %v2105 = vsel %vm788, %v2102, %v2104
      %v2106 = vrot.slane %v1732, 2
      %v2107 = vrot.slane %v1733, 2
      %v2108 = vsel %vm788, %v2106, %v2107
      %v2109 = vrot.slane %v1734, 2
      %v2110 = vsel %vm788, %v2107, %v2109
      %v2111 = vrot.slane %v1735, 2
      %v2112 = vrot.slane %v1736, 2
      %v2113 = vsel %vm788, %v2111, %v2112
      %v2114 = vrot.slane %v1737, 2
      %v2115 = vsel %vm788, %v2112, %v2114
      %2148 = vxpose.xlu0.b32.start [1/16] %v2038, 128
      %2149 = vxpose.xlu0.b32.cont [2/16] %v2040, 128
      %2150 = vxpose.xlu0.b32.cont [3/16] %v2043, 128
      %2151 = vxpose.xlu0.b32.cont [4/16] %v2045, 128
      %2152 = vxpose.xlu0.b32.cont [5/16] %v2048, 128
      %2153 = vxpose.xlu0.b32.cont [6/16] %v2050, 128
      %2154 = vxpose.xlu0.b32.cont [7/16] %v2053, 128
      %2155 = vxpose.xlu0.b32.cont [8/16] %v2055, 128
      %2156 = vxpose.xlu0.b32.cont [9/16] %v2058, 128
      %2157 = vxpose.xlu0.b32.cont [10/16] %v2060, 128
      %2158 = vxpose.xlu0.b32.cont [11/16] %v2063, 128
      %2159 = vxpose.xlu0.b32.cont [12/16] %v2065, 128
      %2160 = vxpose.xlu0.b32.cont [13/16] %v2068, 128
      %2161 = vxpose.xlu0.b32.cont [14/16] %v2070, 128
      %2162 = vxpose.xlu0.b32.cont [15/16] %v2073, 128
      %2163 = vxpose.xlu0.b32.end [16/16] %v2075, 128
      %v2164 = vpop.trf.xlu0
      %v2165 = vpop.trf.xlu0
      %v2166 = vpop.trf.xlu0
      %v2167 = vpop.trf.xlu0
      %v2168 = vpop.trf.xlu0
      %v2169 = vpop.trf.xlu0
      %v2170 = vpop.trf.xlu0
      %v2171 = vpop.trf.xlu0
      %v2172 = vpop.trf.xlu0
      %v2173 = vpop.trf.xlu0
      %v2174 = vpop.trf.xlu0
      %v2175 = vpop.trf.xlu0
      %v2176 = vpop.trf.xlu0
      %v2177 = vpop.trf.xlu0
      %v2178 = vpop.trf.xlu0
      %v2179 = vpop.trf.xlu0
      %2180 = vxpose.xlu0.b32.start [1/16] %v2078, 128
      %2181 = vxpose.xlu0.b32.cont [2/16] %v2080, 128
      %2182 = vxpose.xlu0.b32.cont [3/16] %v2083, 128
      %2183 = vxpose.xlu0.b32.cont [4/16] %v2085, 128
      %2184 = vxpose.xlu0.b32.cont [5/16] %v2088, 128
      %2185 = vxpose.xlu0.b32.cont [6/16] %v2090, 128
      %2186 = vxpose.xlu0.b32.cont [7/16] %v2093, 128
      %2187 = vxpose.xlu0.b32.cont [8/16] %v2095, 128
      %2188 = vxpose.xlu0.b32.cont [9/16] %v2098, 128
      %2189 = vxpose.xlu0.b32.cont [10/16] %v2100, 128
      %2190 = vxpose.xlu0.b32.cont [11/16] %v2103, 128
      %2191 = vxpose.xlu0.b32.cont [12/16] %v2105, 128
      %2192 = vxpose.xlu0.b32.cont [13/16] %v2108, 128
      %2193 = vxpose.xlu0.b32.cont [14/16] %v2110, 128
      %2194 = vxpose.xlu0.b32.cont [15/16] %v2113, 128
      %2195 = vxpose.xlu0.b32.end [16/16] %v2115, 128
      %v2196 = vpop.trf.xlu0
      %v2197 = vpop.trf.xlu0
      %v2198 = vpop.trf.xlu0
      %v2199 = vpop.trf.xlu0
      %v2200 = vpop.trf.xlu0
      %v2201 = vpop.trf.xlu0
      %v2202 = vpop.trf.xlu0
      %v2203 = vpop.trf.xlu0
      %v2204 = vpop.trf.xlu0
      %v2205 = vpop.trf.xlu0
      %v2206 = vpop.trf.xlu0
      %v2207 = vpop.trf.xlu0
      %v2208 = vpop.trf.xlu0
      %v2209 = vpop.trf.xlu0
      %v2210 = vpop.trf.xlu0
      %v2211 = vpop.trf.xlu0
      %v2212 = vpack.c.bf16 %v2196, %v2164
      %2213 = vst [vmem:[#allocation5 + $0x10] sm:$0xff] %v2212
      %2214 = vxpose.xlu0.b32.start [1/16] %v1693, 128
      %2215 = vxpose.xlu0.b32.cont [2/16] %v1694, 128
      %2216 = vxpose.xlu0.b32.cont [3/16] %v1696, 128
      %2217 = vxpose.xlu0.b32.cont [4/16] %v1697, 128
      %2218 = vxpose.xlu0.b32.cont [5/16] %v1699, 128
      %2219 = vxpose.xlu0.b32.cont [6/16] %v1700, 128
      %2220 = vxpose.xlu0.b32.cont [7/16] %v1702, 128
      %2221 = vxpose.xlu0.b32.cont [8/16] %v1703, 128
      %2222 = vxpose.xlu0.b32.cont [9/16] %v1705, 128
      %2223 = vxpose.xlu0.b32.cont [10/16] %v1706, 128
      %2224 = vxpose.xlu0.b32.cont [11/16] %v1708, 128
      %2225 = vxpose.xlu0.b32.cont [12/16] %v1709, 128
      %2226 = vxpose.xlu0.b32.cont [13/16] %v1711, 128
      %2227 = vxpose.xlu0.b32.cont [14/16] %v1712, 128
      %2228 = vxpose.xlu0.b32.cont [15/16] %v1714, 128
      %2229 = vxpose.xlu0.b32.end [16/16] %v1715, 128
      %v2230 = vpop.trf.xlu0
      %v2231 = vpop.trf.xlu0
      %v2232 = vpop.trf.xlu0
      %v2233 = vpop.trf.xlu0
      %v2234 = vpop.trf.xlu0
      %v2235 = vpop.trf.xlu0
      %v2236 = vpop.trf.xlu0
      %v2237 = vpop.trf.xlu0
      %v2238 = vpop.trf.xlu0
      %v2239 = vpop.trf.xlu0
      %v2240 = vpop.trf.xlu0
      %v2241 = vpop.trf.xlu0
      %v2242 = vpop.trf.xlu0
      %v2243 = vpop.trf.xlu0
      %v2244 = vpop.trf.xlu0
      %v2245 = vpop.trf.xlu0
      %2246 = vxpose.xlu0.b32.start [1/16] %v1717, 128
      %2247 = vxpose.xlu0.b32.cont [2/16] %v1718, 128
      %2248 = vxpose.xlu0.b32.cont [3/16] %v1720, 128
      %2249 = vxpose.xlu0.b32.cont [4/16] %v1721, 128
      %2250 = vxpose.xlu0.b32.cont [5/16] %v1723, 128
      %2251 = vxpose.xlu0.b32.cont [6/16] %v1724, 128
      %2252 = vxpose.xlu0.b32.cont [7/16] %v1726, 128
      %2253 = vxpose.xlu0.b32.cont [8/16] %v1727, 128
      %2254 = vxpose.xlu0.b32.cont [9/16] %v1729, 128
      %2255 = vxpose.xlu0.b32.cont [10/16] %v1730, 128
      %2256 = vxpose.xlu0.b32.cont [11/16] %v1732, 128
      %2257 = vxpose.xlu0.b32.cont [12/16] %v1733, 128
      %2258 = vxpose.xlu0.b32.cont [13/16] %v1735, 128
      %2259 = vxpose.xlu0.b32.cont [14/16] %v1736, 128
      %2260 = vxpose.xlu0.b32.cont [15/16] %v1738, 128
      %2261 = vxpose.xlu0.b32.end [16/16] %v1739, 128
      %v2262 = vpop.trf.xlu0
      %v2263 = vpop.trf.xlu0
      %v2264 = vpop.trf.xlu0
      %v2265 = vpop.trf.xlu0
      %v2266 = vpop.trf.xlu0
      %v2267 = vpop.trf.xlu0
      %v2268 = vpop.trf.xlu0
      %v2269 = vpop.trf.xlu0
      %v2270 = vpop.trf.xlu0
      %v2271 = vpop.trf.xlu0
      %v2272 = vpop.trf.xlu0
      %v2273 = vpop.trf.xlu0
      %v2274 = vpop.trf.xlu0
      %v2275 = vpop.trf.xlu0
      %v2276 = vpop.trf.xlu0
      %v2277 = vpop.trf.xlu0
      %v2278 = vpack.c.bf16 %v2262, %v2230
      %2279 = vst [vmem:[#allocation5 + $0x18] sm:$0xff] %v2278
      %v2283 = vrot.slane %v1738, 1
      %v2284 = vrot.slane %v1739, 1
      %v2285 = vsel %vm609, %v2283, %v2284
      %v2286 = vrot.slane %v1740, 1
      %v2287 = vsel %vm609, %v2284, %v2286
      %2290 = vxpose.xlu0.b32.start [1/16] %v1865, 128
      %2291 = vxpose.xlu0.b32.cont [2/16] %v1867, 128
      %2292 = vxpose.xlu0.b32.cont [3/16] %v1870, 128
      %2293 = vxpose.xlu0.b32.cont [4/16] %v1872, 128
      %2294 = vxpose.xlu0.b32.cont [5/16] %v1875, 128
      %2295 = vxpose.xlu0.b32.cont [6/16] %v1877, 128
      %2296 = vxpose.xlu0.b32.cont [7/16] %v1880, 128
      %2297 = vxpose.xlu0.b32.cont [8/16] %v1882, 128
      %2298 = vxpose.xlu0.b32.cont [9/16] %v1885, 128
      %2299 = vxpose.xlu0.b32.cont [10/16] %v1887, 128
      %2300 = vxpose.xlu0.b32.cont [11/16] %v1890, 128
      %2301 = vxpose.xlu0.b32.cont [12/16] %v1892, 128
      %2302 = vxpose.xlu0.b32.cont [13/16] %v1895, 128
      %2303 = vxpose.xlu0.b32.cont [14/16] %v1897, 128
      %2304 = vxpose.xlu0.b32.cont [15/16] %v1900, 128
      %2305 = vxpose.xlu0.b32.end [16/16] %v1902, 128
      %v2306 = vpop.trf.xlu0
      %v2307 = vpop.trf.xlu0
      %v2308 = vpop.trf.xlu0
      %v2309 = vpop.trf.xlu0
      %v2310 = vpop.trf.xlu0
      %v2311 = vpop.trf.xlu0
      %v2312 = vpop.trf.xlu0
      %v2313 = vpop.trf.xlu0
      %v2314 = vpop.trf.xlu0
      %v2315 = vpop.trf.xlu0
      %v2316 = vpop.trf.xlu0
      %v2317 = vpop.trf.xlu0
      %v2318 = vpop.trf.xlu0
      %v2319 = vpop.trf.xlu0
      %v2320 = vpop.trf.xlu0
      %v2321 = vpop.trf.xlu0
      %2322 = vxpose.xlu0.b32.start [1/16] %v1905, 128
      %2323 = vxpose.xlu0.b32.cont [2/16] %v1907, 128
      %2324 = vxpose.xlu0.b32.cont [3/16] %v1910, 128
      %2325 = vxpose.xlu0.b32.cont [4/16] %v1912, 128
      %2326 = vxpose.xlu0.b32.cont [5/16] %v1915, 128
      %2327 = vxpose.xlu0.b32.cont [6/16] %v1917, 128
      %2328 = vxpose.xlu0.b32.cont [7/16] %v1920, 128
      %2329 = vxpose.xlu0.b32.cont [8/16] %v1922, 128
      %2330 = vxpose.xlu0.b32.cont [9/16] %v1925, 128
      %2331 = vxpose.xlu0.b32.cont [10/16] %v1927, 128
      %2332 = vxpose.xlu0.b32.cont [11/16] %v1930, 128
      %2333 = vxpose.xlu0.b32.cont [12/16] %v1932, 128
      %2334 = vxpose.xlu0.b32.cont [13/16] %v1935, 128
      %2335 = vxpose.xlu0.b32.cont [14/16] %v1937, 128
      %2336 = vxpose.xlu0.b32.cont [15/16] %v2285, 128
      %2337 = vxpose.xlu0.b32.end [16/16] %v2287, 128
      %v2338 = vpop.trf.xlu0
      %v2339 = vpop.trf.xlu0
      %v2340 = vpop.trf.xlu0
      %v2341 = vpop.trf.xlu0
      %v2342 = vpop.trf.xlu0
      %v2343 = vpop.trf.xlu0
      %v2344 = vpop.trf.xlu0
      %v2345 = vpop.trf.xlu0
      %v2346 = vpop.trf.xlu0
      %v2347 = vpop.trf.xlu0
      %v2348 = vpop.trf.xlu0
      %v2349 = vpop.trf.xlu0
      %v2350 = vpop.trf.xlu0
      %v2351 = vpop.trf.xlu0
      %v2352 = vpop.trf.xlu0
      %v2353 = vpop.trf.xlu0
      %v2354 = vpack.c.bf16 %v2338, %v2306
      %2355 = vst [vmem:[#allocation5 + $0x20] sm:$0xff] %v2354
      %v2356 = vrot.slane %v1738, 2
      %v2357 = vrot.slane %v1739, 2
      %v2358 = vsel %vm788, %v2356, %v2357
      %v2359 = vrot.slane %v1740, 2
      %v2360 = vsel %vm788, %v2357, %v2359
      %2363 = vxpose.xlu0.b32.start [1/16] %v2043, 128
      %2364 = vxpose.xlu0.b32.cont [2/16] %v2045, 128
      %2365 = vxpose.xlu0.b32.cont [3/16] %v2048, 128
      %2366 = vxpose.xlu0.b32.cont [4/16] %v2050, 128
      %2367 = vxpose.xlu0.b32.cont [5/16] %v2053, 128
      %2368 = vxpose.xlu0.b32.cont [6/16] %v2055, 128
      %2369 = vxpose.xlu0.b32.cont [7/16] %v2058, 128
      %2370 = vxpose.xlu0.b32.cont [8/16] %v2060, 128
      %2371 = vxpose.xlu0.b32.cont [9/16] %v2063, 128
      %2372 = vxpose.xlu0.b32.cont [10/16] %v2065, 128
      %2373 = vxpose.xlu0.b32.cont [11/16] %v2068, 128
      %2374 = vxpose.xlu0.b32.cont [12/16] %v2070, 128
      %2375 = vxpose.xlu0.b32.cont [13/16] %v2073, 128
      %2376 = vxpose.xlu0.b32.cont [14/16] %v2075, 128
      %2377 = vxpose.xlu0.b32.cont [15/16] %v2078, 128
      %2378 = vxpose.xlu0.b32.end [16/16] %v2080, 128
      %v2379 = vpop.trf.xlu0
      %v2380 = vpop.trf.xlu0
      %v2381 = vpop.trf.xlu0
      %v2382 = vpop.trf.xlu0
      %v2383 = vpop.trf.xlu0
      %v2384 = vpop.trf.xlu0
      %v2385 = vpop.trf.xlu0
      %v2386 = vpop.trf.xlu0
      %v2387 = vpop.trf.xlu0
      %v2388 = vpop.trf.xlu0
      %v2389 = vpop.trf.xlu0
      %v2390 = vpop.trf.xlu0
      %v2391 = vpop.trf.xlu0
      %v2392 = vpop.trf.xlu0
      %v2393 = vpop.trf.xlu0
      %v2394 = vpop.trf.xlu0
      %2395 = vxpose.xlu0.b32.start [1/16] %v2083, 128
      %2396 = vxpose.xlu0.b32.cont [2/16] %v2085, 128
      %2397 = vxpose.xlu0.b32.cont [3/16] %v2088, 128
      %2398 = vxpose.xlu0.b32.cont [4/16] %v2090, 128
      %2399 = vxpose.xlu0.b32.cont [5/16] %v2093, 128
      %2400 = vxpose.xlu0.b32.cont [6/16] %v2095, 128
      %2401 = vxpose.xlu0.b32.cont [7/16] %v2098, 128
      %2402 = vxpose.xlu0.b32.cont [8/16] %v2100, 128
      %2403 = vxpose.xlu0.b32.cont [9/16] %v2103, 128
      %2404 = vxpose.xlu0.b32.cont [10/16] %v2105, 128
      %2405 = vxpose.xlu0.b32.cont [11/16] %v2108, 128
      %2406 = vxpose.xlu0.b32.cont [12/16] %v2110, 128
      %2407 = vxpose.xlu0.b32.cont [13/16] %v2113, 128
      %2408 = vxpose.xlu0.b32.cont [14/16] %v2115, 128
      %2409 = vxpose.xlu0.b32.cont [15/16] %v2358, 128
      %2410 = vxpose.xlu0.b32.end [16/16] %v2360, 128
      %v2411 = vpop.trf.xlu0
      %v2412 = vpop.trf.xlu0
      %v2413 = vpop.trf.xlu0
      %v2414 = vpop.trf.xlu0
      %v2415 = vpop.trf.xlu0
      %v2416 = vpop.trf.xlu0
      %v2417 = vpop.trf.xlu0
      %v2418 = vpop.trf.xlu0
      %v2419 = vpop.trf.xlu0
      %v2420 = vpop.trf.xlu0
      %v2421 = vpop.trf.xlu0
      %v2422 = vpop.trf.xlu0
      %v2423 = vpop.trf.xlu0
      %v2424 = vpop.trf.xlu0
      %v2425 = vpop.trf.xlu0
      %v2426 = vpop.trf.xlu0
      %v2427 = vpack.c.bf16 %v2411, %v2379
      %2428 = vst [vmem:[#allocation5 + $0x28] sm:$0xff] %v2427
      %2429 = vxpose.xlu0.b32.start [1/16] %v1696, 128
      %2430 = vxpose.xlu0.b32.cont [2/16] %v1697, 128
      %2431 = vxpose.xlu0.b32.cont [3/16] %v1699, 128
      %2432 = vxpose.xlu0.b32.cont [4/16] %v1700, 128
      %2433 = vxpose.xlu0.b32.cont [5/16] %v1702, 128
      %2434 = vxpose.xlu0.b32.cont [6/16] %v1703, 128
      %2435 = vxpose.xlu0.b32.cont [7/16] %v1705, 128
      %2436 = vxpose.xlu0.b32.cont [8/16] %v1706, 128
      %2437 = vxpose.xlu0.b32.cont [9/16] %v1708, 128
      %2438 = vxpose.xlu0.b32.cont [10/16] %v1709, 128
      %2439 = vxpose.xlu0.b32.cont [11/16] %v1711, 128
      %2440 = vxpose.xlu0.b32.cont [12/16] %v1712, 128
      %2441 = vxpose.xlu0.b32.cont [13/16] %v1714, 128
      %2442 = vxpose.xlu0.b32.cont [14/16] %v1715, 128
      %2443 = vxpose.xlu0.b32.cont [15/16] %v1717, 128
      %2444 = vxpose.xlu0.b32.end [16/16] %v1718, 128
      %v2445 = vpop.trf.xlu0
      %v2446 = vpop.trf.xlu0
      %v2447 = vpop.trf.xlu0
      %v2448 = vpop.trf.xlu0
      %v2449 = vpop.trf.xlu0
      %v2450 = vpop.trf.xlu0
      %v2451 = vpop.trf.xlu0
      %v2452 = vpop.trf.xlu0
      %v2453 = vpop.trf.xlu0
      %v2454 = vpop.trf.xlu0
      %v2455 = vpop.trf.xlu0
      %v2456 = vpop.trf.xlu0
      %v2457 = vpop.trf.xlu0
      %v2458 = vpop.trf.xlu0
      %v2459 = vpop.trf.xlu0
      %v2460 = vpop.trf.xlu0
      %2461 = vxpose.xlu0.b32.start [1/16] %v1720, 128
      %2462 = vxpose.xlu0.b32.cont [2/16] %v1721, 128
      %2463 = vxpose.xlu0.b32.cont [3/16] %v1723, 128
      %2464 = vxpose.xlu0.b32.cont [4/16] %v1724, 128
      %2465 = vxpose.xlu0.b32.cont [5/16] %v1726, 128
      %2466 = vxpose.xlu0.b32.cont [6/16] %v1727, 128
      %2467 = vxpose.xlu0.b32.cont [7/16] %v1729, 128
      %2468 = vxpose.xlu0.b32.cont [8/16] %v1730, 128
      %2469 = vxpose.xlu0.b32.cont [9/16] %v1732, 128
      %2470 = vxpose.xlu0.b32.cont [10/16] %v1733, 128
      %2471 = vxpose.xlu0.b32.cont [11/16] %v1735, 128
      %2472 = vxpose.xlu0.b32.cont [12/16] %v1736, 128
      %2473 = vxpose.xlu0.b32.cont [13/16] %v1738, 128
      %2474 = vxpose.xlu0.b32.cont [14/16] %v1739, 128
      %2475 = vxpose.xlu0.b32.cont [15/16] %v1741, 128
      %2476 = vxpose.xlu0.b32.end [16/16] %v1742, 128
      %v2477 = vpop.trf.xlu0
      %v2478 = vpop.trf.xlu0
      %v2479 = vpop.trf.xlu0
      %v2480 = vpop.trf.xlu0
      %v2481 = vpop.trf.xlu0
      %v2482 = vpop.trf.xlu0
      %v2483 = vpop.trf.xlu0
      %v2484 = vpop.trf.xlu0
      %v2485 = vpop.trf.xlu0
      %v2486 = vpop.trf.xlu0
      %v2487 = vpop.trf.xlu0
      %v2488 = vpop.trf.xlu0
      %v2489 = vpop.trf.xlu0
      %v2490 = vpop.trf.xlu0
      %v2491 = vpop.trf.xlu0
      %v2492 = vpop.trf.xlu0
      %v2493 = vpack.c.bf16 %v2477, %v2445
      %2494 = vst [vmem:[#allocation5 + $0x30] sm:$0xff] %v2493
      %v2498 = vrot.slane %v1741, 1
      %v2499 = vrot.slane %v1742, 1
      %v2500 = vsel %vm609, %v2498, %v2499
      %v2501 = vrot.slane %v1743, 1
      %v2502 = vsel %vm609, %v2499, %v2501
      %2505 = vxpose.xlu0.b32.start [1/16] %v1870, 128
      %2506 = vxpose.xlu0.b32.cont [2/16] %v1872, 128
      %2507 = vxpose.xlu0.b32.cont [3/16] %v1875, 128
      %2508 = vxpose.xlu0.b32.cont [4/16] %v1877, 128
      %2509 = vxpose.xlu0.b32.cont [5/16] %v1880, 128
      %2510 = vxpose.xlu0.b32.cont [6/16] %v1882, 128
      %2511 = vxpose.xlu0.b32.cont [7/16] %v1885, 128
      %2512 = vxpose.xlu0.b32.cont [8/16] %v1887, 128
      %2513 = vxpose.xlu0.b32.cont [9/16] %v1890, 128
      %2514 = vxpose.xlu0.b32.cont [10/16] %v1892, 128
      %2515 = vxpose.xlu0.b32.cont [11/16] %v1895, 128
      %2516 = vxpose.xlu0.b32.cont [12/16] %v1897, 128
      %2517 = vxpose.xlu0.b32.cont [13/16] %v1900, 128
      %2518 = vxpose.xlu0.b32.cont [14/16] %v1902, 128
      %2519 = vxpose.xlu0.b32.cont [15/16] %v1905, 128
      %2520 = vxpose.xlu0.b32.end [16/16] %v1907, 128
      %v2521 = vpop.trf.xlu0
      %v2522 = vpop.trf.xlu0
      %v2523 = vpop.trf.xlu0
      %v2524 = vpop.trf.xlu0
      %v2525 = vpop.trf.xlu0
      %v2526 = vpop.trf.xlu0
      %v2527 = vpop.trf.xlu0
      %v2528 = vpop.trf.xlu0
      %v2529 = vpop.trf.xlu0
      %v2530 = vpop.trf.xlu0
      %v2531 = vpop.trf.xlu0
      %v2532 = vpop.trf.xlu0
      %v2533 = vpop.trf.xlu0
      %v2534 = vpop.trf.xlu0
      %v2535 = vpop.trf.xlu0
      %v2536 = vpop.trf.xlu0
      %2537 = vxpose.xlu0.b32.start [1/16] %v1910, 128
      %2538 = vxpose.xlu0.b32.cont [2/16] %v1912, 128
      %2539 = vxpose.xlu0.b32.cont [3/16] %v1915, 128
      %2540 = vxpose.xlu0.b32.cont [4/16] %v1917, 128
      %2541 = vxpose.xlu0.b32.cont [5/16] %v1920, 128
      %2542 = vxpose.xlu0.b32.cont [6/16] %v1922, 128
      %2543 = vxpose.xlu0.b32.cont [7/16] %v1925, 128
      %2544 = vxpose.xlu0.b32.cont [8/16] %v1927, 128
      %2545 = vxpose.xlu0.b32.cont [9/16] %v1930, 128
      %2546 = vxpose.xlu0.b32.cont [10/16] %v1932, 128
      %2547 = vxpose.xlu0.b32.cont [11/16] %v1935, 128
      %2548 = vxpose.xlu0.b32.cont [12/16] %v1937, 128
      %2549 = vxpose.xlu0.b32.cont [13/16] %v2285, 128
      %2550 = vxpose.xlu0.b32.cont [14/16] %v2287, 128
      %2551 = vxpose.xlu0.b32.cont [15/16] %v2500, 128
      %2552 = vxpose.xlu0.b32.end [16/16] %v2502, 128
      %v2553 = vpop.trf.xlu0
      %v2554 = vpop.trf.xlu0
      %v2555 = vpop.trf.xlu0
      %v2556 = vpop.trf.xlu0
      %v2557 = vpop.trf.xlu0
      %v2558 = vpop.trf.xlu0
      %v2559 = vpop.trf.xlu0
      %v2560 = vpop.trf.xlu0
      %v2561 = vpop.trf.xlu0
      %v2562 = vpop.trf.xlu0
      %v2563 = vpop.trf.xlu0
      %v2564 = vpop.trf.xlu0
      %v2565 = vpop.trf.xlu0
      %v2566 = vpop.trf.xlu0
      %v2567 = vpop.trf.xlu0
      %v2568 = vpop.trf.xlu0
      %v2569 = vpack.c.bf16 %v2553, %v2521
      %2570 = vst [vmem:[#allocation5 + $0x38] sm:$0xff] %v2569
      %v2571 = vrot.slane %v1741, 2
      %v2572 = vrot.slane %v1742, 2
      %v2573 = vsel %vm788, %v2571, %v2572
      %v2574 = vrot.slane %v1743, 2
      %v2575 = vsel %vm788, %v2572, %v2574
      %2578 = vxpose.xlu0.b32.start [1/16] %v2048, 128
      %2579 = vxpose.xlu0.b32.cont [2/16] %v2050, 128
      %2580 = vxpose.xlu0.b32.cont [3/16] %v2053, 128
      %2581 = vxpose.xlu0.b32.cont [4/16] %v2055, 128
      %2582 = vxpose.xlu0.b32.cont [5/16] %v2058, 128
      %2583 = vxpose.xlu0.b32.cont [6/16] %v2060, 128
      %2584 = vxpose.xlu0.b32.cont [7/16] %v2063, 128
      %2585 = vxpose.xlu0.b32.cont [8/16] %v2065, 128
      %2586 = vxpose.xlu0.b32.cont [9/16] %v2068, 128
      %2587 = vxpose.xlu0.b32.cont [10/16] %v2070, 128
      %2588 = vxpose.xlu0.b32.cont [11/16] %v2073, 128
      %2589 = vxpose.xlu0.b32.cont [12/16] %v2075, 128
      %2590 = vxpose.xlu0.b32.cont [13/16] %v2078, 128
      %2591 = vxpose.xlu0.b32.cont [14/16] %v2080, 128
      %2592 = vxpose.xlu0.b32.cont [15/16] %v2083, 128
      %2593 = vxpose.xlu0.b32.end [16/16] %v2085, 128
      %v2594 = vpop.trf.xlu0
      %v2595 = vpop.trf.xlu0
      %v2596 = vpop.trf.xlu0
      %v2597 = vpop.trf.xlu0
      %v2598 = vpop.trf.xlu0
      %v2599 = vpop.trf.xlu0
      %v2600 = vpop.trf.xlu0
      %v2601 = vpop.trf.xlu0
      %v2602 = vpop.trf.xlu0
      %v2603 = vpop.trf.xlu0
      %v2604 = vpop.trf.xlu0
      %v2605 = vpop.trf.xlu0
      %v2606 = vpop.trf.xlu0
      %v2607 = vpop.trf.xlu0
      %v2608 = vpop.trf.xlu0
      %v2609 = vpop.trf.xlu0
      %2610 = vxpose.xlu0.b32.start [1/16] %v2088, 128
      %2611 = vxpose.xlu0.b32.cont [2/16] %v2090, 128
      %2612 = vxpose.xlu0.b32.cont [3/16] %v2093, 128
      %2613 = vxpose.xlu0.b32.cont [4/16] %v2095, 128
      %2614 = vxpose.xlu0.b32.cont [5/16] %v2098, 128
      %2615 = vxpose.xlu0.b32.cont [6/16] %v2100, 128
      %2616 = vxpose.xlu0.b32.cont [7/16] %v2103, 128
      %2617 = vxpose.xlu0.b32.cont [8/16] %v2105, 128
      %2618 = vxpose.xlu0.b32.cont [9/16] %v2108, 128
      %2619 = vxpose.xlu0.b32.cont [10/16] %v2110, 128
      %2620 = vxpose.xlu0.b32.cont [11/16] %v2113, 128
      %2621 = vxpose.xlu0.b32.cont [12/16] %v2115, 128
      %2622 = vxpose.xlu0.b32.cont [13/16] %v2358, 128
      %2623 = vxpose.xlu0.b32.cont [14/16] %v2360, 128
      %2624 = vxpose.xlu0.b32.cont [15/16] %v2573, 128
      %2625 = vxpose.xlu0.b32.end [16/16] %v2575, 128
      %v2626 = vpop.trf.xlu0
      %v2627 = vpop.trf.xlu0
      %v2628 = vpop.trf.xlu0
      %v2629 = vpop.trf.xlu0
      %v2630 = vpop.trf.xlu0
      %v2631 = vpop.trf.xlu0
      %v2632 = vpop.trf.xlu0
      %v2633 = vpop.trf.xlu0
      %v2634 = vpop.trf.xlu0
      %v2635 = vpop.trf.xlu0
      %v2636 = vpop.trf.xlu0
      %v2637 = vpop.trf.xlu0
      %v2638 = vpop.trf.xlu0
      %v2639 = vpop.trf.xlu0
      %v2640 = vpop.trf.xlu0
      %v2641 = vpop.trf.xlu0
      %v2642 = vpack.c.bf16 %v2626, %v2594
      %2643 = vst [vmem:[#allocation5 + $0x40] sm:$0xff] %v2642
      %v2644 = vld [vmem:[%s4] sm:$0xf]
      %v2645 = vld [vmem:[#allocation5] sm:$0xff]
      %v2646 = vld [vmem:[#allocation5 + $0x8] sm:$0xff]
      %v2647 = vld [vmem:[#allocation5 + $0x10] sm:$0xff]
      %v2648 = vld [vmem:[#allocation5 + $0x18] sm:$0xff]
      %v2649 = vld [vmem:[#allocation5 + $0x20] sm:$0xff]
      %v2650 = vld [vmem:[#allocation5 + $0x28] sm:$0xff]
      %v2651 = vld [vmem:[#allocation5 + $0x30] sm:$0xff]
      %v2652 = vld [vmem:[#allocation5 + $0x38] sm:$0xff]
      %v2653 = vld [vmem:[#allocation5 + $0x40] sm:$0xff]
      %v2663 = vunpack.c.l.b16 %v2645
      %v2664 = vunpack.c.h.b16 %v2645
      %v2665 = vunpack.c.l.b16 %v2646
      %v2666 = vunpack.c.h.b16 %v2646
      %v2667 = vunpack.c.l.b16 %v2647
      %v2668 = vunpack.c.h.b16 %v2647
      %v2669 = vunpack.c.l.b16 %v2648
      %v2670 = vunpack.c.h.b16 %v2648
      %v2671 = vunpack.c.l.b16 %v2649
      %v2672 = vunpack.c.h.b16 %v2649
      %v2673 = vunpack.c.l.b16 %v2650
      %v2674 = vunpack.c.h.b16 %v2650
      %v2675 = vunpack.c.l.b16 %v2651
      %v2676 = vunpack.c.h.b16 %v2651
      %v2677 = vunpack.c.l.b16 %v2652
      %v2678 = vunpack.c.h.b16 %v2652
      %v2679 = vunpack.c.l.b16 %v2653
      %v2680 = vunpack.c.h.b16 %v2653
      %v2681 = vpack.c.b16 %v2665, %v2663
      %v2682 = vpack.c.b16 %v2666, %v2664
      %v2683 = vpack.c.b16 %v2669, %v2667
      %v2684 = vpack.c.b16 %v2670, %v2668
      %v2685 = vpack.c.b16 %v2673, %v2671
      %v2686 = vpack.c.b16 %v2674, %v2672
      %v2687 = vpack.c.b16 %v2677, %v2675
      %v2688 = vpack.c.b16 %v2678, %v2676
      %v2689 = vpack.c.b16 %v2679, %v2679
      %v2690 = vpack.c.b16 %v2680, %v2680
      %v2700 = vsel %vm1452, %v2644, 0
      %v2703 = vsel %vm1456, %v2689, 0
      %v2706 = vsel %vm1456, %v2690, 0
      %2708 = vmatpush.bf16.msra.mxu0 0
      %2709 = vmatpush.bf16.msra.mxu0 0
      %2710 = vmatpush.bf16.msra.mxu0 0
      %2711 = vmatpush.bf16.msra.mxu0 %v2703
      %2712 = vmatpush.bf16.msra.mxu0 %v2687
      %2713 = vmatpush.bf16.msra.mxu0 %v2685
      %2714 = vmatpush.bf16.msra.mxu0 %v2683
      %2715 = vmatpush.bf16.msra.mxu0 %v2681
      %2716 = vmatmul.bf16.gmra.mxu0 %v2700
      %v2717 = vpop.f32.mrf.mxu0
      %v2718 = vadd.f32 0.0, %v2717
      %v2719 = vpop.f32.mrf.mxu0
      %2720 = vdwg.mxu0
      %2721 = vmatpush.bf16.msra.mxu0 0
      %2722 = vmatpush.bf16.msra.mxu0 0
      %2723 = vmatpush.bf16.msra.mxu0 0
      %2724 = vmatpush.bf16.msra.mxu0 %v2706
      %2725 = vmatpush.bf16.msra.mxu0 %v2688
      %2726 = vmatpush.bf16.msra.mxu0 %v2686
      %2727 = vmatpush.bf16.msra.mxu0 %v2684
      %2728 = vmatpush.bf16.msra.mxu0 %v2682
      %2729 = vmatmul.bf16.gmra.mxu0 %v2700
      %v2730 = vpop.f32.mrf.mxu0
      %v2731 = vadd.f32 0.0, %v2730
      %v2732 = vpop.f32.mrf.mxu0
      %2733 = vdwg.mxu0
      %v2734 = vadd.f32 %v2718, %v2731
      %2735 = vadd.xlane.f32.xlu0 %v2734
      %v2736 = vpop.xlane.xlu0 %2735
      %v2737 = vmul.f32 %v2718, %v2718
      %v2738 = vmul.f32 %v2731, %v2731
      %v2739 = vadd.f32 %v2737, %v2738
      %2740 = vadd.xlane.f32.xlu0 %v2739
      %v2741 = vpop.xlane.xlu0 %2740
      %v2742 = vmul.f32 %v2736, 0.00390625
      %v2743 = vmul.f32 %v2741, 0.00390625
      %v2744 = vmul.f32 %v2742, %v2742
      %v2745 = vsub.f32 %v2743, %v2744
      %v2746 = vmax.f32 %v2745, 0.0
      %v2747 = vsub.f32 %v2718, %v2742
      %v2748 = vsub.f32 %v2731, %v2742
      %v2749 = vadd.f32 %v2746, 1e-05
      %v2750 = vrsqrt.pop %v2749
      %v2751 = vmul.f32 %v2750, %v2749
      %v2752 = vmul.f32 %v2751, %v2750
      %v2753 = vmul.f32 0.5, %v2752
      %v2754 = vsub.f32 1.5, %v2753
      %v2755 = vmul.f32 %v2750, %v2754
      %vm2756 = vweird.f32 %v2749
      %vm2757 = vweird.f32 %v2750
      %vm2758 = vmor %vm2756, %vm2757
      %v2759 = vsel %vm2758, %v2750, %v2755
      %v2760 = vmul.f32 %v2747, %v2759
      %v2761 = vmul.f32 %v2748, %v2759
      %v2762 = vld [vmem:[%s5] sm:$0xff]
      %2764 = vset.pattern.permute.xlu0 0
      %2765 = vperm.xlu0 %2764, %v2762
      %v2766 = vpop.permute.xlu0 %2765
      %v2768 = vmul.f32 %v2760, %v2766
      %v2769 = vmul.f32 %v2761, %v2766
      %v2770 = vld [vmem:[%s6] sm:$0xff]
      %2772 = vset.pattern.permute.xlu0 0
      %2773 = vperm.xlu0 %2772, %v2770
      %v2774 = vpop.permute.xlu0 %2773
      %v2776 = vadd.f32 %v2768, %v2774
      %v2777 = vadd.f32 %v2769, %v2774
      %vm2778 = vcmp.ge.f32.partialorder %v2776, 0.0
      %vm2779 = vcmp.ge.f32.partialorder %v2777, 0.0
      %v2780 = vmul.f32 %v2776, 0.01
      %v2781 = vmul.f32 %v2777, 0.01
      %v2782 = vsel %vm2778, %v2776, %v2780
      %v2783 = vsel %vm2779, %v2777, %v2781
      %2784 = vst [vmem:[%s278] sm:$0xff] %v2782
      %2785 = vst [vmem:[%s278 + $0x8] sm:$0xff] %v2783
      %p2786 = scmp.lt.s32.totalorder %s18, 1
      %s2787 = scalar_select %p2786, %s18, 1
      %s2788 = smul.addr %s2787, 2
      %s2789 = smul.addr %s2788, 8
      %s2790 = scalar_lea.vmem %s7, %s2789
      // Predicated region
      $region49: #{unet_basic_block.1} parent=47 // pred_check
        %p2791 = pneg %p188
      $region50: #{unet_basic_block.1} parent=47 // pred_check_branch
        %2793 = sbr.rel (%p2791) target = $region52
      $region51: #{unet_basic_block.1} parent=47 // pred_region
        _
      $region52: #{unet_basic_block.1} parent=47 // pred_fallthru
        _
    $region48: #{unet_basic_block.1} parent=5 // pred_fallthru
      _
    %p2794 = scmp.le.s32.totalorder 2, %s13
    // Predicated region
    $region53: #{unet_basic_block.1} parent=5 // pred_check
      %p2795 = pneg %p2794
    $region54: #{unet_basic_block.1} parent=5 // pred_check_branch
      %2797 = sbr.rel (%p2795) target = $region56
    $region55: #{unet_basic_block.1} parent=5 // pred_region
      %s2798 = ssub.s32 %s13, 2
      // Predicated region
      $region57: #{unet_basic_block.1} parent=55 // pred_check
        %p2799 = pneg %p194
      $region58: #{unet_basic_block.1} parent=55 // pred_check_branch
        %2801 = sbr.rel (%p2799) target = $region60
      $region59: #{unet_basic_block.1} parent=55 // pred_region
        %p2802 = scmp.lt.s32.totalorder %s19, 1
        %s2803 = scalar_select %p2802, %s19, 1
        %s2804 = smul.addr %s2803, 2
        %s2805 = smul.addr %s2804, 8
        %s2806 = scalar_lea.vmem %s7, %s2805
      $region60: #{unet_basic_block.1} parent=55 // pred_fallthru
        _
    $region56: #{unet_basic_block.1} parent=5 // pred_fallthru
      _
  $region6: #{unet_basic_block.1} parent=0 // loop_footer
    %s17 = sadd.s32 1, %s13
  $region7: #{unet_basic_block.1} parent=0 // loop_footer_branch
    %12 = sbr.rel target = $region3
  $region8: #{unet_basic_block.1} parent=0 // loop_exit
    _

</llo_original>
